<compile_context>
chip_gen: v7x
topology: tpu7x:2x2x1
jax: 0.10.0
libtpu: 0.0.40
codegen_flags: <defaults>
</compile_context>

<pallas_src>
import jax
import jax.numpy as jnp
from jax import lax
from jax.experimental import pallas as pl
from jax.experimental.pallas import tpu as pltpu


# ---------------------------------------------------------------------------
# Kernel: one batch tile (TB samples, batch on lanes) per grid step.
# Row orderings: p1 rows = (t, c1) c1-fastest, t in [0, L/2);
#                p2 rows = (t, c2) c2-fastest, t in [0, L/4).
# ---------------------------------------------------------------------------
def audio_cnn_kernel(x_ref, a1_ref, b1_ref, a2_ref, b2_ref,
                     fw1a_ref, fb1_ref, fw2_ref, fb2_ref, o_ref):
    f32, bf16 = jnp.float32, jnp.bfloat16
    x = x_ref[...]                                                     # (L, TB) bf16

    # conv1 (even/odd output times stacked vertically) -> MaxPool(2,2) via
    # elementwise max of the row halves -> +bias -> ReLU.
    # (per-channel bias is identical at both pooled positions and ReLU is monotone,
    #  so relu(max(ye, yo) + b) == maxpool(relu(conv1 + b)))
    h1 = a1_ref.shape[0] // 2                                          # multiple of 8
    y1 = jnp.dot(a1_ref[...], x, preferred_element_type=f32)           # (2*h1, TB) f32
    p1 = jnp.maximum(jnp.maximum(y1[:h1], y1[h1:]) + b1_ref[...], 0.0)

    # conv2 (NoRelu variant) -> MaxPool(2,2) -> +bias.
    h2 = a2_ref.shape[0] // 2                                          # multiple of 8
    y2 = jnp.dot(a2_ref[...], p1.astype(bf16), preferred_element_type=f32)
    p2 = jnp.maximum(y2[:h2], y2[h2:]) + b2_ref[...]

    # TODO(synk): nn.Dropout(0.25) is eval-mode identity here; training-time
    # stochastic masking is not implemented.
    # AdaptiveAvgPool1d(1) is pre-folded into fw1a; fc1 + ReLU, then fc2.
    h = jnp.maximum(jnp.dot(fw1a_ref[...], p2.astype(bf16),
                            preferred_element_type=f32) + fb1_ref[...], 0.0)
    o_ref[...] = (jnp.dot(fw2_ref[...], h.astype(bf16),
                          preferred_element_type=f32)
                  + fb2_ref[...]).astype(o_ref.dtype)                  # (n_out, TB)


def _conv_band_matrix(w, l_out):
    """Banded matrix A for Conv1d(k=3, stride=1, padding=1) unrolled over time.

    Output rows ordered (t, c_out) c_out-fastest; input columns ordered
    (s, c_in) c_in-fastest over the *unpadded* length (pad-zero taps dropped).
    y_rows = A @ x_cols.
    """
    c_out, c_in, kk = w.shape
    t = jnp.arange(l_out)[:, None, None, None]
    o = jnp.arange(c_out)[None, :, None, None]
    s = jnp.arange(l_out)[None, None, :, None]
    c = jnp.arange(c_in)[None, None, None, :]
    k = s - t + 1                                       # tap index (s = t + k - 1)
    valid = (k >= 0) & (k < kk)
    vals = w.astype(jnp.float32)[o, c, jnp.clip(k, 0, kk - 1)]
    a = jnp.where(valid, vals, 0.0)                     # (l_out, c_out, l_out, c_in)
    return a.reshape(l_out * c_out, l_out * c_in)


def _vmem_bytes(shape, dtype):
    """Rough VMEM footprint of a 2-D block, padded to the (8,128) tile."""
    r, c = shape
    return pl.cdiv(r, 8) * 8 * pl.cdiv(c, 128) * 128 * jnp.dtype(dtype).itemsize


def audio_cnn_forward(x, params, *, tb=None):
    """x: (B, 1, L) float32, PyTorch NCL. Returns same as torch .squeeze()."""
    w1, b1, w2, b2, fw1, fb1, fw2, fb2 = params         # PyTorch shapes
    f32, bf16 = jnp.float32, jnp.bfloat16
    B, c_in, L = x.shape
    assert c_in == 1 and L % 4 == 0
    C1, C2, n_out = w1.shape[0], w2.shape[0], fw2.shape[0]
    L2, L4 = L // 2, L // 4

    # --- fold the network into per-call constants (built once; resident in VMEM
    #     across all grid steps since their block indices are constant).
    a1 = _conv_band_matrix(w1, L).reshape(L, C1, L)
    a1m = jnp.concatenate([a1[0::2].reshape(L2 * C1, L),          # even output times
                           a1[1::2].reshape(L2 * C1, L)], 0).astype(bf16)
    a2 = _conv_band_matrix(w2, L2).reshape(L2, C2, L2 * C1)
    a2m = jnp.concatenate([a2[0::2].reshape(L4 * C2, L2 * C1),
                           a2[1::2].reshape(L4 * C2, L2 * C1)], 0).astype(bf16)
    b1r = jnp.tile(b1.astype(f32), L2)[:, None]                   # (L2*C1, 1)
    b2r = jnp.tile(b2.astype(f32), L4)[:, None]                   # (L4*C2, 1)
    avg = jnp.tile(jnp.eye(C2, dtype=f32), (1, L4)) / L4          # avg-pool matrix
    fw1a = (fw1.astype(f32) @ avg).astype(bf16)                   # fc1 ∘ AvgPool1d(1)
    fb1r = fb1.astype(f32)[:, None]
    fw2f = fw2.astype(bf16)
    fb2r = fb2.astype(f32)[:, None]

    # --- batch tiling: TB samples per grid step, batch on the lane axis.
    if tb is None:
        # 256 fills the 256-wide MXU on v6e/v7x, but only when it still leaves
        # >= 2 parallel grid steps (v7x has 2 TensorCores to shard across).
        tb = 256 if B >= 512 else 128
    bp = pl.cdiv(B, tb) * tb
    xT = jnp.zeros((L, bp), bf16).at[:, :B].set(x[:, 0, :].astype(bf16).T)

    # --- explicit VMEM budget: double-buffered blocks + f32 intermediates + margin.
    resident = 2 * (_vmem_bytes(a1m.shape, bf16) + _vmem_bytes(a2m.shape, bf16)
                    + _vmem_bytes(b1r.shape, f32) + _vmem_bytes(b2r.shape, f32)
                    + _vmem_bytes(fw1a.shape, bf16) + _vmem_bytes(fb1r.shape, f32)
                    + _vmem_bytes(fw2f.shape, bf16) + _vmem_bytes(fb2r.shape, f32)
                    + _vmem_bytes((L, tb), bf16) + _vmem_bytes((n_out, tb), f32))
    interm = 6 * _vmem_bytes((max(a1m.shape[0], a2m.shape[0]), tb), f32)
    est = resident + interm + (4 << 20)
    assert est <= (48 << 20), (
        f"VMEM estimate {est >> 20} MiB exceeds budget; use the banded conv2 "
        f"formulation (O(L) weights) for L={L}.")
    vmem_limit = min(max(est, 32 << 20), 48 << 20)

    const = lambda g: (0, 0)
    out = pl.pallas_call(
        audio_cnn_kernel,
        out_shape=jax.ShapeDtypeStruct((n_out, bp), f32),
        grid=(bp // tb,),
        in_specs=[
            pl.BlockSpec((L, tb), lambda g: (0, g)),   # input tile (length, batch-lanes)
            pl.BlockSpec(a1m.shape, const),
            pl.BlockSpec(b1r.shape, const),
            pl.BlockSpec(a2m.shape, const),
            pl.BlockSpec(b2r.shape, const),
            pl.BlockSpec(fw1a.shape, const),
            pl.BlockSpec(fb1r.shape, const),
            pl.BlockSpec(fw2f.shape, const),
            pl.BlockSpec(fb2r.shape, const),
        ],
        out_specs=pl.BlockSpec((n_out, tb), lambda g: (0, g)),   # lane-dense output
        compiler_params=pltpu.CompilerParams(
            dimension_semantics=("parallel",),
            vmem_limit_bytes=int(vmem_limit)),
    )(xT, a1m, b1r, a2m, b2r, fw1a, fb1r, fw2f, fb2r)

    return jnp.squeeze(out[:, :B].T)                    # matches torch's .squeeze()


def ref_forward(x, params):
    """Pure-JAX reference using lax conv / reduce_window (PyTorch semantics)."""
    w1, b1, w2, b2, fw1, fb1, fw2, fb2 = params
    dn = ('NCH', 'OIH', 'NCH')
    y = lax.conv_general_dilated(x, w1, (1,), [(1, 1)], dimension_numbers=dn)
    y = jnp.maximum(y + b1[None, :, None], 0.0)
    y = lax.reduce_window(y, -jnp.inf, lax.max, (1, 1, 2), (1, 1, 2), 'VALID')
    y = lax.conv_general_dilated(y, w2, (1,), [(1, 1)], dimension_numbers=dn) + b2[None, :, None]
    y = lax.reduce_window(y, -jnp.inf, lax.max, (1, 1, 2), (1, 1, 2), 'VALID')
    g = jnp.mean(y, axis=-1)                            # (B, 32)
    h = jnp.maximum(g @ fw1.T + fb1, 0.0)
    return jnp.squeeze(h @ fw2.T + fb2)


if __name__ == "__main__":
    key = jax.random.PRNGKey(0)
    ks = jax.random.split(key, 9)
    B, L = 2, 64                                        # small, forward-consistent shapes
    x = jax.random.normal(ks[0], (B, 1, L), jnp.float32)
    params = (
        0.2 * jax.random.normal(ks[1], (16, 1, 3), jnp.float32),   # conv1.weight
        0.1 * jax.random.normal(ks[2], (16,), jnp.float32),        # conv1.bias
        0.2 * jax.random.normal(ks[3], (32, 16, 3), jnp.float32),  # conv2.weight
        0.1 * jax.random.normal(ks[4], (32,), jnp.float32),        # conv2.bias
        0.2 * jax.random.normal(ks[5], (64, 32), jnp.float32),     # fc1.weight
        0.1 * jax.random.normal(ks[6], (64,), jnp.float32),        # fc1.bias
        0.2 * jax.random.normal(ks[7], (2, 64), jnp.float32),      # fc2.weight
        0.1 * jax.random.normal(ks[8], (2,), jnp.float32),         # fc2.bias
    )

    out = jax.block_until_ready(audio_cnn_forward(x, params))
    ref = jax.block_until_ready(ref_forward(x, params))
    assert out.shape == ref.shape == (B, 2), (out.shape, ref.shape)
    # bf16 MXU operands with f32 accumulation -> looser tolerance than pure f32.
    assert jnp.allclose(out, ref, atol=3e-2, rtol=3e-2), float(jnp.max(jnp.abs(out - ref)))
    print("KERNEL_OK")
</pallas_src>

<mosaic_0001>
module attributes {stable_mosaic.version = 11 : i64} {
  func.func @audio_cnn_kernel(%arg0: i32, %arg1: memref<64x128xbf16, #tpu.memory_space<vmem>>, %arg2: memref<1024x64xbf16, #tpu.memory_space<vmem>>, %arg3: memref<512x1xf32, #tpu.memory_space<vmem>>, %arg4: memref<1024x512xbf16, #tpu.memory_space<vmem>>, %arg5: memref<512x1xf32, #tpu.memory_space<vmem>>, %arg6: memref<64x512xbf16, #tpu.memory_space<vmem>>, %arg7: memref<64x1xf32, #tpu.memory_space<vmem>>, %arg8: memref<2x64xbf16, #tpu.memory_space<vmem>>, %arg9: memref<2x1xf32, #tpu.memory_space<vmem>>, %arg10: memref<2x128xf32, #tpu.memory_space<vmem>>) attributes {dimension_semantics = [#tpu.dimension_semantics<parallel>], iteration_bounds = array<i64: 1>, scalar_prefetch = 0 : i64, scratch_operands = 0 : i64, tpu.core_type = #tpu.core_type<tc>, window_params = [{transform_indices = @transform_0, window_bounds = array<i64: 64, 128>}, {pipeline_mode = #tpu.pipeline_mode<synchronous>, transform_indices = @transform_1, window_bounds = array<i64: 1024, 64>}, {pipeline_mode = #tpu.pipeline_mode<synchronous>, transform_indices = @transform_2, window_bounds = array<i64: 512, 1>}, {pipeline_mode = #tpu.pipeline_mode<synchronous>, transform_indices = @transform_3, window_bounds = array<i64: 1024, 512>}, {pipeline_mode = #tpu.pipeline_mode<synchronous>, transform_indices = @transform_4, window_bounds = array<i64: 512, 1>}, {pipeline_mode = #tpu.pipeline_mode<synchronous>, transform_indices = @transform_5, window_bounds = array<i64: 64, 512>}, {pipeline_mode = #tpu.pipeline_mode<synchronous>, transform_indices = @transform_6, window_bounds = array<i64: 64, 1>}, {pipeline_mode = #tpu.pipeline_mode<synchronous>, transform_indices = @transform_7, window_bounds = array<i64: 2, 64>}, {pipeline_mode = #tpu.pipeline_mode<synchronous>, transform_indices = @transform_8, window_bounds = array<i64: 2, 1>}, {transform_indices = @transform_9, window_bounds = array<i64: 2, 128>}]} {
    %c0 = arith.constant 0 : index
    %c0_0 = arith.constant 0 : index
    %0 = vector.load %arg1[%c0, %c0_0] : memref<64x128xbf16, #tpu.memory_space<vmem>>, vector<64x128xbf16>
    %c0_1 = arith.constant 0 : index
    %c0_2 = arith.constant 0 : index
    %1 = vector.load %arg2[%c0_1, %c0_2] : memref<1024x64xbf16, #tpu.memory_space<vmem>>, vector<1024x64xbf16>
    %cst = arith.constant dense<0.000000e+00> : vector<1024x128xf32>
    %2 = tpu.matmul %1, %0, %cst {dimension_numbers = #tpu.dot_dimension_numbers<[1], [0], [0], [1], [0, 0, 1, 1], [], []>} : vector<1024x64xbf16>, vector<64x128xbf16>, vector<1024x128xf32> -> vector<1024x128xf32>
    %3 = vector.extract_strided_slice %2 {offsets = [0, 0], sizes = [512, 128], strides = [1, 1]} : vector<1024x128xf32> to vector<512x128xf32>
    %4 = vector.extract_strided_slice %2 {offsets = [512, 0], sizes = [512, 128], strides = [1, 1]} : vector<1024x128xf32> to vector<512x128xf32>
    %5 = arith.maximumf %3, %4 : vector<512x128xf32>
    %c0_3 = arith.constant 0 : index
    %c0_4 = arith.constant 0 : index
    %6 = vector.load %arg3[%c0_3, %c0_4] : memref<512x1xf32, #tpu.memory_space<vmem>>, vector<512x1xf32>
    %7 = vector.broadcast %6 : vector<512x1xf32> to vector<512x128xf32>
    %8 = arith.addf %5, %7 : vector<512x128xf32>
    %cst_5 = arith.constant 0.000000e+00 : f32
    %9 = vector.broadcast %cst_5 : f32 to vector<512x128xf32>
    %10 = arith.maximumf %8, %9 : vector<512x128xf32>
    %c0_6 = arith.constant 0 : index
    %c0_7 = arith.constant 0 : index
    %11 = vector.load %arg4[%c0_6, %c0_7] : memref<1024x512xbf16, #tpu.memory_space<vmem>>, vector<1024x512xbf16>
    %12 = arith.truncf %10 : vector<512x128xf32> to vector<512x128xbf16>
    %cst_8 = arith.constant dense<0.000000e+00> : vector<1024x128xf32>
    %13 = tpu.matmul %11, %12, %cst_8 {dimension_numbers = #tpu.dot_dimension_numbers<[1], [0], [0], [1], [0, 0, 1, 1], [], []>} : vector<1024x512xbf16>, vector<512x128xbf16>, vector<1024x128xf32> -> vector<1024x128xf32>
    %14 = vector.extract_strided_slice %13 {offsets = [0, 0], sizes = [512, 128], strides = [1, 1]} : vector<1024x128xf32> to vector<512x128xf32>
    %15 = vector.extract_strided_slice %13 {offsets = [512, 0], sizes = [512, 128], strides = [1, 1]} : vector<1024x128xf32> to vector<512x128xf32>
    %16 = arith.maximumf %14, %15 : vector<512x128xf32>
    %c0_9 = arith.constant 0 : index
    %c0_10 = arith.constant 0 : index
    %17 = vector.load %arg5[%c0_9, %c0_10] : memref<512x1xf32, #tpu.memory_space<vmem>>, vector<512x1xf32>
    %18 = vector.broadcast %17 : vector<512x1xf32> to vector<512x128xf32>
    %19 = arith.addf %16, %18 : vector<512x128xf32>
    %c0_11 = arith.constant 0 : index
    %c0_12 = arith.constant 0 : index
    %20 = vector.load %arg6[%c0_11, %c0_12] : memref<64x512xbf16, #tpu.memory_space<vmem>>, vector<64x512xbf16>
    %21 = arith.truncf %19 : vector<512x128xf32> to vector<512x128xbf16>
    %cst_13 = arith.constant dense<0.000000e+00> : vector<64x128xf32>
    %22 = tpu.matmul %20, %21, %cst_13 {dimension_numbers = #tpu.dot_dimension_numbers<[1], [0], [0], [1], [0, 0, 1, 1], [], []>} : vector<64x512xbf16>, vector<512x128xbf16>, vector<64x128xf32> -> vector<64x128xf32>
    %c0_14 = arith.constant 0 : index
    %c0_15 = arith.constant 0 : index
    %23 = vector.load %arg7[%c0_14, %c0_15] : memref<64x1xf32, #tpu.memory_space<vmem>>, vector<64x1xf32>
    %24 = vector.broadcast %23 : vector<64x1xf32> to vector<64x128xf32>
    %25 = arith.addf %22, %24 : vector<64x128xf32>
    %cst_16 = arith.constant 0.000000e+00 : f32
    %26 = vector.broadcast %cst_16 : f32 to vector<64x128xf32>
    %27 = arith.maximumf %25, %26 : vector<64x128xf32>
    %c0_17 = arith.constant 0 : index
    %c0_18 = arith.constant 0 : index
    %28 = vector.load %arg8[%c0_17, %c0_18] : memref<2x64xbf16, #tpu.memory_space<vmem>>, vector<2x64xbf16>
    %29 = arith.truncf %27 : vector<64x128xf32> to vector<64x128xbf16>
    %cst_19 = arith.constant dense<0.000000e+00> : vector<2x128xf32>
    %30 = tpu.matmul %28, %29, %cst_19 {dimension_numbers = #tpu.dot_dimension_numbers<[1], [0], [0], [1], [0, 0, 1, 1], [], []>} : vector<2x64xbf16>, vector<64x128xbf16>, vector<2x128xf32> -> vector<2x128xf32>
    %c0_20 = arith.constant 0 : index
    %c0_21 = arith.constant 0 : index
    %31 = vector.load %arg9[%c0_20, %c0_21] : memref<2x1xf32, #tpu.memory_space<vmem>>, vector<2x1xf32>
    %32 = vector.broadcast %31 : vector<2x1xf32> to vector<2x128xf32>
    %33 = arith.addf %30, %32 : vector<2x128xf32>
    %c0_22 = arith.constant 0 : index
    %c0_23 = arith.constant 0 : index
    %34 = vector.load %arg10[%c0_22, %c0_23] : memref<2x128xf32, #tpu.memory_space<vmem>>, vector<2x128xf32>
    tpu.vector_store %arg10[%c0_22, %c0_23], %33 {strides = array<i32>} : memref<2x128xf32, #tpu.memory_space<vmem>>, vector<2x128xf32>,
    return
  }
  func.func @transform_0(%arg0: i32) -> (i32, i32) {
    %c0_i32 = arith.constant 0 : i32
    %c0_i32_0 = arith.constant 0 : i32
    return %c0_i32, %arg0 : i32, i32
  }
  func.func @transform_1(%arg0: i32) -> (i32, i32) {
    %c0_i32 = arith.constant 0 : i32
    %c0_i32_0 = arith.constant 0 : i32
    %c0_i32_1 = arith.constant 0 : i32
    return %c0_i32, %c0_i32_0 : i32, i32
  }
  func.func @transform_2(%arg0: i32) -> (i32, i32) {
    %c0_i32 = arith.constant 0 : i32
    %c0_i32_0 = arith.constant 0 : i32
    %c0_i32_1 = arith.constant 0 : i32
    return %c0_i32, %c0_i32_0 : i32, i32
  }
  func.func @transform_3(%arg0: i32) -> (i32, i32) {
    %c0_i32 = arith.constant 0 : i32
    %c0_i32_0 = arith.constant 0 : i32
    %c0_i32_1 = arith.constant 0 : i32
    return %c0_i32, %c0_i32_0 : i32, i32
  }
  func.func @transform_4(%arg0: i32) -> (i32, i32) {
    %c0_i32 = arith.constant 0 : i32
    %c0_i32_0 = arith.constant 0 : i32
    %c0_i32_1 = arith.constant 0 : i32
    return %c0_i32, %c0_i32_0 : i32, i32
  }
  func.func @transform_5(%arg0: i32) -> (i32, i32) {
    %c0_i32 = arith.constant 0 : i32
    %c0_i32_0 = arith.constant 0 : i32
    %c0_i32_1 = arith.constant 0 : i32
    return %c0_i32, %c0_i32_0 : i32, i32
  }
  func.func @transform_6(%arg0: i32) -> (i32, i32) {
    %c0_i32 = arith.constant 0 : i32
    %c0_i32_0 = arith.constant 0 : i32
    %c0_i32_1 = arith.constant 0 : i32
    return %c0_i32, %c0_i32_0 : i32, i32
  }
  func.func @transform_7(%arg0: i32) -> (i32, i32) {
    %c0_i32 = arith.constant 0 : i32
    %c0_i32_0 = arith.constant 0 : i32
    %c0_i32_1 = arith.constant 0 : i32
    return %c0_i32, %c0_i32_0 : i32, i32
  }
  func.func @transform_8(%arg0: i32) -> (i32, i32) {
    %c0_i32 = arith.constant 0 : i32
    %c0_i32_0 = arith.constant 0 : i32
    %c0_i32_1 = arith.constant 0 : i32
    return %c0_i32, %c0_i32_0 : i32, i32
  }
  func.func @transform_9(%arg0: i32) -> (i32, i32) {
    %c0_i32 = arith.constant 0 : i32
    %c0_i32_0 = arith.constant 0 : i32
    return %c0_i32, %arg0 : i32, i32
  }
}

</mosaic_0001>

<llo_original>
// kernel: tpu_custom_call.1
$region0: #{tpu_custom_call.1}
  #allocation0 [shape = 'u32[]', space=smem, size = 0x4, offset = 0x4, fixed_abs, tag = 'smem constant byte address 0x4 - core index']
  #allocation1 [shape = 'u32[144,128]{1,0:T(1,128)}', space=vmem, size = 0x12000, scoped, tag = 'internal scratch']
  %s0 = inlined_call_operand.vmem [shape: bf16[64,128], index: 0, kind: input, shape index: {}]
  %s1 = inlined_call_operand.vmem [shape: bf16[1024,64], index: 1, kind: input, shape index: {}]
  %s2 = inlined_call_operand.vmem [shape: f32[512,1], index: 2, kind: input, shape index: {}]
  %s3 = inlined_call_operand.hbm [shape: bf16[1024,512], index: 3, kind: input, shape index: {}]
  %s4 = inlined_call_operand.vmem [shape: f32[512,1], index: 4, kind: input, shape index: {}]
  %s5 = inlined_call_operand.vmem [shape: bf16[64,512], index: 5, kind: input, shape index: {}]
  %s6 = inlined_call_operand.vmem [shape: f32[64,1], index: 6, kind: input, shape index: {}]
  %s7 = inlined_call_operand.vmem [shape: bf16[2,64], index: 7, kind: input, shape index: {}]
  %s8 = inlined_call_operand.vmem [shape: f32[2,1], index: 8, kind: input, shape index: {}]
  %s9 = inlined_call_operand.hbm [shape: f32[2,128], index: 9, kind: output, shape index: {}]
  %s10 = sld [smem:[#allocation0]]
  $region50: #{tpu_custom_call.1} parent=0
    _
  %s12 = ssub.s32 1, %s10
  %s13 = scalar_select 0, %s12, %s10
  $region1: #{tpu_custom_call.1} parent=0
    #allocation2 [shape = 'u8[1048576]{0}', space=vmem, size = 0x100000, scoped, tag = 'input window, operand 3, single buffered']
    #allocation3 [shape = 's32[1]{0}', space=sflag, size = 0x4, scoped, tag = 'scoped memory for tpu_custom_call.1']
    #allocation4 [shape = 's32[1]{0}', space=sflag, size = 0x4, scoped, tag = 'scoped memory for tpu_custom_call.1']
    #allocation5 [shape = 'u8[1024]{0}', space=vmem, size = 0x400, scoped, tag = 'output window, operand 0, single buffered']
    %14 = vsyncpa [#allocation3], 0
    %15 = vsyncpa [#allocation4], 0
    // Predicated region
    $region2: #{tpu_custom_call.1} parent=1 // pred_check
      _
    $region3: #{tpu_custom_call.1} parent=1 // pred_check_branch
      %17 = sbr.rel (0) target = $region5
    $region4: #{tpu_custom_call.1} parent=1 // pred_region
      _
    $region5: #{tpu_custom_call.1} parent=1 // pred_fallthru
      _
    // Predicated region
    $region6: #{tpu_custom_call.1} parent=1 // pred_check
      _
    $region7: #{tpu_custom_call.1} parent=1 // pred_check_branch
      %19 = sbr.rel (0) target = $region9
    $region8: #{tpu_custom_call.1} parent=1 // pred_region
      _
    $region9: #{tpu_custom_call.1} parent=1 // pred_fallthru
      _
    // Predicated region
    $region10: #{tpu_custom_call.1} parent=1 // pred_check
      _
    $region11: #{tpu_custom_call.1} parent=1 // pred_check_branch
      %21 = sbr.rel (0) target = $region13
    $region12: #{tpu_custom_call.1} parent=1 // pred_region
      _
    $region13: #{tpu_custom_call.1} parent=1 // pred_fallthru
      _
    // Predicated region
    $region14: #{tpu_custom_call.1} parent=1 // pred_check
      _
    $region15: #{tpu_custom_call.1} parent=1 // pred_check_branch
      %23 = sbr.rel (0) target = $region17
    $region16: #{tpu_custom_call.1} parent=1 // pred_region
      %s25 = ssub.s32 32768, 32768
      %26 = vsyncadd [#allocation3], %s25
      %s27 = sshll.u32 [#allocation2], 4
      %s28 = int_to_ptr.vmem [resolvable:$true] %s27
      %33 = dma.hbm_to_vmem [thread:$0]  %s3, 32768, %s28, [#allocation3], 256, 256, 16
    $region17: #{tpu_custom_call.1} parent=1 // pred_fallthru
      _
    // Predicated region
    $region18: #{tpu_custom_call.1} parent=1 // pred_check
      _
    $region19: #{tpu_custom_call.1} parent=1 // pred_check_branch
      %35 = sbr.rel (0) target = $region21
    $region20: #{tpu_custom_call.1} parent=1 // pred_region
      _
    $region21: #{tpu_custom_call.1} parent=1 // pred_fallthru
      _
    // Predicated region
    $region22: #{tpu_custom_call.1} parent=1 // pred_check
      _
    $region23: #{tpu_custom_call.1} parent=1 // pred_check_branch
      %37 = sbr.rel (0) target = $region25
    $region24: #{tpu_custom_call.1} parent=1 // pred_region
      _
    $region25: #{tpu_custom_call.1} parent=1 // pred_fallthru
      _
    // Predicated region
    $region26: #{tpu_custom_call.1} parent=1 // pred_check
      _
    $region27: #{tpu_custom_call.1} parent=1 // pred_check_branch
      %39 = sbr.rel (0) target = $region29
    $region28: #{tpu_custom_call.1} parent=1 // pred_region
      _
    $region29: #{tpu_custom_call.1} parent=1 // pred_fallthru
      _
    // Predicated region
    $region30: #{tpu_custom_call.1} parent=1 // pred_check
      _
    $region31: #{tpu_custom_call.1} parent=1 // pred_check_branch
      %41 = sbr.rel (0) target = $region33
    $region32: #{tpu_custom_call.1} parent=1 // pred_region
      _
    $region33: #{tpu_custom_call.1} parent=1 // pred_fallthru
      _
    // Predicated region
    $region34: #{tpu_custom_call.1} parent=1 // pred_check
      _
    $region35: #{tpu_custom_call.1} parent=1 // pred_check_branch
      %43 = sbr.rel (0) target = $region37
    $region36: #{tpu_custom_call.1} parent=1 // pred_region
      _
    $region37: #{tpu_custom_call.1} parent=1 // pred_fallthru
      _
    // Predicated region
    $region38: #{tpu_custom_call.1} parent=1 // pred_check
      _
    $region39: #{tpu_custom_call.1} parent=1 // pred_check_branch
      %45 = sbr.rel (0) target = $region41
    $region40: #{tpu_custom_call.1} parent=1 // pred_region
      %46 = dma.done [#allocation3], 32768
    $region41: #{tpu_custom_call.1} parent=1 // pred_fallthru
      _
    %v48 = vld [vmem:[%s0] sm:$0xf]
    %v49 = vld [vmem:[%s0 + $0x4] sm:$0xf]
    %v50 = vld [vmem:[%s0 + $0x8] sm:$0xf]
    %v51 = vld [vmem:[%s0 + $0xc] sm:$0xf]
    %v52 = vld [vmem:[%s0 + $0x10] sm:$0xf]
    %v53 = vld [vmem:[%s0 + $0x14] sm:$0xf]
    %v54 = vld [vmem:[%s0 + $0x18] sm:$0xf]
    %v55 = vld [vmem:[%s0 + $0x1c] sm:$0xf]
    %v56 = vld [vmem:[%s1] sm:$0xf]
    %v57 = vld [vmem:[%s1 + $0x4] sm:$0xf]
    %v58 = vld [vmem:[%s1 + $0x8] sm:$0xf]
    %v59 = vld [vmem:[%s1 + $0xc] sm:$0xf]
    %v60 = vld [vmem:[%s1 + $0x10] sm:$0xf]
    %v61 = vld [vmem:[%s1 + $0x14] sm:$0xf]
    %v62 = vld [vmem:[%s1 + $0x18] sm:$0xf]
    %v63 = vld [vmem:[%s1 + $0x1c] sm:$0xf]
    %v64 = vld [vmem:[%s1 + $0x20] sm:$0xf]
    %v65 = vld [vmem:[%s1 + $0x24] sm:$0xf]
    %v66 = vld [vmem:[%s1 + $0x28] sm:$0xf]
    %v67 = vld [vmem:[%s1 + $0x2c] sm:$0xf]
    %v68 = vld [vmem:[%s1 + $0x30] sm:$0xf]
    %v69 = vld [vmem:[%s1 + $0x34] sm:$0xf]
    %v70 = vld [vmem:[%s1 + $0x38] sm:$0xf]
    %v71 = vld [vmem:[%s1 + $0x3c] sm:$0xf]
    %v72 = vld [vmem:[%s1 + $0x40] sm:$0xf]
    %v73 = vld [vmem:[%s1 + $0x44] sm:$0xf]
    %v74 = vld [vmem:[%s1 + $0x48] sm:$0xf]
    %v75 = vld [vmem:[%s1 + $0x4c] sm:$0xf]
    %v76 = vld [vmem:[%s1 + $0x50] sm:$0xf]
    %v77 = vld [vmem:[%s1 + $0x54] sm:$0xf]
    %v78 = vld [vmem:[%s1 + $0x58] sm:$0xf]
    %v79 = vld [vmem:[%s1 + $0x5c] sm:$0xf]
    %v80 = vld [vmem:[%s1 + $0x60] sm:$0xf]
    %v81 = vld [vmem:[%s1 + $0x64] sm:$0xf]
    %v82 = vld [vmem:[%s1 + $0x68] sm:$0xf]
    %v83 = vld [vmem:[%s1 + $0x6c] sm:$0xf]
    %v84 = vld [vmem:[%s1 + $0x70] sm:$0xf]
    %v85 = vld [vmem:[%s1 + $0x74] sm:$0xf]
    %v86 = vld [vmem:[%s1 + $0x78] sm:$0xf]
    %v87 = vld [vmem:[%s1 + $0x7c] sm:$0xf]
    %v88 = vld [vmem:[%s1 + $0x80] sm:$0xf]
    %v89 = vld [vmem:[%s1 + $0x84] sm:$0xf]
    %v90 = vld [vmem:[%s1 + $0x88] sm:$0xf]
    %v91 = vld [vmem:[%s1 + $0x8c] sm:$0xf]
    %v92 = vld [vmem:[%s1 + $0x90] sm:$0xf]
    %v93 = vld [vmem:[%s1 + $0x94] sm:$0xf]
    %v94 = vld [vmem:[%s1 + $0x98] sm:$0xf]
    %v95 = vld [vmem:[%s1 + $0x9c] sm:$0xf]
    %v96 = vld [vmem:[%s1 + $0xa0] sm:$0xf]
    %v97 = vld [vmem:[%s1 + $0xa4] sm:$0xf]
    %v98 = vld [vmem:[%s1 + $0xa8] sm:$0xf]
    %v99 = vld [vmem:[%s1 + $0xac] sm:$0xf]
    %v100 = vld [vmem:[%s1 + $0xb0] sm:$0xf]
    %v101 = vld [vmem:[%s1 + $0xb4] sm:$0xf]
    %v102 = vld [vmem:[%s1 + $0xb8] sm:$0xf]
    %v103 = vld [vmem:[%s1 + $0xbc] sm:$0xf]
    %v104 = vld [vmem:[%s1 + $0xc0] sm:$0xf]
    %v105 = vld [vmem:[%s1 + $0xc4] sm:$0xf]
    %v106 = vld [vmem:[%s1 + $0xc8] sm:$0xf]
    %v107 = vld [vmem:[%s1 + $0xcc] sm:$0xf]
    %v108 = vld [vmem:[%s1 + $0xd0] sm:$0xf]
    %v109 = vld [vmem:[%s1 + $0xd4] sm:$0xf]
    %v110 = vld [vmem:[%s1 + $0xd8] sm:$0xf]
    %v111 = vld [vmem:[%s1 + $0xdc] sm:$0xf]
    %v112 = vld [vmem:[%s1 + $0xe0] sm:$0xf]
    %v113 = vld [vmem:[%s1 + $0xe4] sm:$0xf]
    %v114 = vld [vmem:[%s1 + $0xe8] sm:$0xf]
    %v115 = vld [vmem:[%s1 + $0xec] sm:$0xf]
    %v116 = vld [vmem:[%s1 + $0xf0] sm:$0xf]
    %v117 = vld [vmem:[%s1 + $0xf4] sm:$0xf]
    %v118 = vld [vmem:[%s1 + $0xf8] sm:$0xf]
    %v119 = vld [vmem:[%s1 + $0xfc] sm:$0xf]
    %v120 = vld [vmem:[%s1 + $0x100] sm:$0xf]
    %v121 = vld [vmem:[%s1 + $0x104] sm:$0xf]
    %v122 = vld [vmem:[%s1 + $0x108] sm:$0xf]
    %v123 = vld [vmem:[%s1 + $0x10c] sm:$0xf]
    %v124 = vld [vmem:[%s1 + $0x110] sm:$0xf]
    %v125 = vld [vmem:[%s1 + $0x114] sm:$0xf]
    %v126 = vld [vmem:[%s1 + $0x118] sm:$0xf]
    %v127 = vld [vmem:[%s1 + $0x11c] sm:$0xf]
    %v128 = vld [vmem:[%s1 + $0x120] sm:$0xf]
    %v129 = vld [vmem:[%s1 + $0x124] sm:$0xf]
    %v130 = vld [vmem:[%s1 + $0x128] sm:$0xf]
    %v131 = vld [vmem:[%s1 + $0x12c] sm:$0xf]
    %v132 = vld [vmem:[%s1 + $0x130] sm:$0xf]
    %v133 = vld [vmem:[%s1 + $0x134] sm:$0xf]
    %v134 = vld [vmem:[%s1 + $0x138] sm:$0xf]
    %v135 = vld [vmem:[%s1 + $0x13c] sm:$0xf]
    %v136 = vld [vmem:[%s1 + $0x140] sm:$0xf]
    %v137 = vld [vmem:[%s1 + $0x144] sm:$0xf]
    %v138 = vld [vmem:[%s1 + $0x148] sm:$0xf]
    %v139 = vld [vmem:[%s1 + $0x14c] sm:$0xf]
    %v140 = vld [vmem:[%s1 + $0x150] sm:$0xf]
    %v141 = vld [vmem:[%s1 + $0x154] sm:$0xf]
    %v142 = vld [vmem:[%s1 + $0x158] sm:$0xf]
    %v143 = vld [vmem:[%s1 + $0x15c] sm:$0xf]
    %v144 = vld [vmem:[%s1 + $0x160] sm:$0xf]
    %v145 = vld [vmem:[%s1 + $0x164] sm:$0xf]
    %v146 = vld [vmem:[%s1 + $0x168] sm:$0xf]
    %v147 = vld [vmem:[%s1 + $0x16c] sm:$0xf]
    %v148 = vld [vmem:[%s1 + $0x170] sm:$0xf]
    %v149 = vld [vmem:[%s1 + $0x174] sm:$0xf]
    %v150 = vld [vmem:[%s1 + $0x178] sm:$0xf]
    %v151 = vld [vmem:[%s1 + $0x17c] sm:$0xf]
    %v152 = vld [vmem:[%s1 + $0x180] sm:$0xf]
    %v153 = vld [vmem:[%s1 + $0x184] sm:$0xf]
    %v154 = vld [vmem:[%s1 + $0x188] sm:$0xf]
    %v155 = vld [vmem:[%s1 + $0x18c] sm:$0xf]
    %v156 = vld [vmem:[%s1 + $0x190] sm:$0xf]
    %v157 = vld [vmem:[%s1 + $0x194] sm:$0xf]
    %v158 = vld [vmem:[%s1 + $0x198] sm:$0xf]
    %v159 = vld [vmem:[%s1 + $0x19c] sm:$0xf]
    %v160 = vld [vmem:[%s1 + $0x1a0] sm:$0xf]
    %v161 = vld [vmem:[%s1 + $0x1a4] sm:$0xf]
    %v162 = vld [vmem:[%s1 + $0x1a8] sm:$0xf]
    %v163 = vld [vmem:[%s1 + $0x1ac] sm:$0xf]
    %v164 = vld [vmem:[%s1 + $0x1b0] sm:$0xf]
    %v165 = vld [vmem:[%s1 + $0x1b4] sm:$0xf]
    %v166 = vld [vmem:[%s1 + $0x1b8] sm:$0xf]
    %v167 = vld [vmem:[%s1 + $0x1bc] sm:$0xf]
    %v168 = vld [vmem:[%s1 + $0x1c0] sm:$0xf]
    %v169 = vld [vmem:[%s1 + $0x1c4] sm:$0xf]
    %v170 = vld [vmem:[%s1 + $0x1c8] sm:$0xf]
    %v171 = vld [vmem:[%s1 + $0x1cc] sm:$0xf]
    %v172 = vld [vmem:[%s1 + $0x1d0] sm:$0xf]
    %v173 = vld [vmem:[%s1 + $0x1d4] sm:$0xf]
    %v174 = vld [vmem:[%s1 + $0x1d8] sm:$0xf]
    %v175 = vld [vmem:[%s1 + $0x1dc] sm:$0xf]
    %v176 = vld [vmem:[%s1 + $0x1e0] sm:$0xf]
    %v177 = vld [vmem:[%s1 + $0x1e4] sm:$0xf]
    %v178 = vld [vmem:[%s1 + $0x1e8] sm:$0xf]
    %v179 = vld [vmem:[%s1 + $0x1ec] sm:$0xf]
    %v180 = vld [vmem:[%s1 + $0x1f0] sm:$0xf]
    %v181 = vld [vmem:[%s1 + $0x1f4] sm:$0xf]
    %v182 = vld [vmem:[%s1 + $0x1f8] sm:$0xf]
    %v183 = vld [vmem:[%s1 + $0x1fc] sm:$0xf]
    %v312 = vunpack.c.l.b16 %v56
    %v313 = vunpack.c.l.b16 %v57
    %v314 = vunpack.c.l.b16 %v58
    %v315 = vunpack.c.l.b16 %v59
    %v316 = vunpack.c.l.b16 %v60
    %v317 = vunpack.c.l.b16 %v61
    %v318 = vunpack.c.l.b16 %v62
    %v319 = vunpack.c.l.b16 %v63
    %v320 = vunpack.c.l.b16 %v64
    %v321 = vunpack.c.l.b16 %v65
    %v322 = vunpack.c.l.b16 %v66
    %v323 = vunpack.c.l.b16 %v67
    %v324 = vunpack.c.l.b16 %v68
    %v325 = vunpack.c.l.b16 %v69
    %v326 = vunpack.c.l.b16 %v70
    %v327 = vunpack.c.l.b16 %v71
    %v328 = vunpack.c.l.b16 %v72
    %v329 = vunpack.c.l.b16 %v73
    %v330 = vunpack.c.l.b16 %v74
    %v331 = vunpack.c.l.b16 %v75
    %v332 = vunpack.c.l.b16 %v76
    %v333 = vunpack.c.l.b16 %v77
    %v334 = vunpack.c.l.b16 %v78
    %v335 = vunpack.c.l.b16 %v79
    %v336 = vunpack.c.l.b16 %v80
    %v337 = vunpack.c.l.b16 %v81
    %v338 = vunpack.c.l.b16 %v82
    %v339 = vunpack.c.l.b16 %v83
    %v340 = vunpack.c.l.b16 %v84
    %v341 = vunpack.c.l.b16 %v85
    %v342 = vunpack.c.l.b16 %v86
    %v343 = vunpack.c.l.b16 %v87
    %v344 = vunpack.c.l.b16 %v88
    %v345 = vunpack.c.l.b16 %v89
    %v346 = vunpack.c.l.b16 %v90
    %v347 = vunpack.c.l.b16 %v91
    %v348 = vunpack.c.l.b16 %v92
    %v349 = vunpack.c.l.b16 %v93
    %v350 = vunpack.c.l.b16 %v94
    %v351 = vunpack.c.l.b16 %v95
    %v352 = vunpack.c.l.b16 %v96
    %v353 = vunpack.c.l.b16 %v97
    %v354 = vunpack.c.l.b16 %v98
    %v355 = vunpack.c.l.b16 %v99
    %v356 = vunpack.c.l.b16 %v100
    %v357 = vunpack.c.l.b16 %v101
    %v358 = vunpack.c.l.b16 %v102
    %v359 = vunpack.c.l.b16 %v103
    %v360 = vunpack.c.l.b16 %v104
    %v361 = vunpack.c.l.b16 %v105
    %v362 = vunpack.c.l.b16 %v106
    %v363 = vunpack.c.l.b16 %v107
    %v364 = vunpack.c.l.b16 %v108
    %v365 = vunpack.c.l.b16 %v109
    %v366 = vunpack.c.l.b16 %v110
    %v367 = vunpack.c.l.b16 %v111
    %v368 = vunpack.c.l.b16 %v112
    %v369 = vunpack.c.l.b16 %v113
    %v370 = vunpack.c.l.b16 %v114
    %v371 = vunpack.c.l.b16 %v115
    %v372 = vunpack.c.l.b16 %v116
    %v373 = vunpack.c.l.b16 %v117
    %v374 = vunpack.c.l.b16 %v118
    %v375 = vunpack.c.l.b16 %v119
    %v376 = vunpack.c.l.b16 %v120
    %v377 = vunpack.c.l.b16 %v121
    %v378 = vunpack.c.l.b16 %v122
    %v379 = vunpack.c.l.b16 %v123
    %v380 = vunpack.c.l.b16 %v124
    %v381 = vunpack.c.l.b16 %v125
    %v382 = vunpack.c.l.b16 %v126
    %v383 = vunpack.c.l.b16 %v127
    %v384 = vunpack.c.l.b16 %v128
    %v385 = vunpack.c.l.b16 %v129
    %v386 = vunpack.c.l.b16 %v130
    %v387 = vunpack.c.l.b16 %v131
    %v388 = vunpack.c.l.b16 %v132
    %v389 = vunpack.c.l.b16 %v133
    %v390 = vunpack.c.l.b16 %v134
    %v391 = vunpack.c.l.b16 %v135
    %v392 = vunpack.c.l.b16 %v136
    %v393 = vunpack.c.l.b16 %v137
    %v394 = vunpack.c.l.b16 %v138
    %v395 = vunpack.c.l.b16 %v139
    %v396 = vunpack.c.l.b16 %v140
    %v397 = vunpack.c.l.b16 %v141
    %v398 = vunpack.c.l.b16 %v142
    %v399 = vunpack.c.l.b16 %v143
    %v400 = vunpack.c.l.b16 %v144
    %v401 = vunpack.c.l.b16 %v145
    %v402 = vunpack.c.l.b16 %v146
    %v403 = vunpack.c.l.b16 %v147
    %v404 = vunpack.c.l.b16 %v148
    %v405 = vunpack.c.l.b16 %v149
    %v406 = vunpack.c.l.b16 %v150
    %v407 = vunpack.c.l.b16 %v151
    %v408 = vunpack.c.l.b16 %v152
    %v409 = vunpack.c.l.b16 %v153
    %v410 = vunpack.c.l.b16 %v154
    %v411 = vunpack.c.l.b16 %v155
    %v412 = vunpack.c.l.b16 %v156
    %v413 = vunpack.c.l.b16 %v157
    %v414 = vunpack.c.l.b16 %v158
    %v415 = vunpack.c.l.b16 %v159
    %v416 = vunpack.c.l.b16 %v160
    %v417 = vunpack.c.l.b16 %v161
    %v418 = vunpack.c.l.b16 %v162
    %v419 = vunpack.c.l.b16 %v163
    %v420 = vunpack.c.l.b16 %v164
    %v421 = vunpack.c.l.b16 %v165
    %v422 = vunpack.c.l.b16 %v166
    %v423 = vunpack.c.l.b16 %v167
    %v424 = vunpack.c.l.b16 %v168
    %v425 = vunpack.c.l.b16 %v169
    %v426 = vunpack.c.l.b16 %v170
    %v427 = vunpack.c.l.b16 %v171
    %v428 = vunpack.c.l.b16 %v172
    %v429 = vunpack.c.l.b16 %v173
    %v430 = vunpack.c.l.b16 %v174
    %v431 = vunpack.c.l.b16 %v175
    %v432 = vunpack.c.l.b16 %v176
    %v433 = vunpack.c.l.b16 %v177
    %v434 = vunpack.c.l.b16 %v178
    %v435 = vunpack.c.l.b16 %v179
    %v436 = vunpack.c.l.b16 %v180
    %v437 = vunpack.c.l.b16 %v181
    %v438 = vunpack.c.l.b16 %v182
    %v439 = vunpack.c.l.b16 %v183
    %v440 = vpack.c.b16 %v313, %v312
    %v441 = vpack.c.b16 %v315, %v314
    %v442 = vpack.c.b16 %v317, %v316
    %v443 = vpack.c.b16 %v319, %v318
    %v444 = vpack.c.b16 %v321, %v320
    %v445 = vpack.c.b16 %v323, %v322
    %v446 = vpack.c.b16 %v325, %v324
    %v447 = vpack.c.b16 %v327, %v326
    %v448 = vpack.c.b16 %v329, %v328
    %v449 = vpack.c.b16 %v331, %v330
    %v450 = vpack.c.b16 %v333, %v332
    %v451 = vpack.c.b16 %v335, %v334
    %v452 = vpack.c.b16 %v337, %v336
    %v453 = vpack.c.b16 %v339, %v338
    %v454 = vpack.c.b16 %v341, %v340
    %v455 = vpack.c.b16 %v343, %v342
    %v456 = vpack.c.b16 %v345, %v344
    %v457 = vpack.c.b16 %v347, %v346
    %v458 = vpack.c.b16 %v349, %v348
    %v459 = vpack.c.b16 %v351, %v350
    %v460 = vpack.c.b16 %v353, %v352
    %v461 = vpack.c.b16 %v355, %v354
    %v462 = vpack.c.b16 %v357, %v356
    %v463 = vpack.c.b16 %v359, %v358
    %v464 = vpack.c.b16 %v361, %v360
    %v465 = vpack.c.b16 %v363, %v362
    %v466 = vpack.c.b16 %v365, %v364
    %v467 = vpack.c.b16 %v367, %v366
    %v468 = vpack.c.b16 %v369, %v368
    %v469 = vpack.c.b16 %v371, %v370
    %v470 = vpack.c.b16 %v373, %v372
    %v471 = vpack.c.b16 %v375, %v374
    %v472 = vpack.c.b16 %v377, %v376
    %v473 = vpack.c.b16 %v379, %v378
    %v474 = vpack.c.b16 %v381, %v380
    %v475 = vpack.c.b16 %v383, %v382
    %v476 = vpack.c.b16 %v385, %v384
    %v477 = vpack.c.b16 %v387, %v386
    %v478 = vpack.c.b16 %v389, %v388
    %v479 = vpack.c.b16 %v391, %v390
    %v480 = vpack.c.b16 %v393, %v392
    %v481 = vpack.c.b16 %v395, %v394
    %v482 = vpack.c.b16 %v397, %v396
    %v483 = vpack.c.b16 %v399, %v398
    %v484 = vpack.c.b16 %v401, %v400
    %v485 = vpack.c.b16 %v403, %v402
    %v486 = vpack.c.b16 %v405, %v404
    %v487 = vpack.c.b16 %v407, %v406
    %v488 = vpack.c.b16 %v409, %v408
    %v489 = vpack.c.b16 %v411, %v410
    %v490 = vpack.c.b16 %v413, %v412
    %v491 = vpack.c.b16 %v415, %v414
    %v492 = vpack.c.b16 %v417, %v416
    %v493 = vpack.c.b16 %v419, %v418
    %v494 = vpack.c.b16 %v421, %v420
    %v495 = vpack.c.b16 %v423, %v422
    %v496 = vpack.c.b16 %v425, %v424
    %v497 = vpack.c.b16 %v427, %v426
    %v498 = vpack.c.b16 %v429, %v428
    %v499 = vpack.c.b16 %v431, %v430
    %v500 = vpack.c.b16 %v433, %v432
    %v501 = vpack.c.b16 %v435, %v434
    %v502 = vpack.c.b16 %v437, %v436
    %v503 = vpack.c.b16 %v439, %v438
    %v512 = vunpack.c.l.b16 %v48
    %v513 = vunpack.c.l.b16 %v49
    %v514 = vunpack.c.l.b16 %v50
    %v515 = vunpack.c.l.b16 %v51
    %v516 = vunpack.c.l.b16 %v52
    %v517 = vunpack.c.l.b16 %v53
    %v518 = vunpack.c.l.b16 %v54
    %v519 = vunpack.c.l.b16 %v55
    %v520 = vpack.c.b16 %v513, %v512
    %v521 = vpack.c.b16 %v515, %v514
    %v522 = vpack.c.b16 %v517, %v516
    %v523 = vpack.c.b16 %v519, %v518
    %vm528 = vcmask 523264
    %v530 = vsel %vm528, %v440, 0
    %v533 = vsel %vm528, %v441, 0
    %v536 = vsel %vm528, %v442, 0
    %v539 = vsel %vm528, %v443, 0
    %v542 = vsel %vm528, %v444, 0
    %v545 = vsel %vm528, %v445, 0
    %v548 = vsel %vm528, %v446, 0
    %v551 = vsel %vm528, %v447, 0
    %v554 = vsel %vm528, %v448, 0
    %v557 = vsel %vm528, %v449, 0
    %v560 = vsel %vm528, %v450, 0
    %v563 = vsel %vm528, %v451, 0
    %v566 = vsel %vm528, %v452, 0
    %v569 = vsel %vm528, %v453, 0
    %v572 = vsel %vm528, %v454, 0
    %v575 = vsel %vm528, %v455, 0
    %v578 = vsel %vm528, %v456, 0
    %v581 = vsel %vm528, %v457, 0
    %v584 = vsel %vm528, %v458, 0
    %v587 = vsel %vm528, %v459, 0
    %v590 = vsel %vm528, %v460, 0
    %v593 = vsel %vm528, %v461, 0
    %v596 = vsel %vm528, %v462, 0
    %v599 = vsel %vm528, %v463, 0
    %v602 = vsel %vm528, %v464, 0
    %v605 = vsel %vm528, %v465, 0
    %v608 = vsel %vm528, %v466, 0
    %v611 = vsel %vm528, %v467, 0
    %v614 = vsel %vm528, %v468, 0
    %v617 = vsel %vm528, %v469, 0
    %v620 = vsel %vm528, %v470, 0
    %v623 = vsel %vm528, %v471, 0
    %v626 = vsel %vm528, %v472, 0
    %v629 = vsel %vm528, %v473, 0
    %v632 = vsel %vm528, %v474, 0
    %v635 = vsel %vm528, %v475, 0
    %v638 = vsel %vm528, %v476, 0
    %v641 = vsel %vm528, %v477, 0
    %v644 = vsel %vm528, %v478, 0
    %v647 = vsel %vm528, %v479, 0
    %v650 = vsel %vm528, %v480, 0
    %v653 = vsel %vm528, %v481, 0
    %v656 = vsel %vm528, %v482, 0
    %v659 = vsel %vm528, %v483, 0
    %v662 = vsel %vm528, %v484, 0
    %v665 = vsel %vm528, %v485, 0
    %v668 = vsel %vm528, %v486, 0
    %v671 = vsel %vm528, %v487, 0
    %v674 = vsel %vm528, %v488, 0
    %v677 = vsel %vm528, %v489, 0
    %v680 = vsel %vm528, %v490, 0
    %v683 = vsel %vm528, %v491, 0
    %v686 = vsel %vm528, %v492, 0
    %v689 = vsel %vm528, %v493, 0
    %v692 = vsel %vm528, %v494, 0
    %v695 = vsel %vm528, %v495, 0
    %v698 = vsel %vm528, %v496, 0
    %v701 = vsel %vm528, %v497, 0
    %v704 = vsel %vm528, %v498, 0
    %v707 = vsel %vm528, %v499, 0
    %v710 = vsel %vm528, %v500, 0
    %v713 = vsel %vm528, %v501, 0
    %v716 = vsel %vm528, %v502, 0
    %v719 = vsel %vm528, %v503, 0
    %721 = vmatprep.subr.bf16.mxu0 0
    %722 = vmatpush1.bf16.msra.mxu0 %v520
    %723 = vmatprep.subr.bf16.mxu0 0
    %724 = vmatpush1.bf16.msra.mxu0 %v521
    %725 = vmatprep.subr.bf16.mxu0 0
    %726 = vmatpush1.bf16.msra.mxu0 %v522
    %727 = vmatprep.subr.bf16.mxu0 0
    %728 = vmatpush1.bf16.msra.mxu0 %v523
    %729 = vmatprep.subr.bf16.mxu0 0
    %730 = vmatpush1.bf16.msra.mxu0 0
    %731 = vmatprep.subr.bf16.mxu0 0
    %732 = vmatpush1.bf16.msra.mxu0 0
    %733 = vmatprep.subr.bf16.mxu0 0
    %734 = vmatpush1.bf16.msra.mxu0 0
    %735 = vmatprep.subr.bf16.mxu0 0
    %736 = vmatpush1.bf16.msra.mxu0 0
    %737 = vmatprep.subr.bf16.mxu0 0
    %738 = vmatpush1.bf16.msra.mxu0 0
    %739 = vmatprep.subr.bf16.mxu0 0
    %740 = vmatpush1.bf16.msra.mxu0 0
    %741 = vmatprep.subr.bf16.mxu0 0
    %742 = vmatpush1.bf16.msra.mxu0 0
    %743 = vmatprep.subr.bf16.mxu0 0
    %744 = vmatpush1.bf16.msra.mxu0 0
    %745 = vmatprep.subr.bf16.mxu0 0
    %746 = vmatpush1.bf16.msra.mxu0 0
    %747 = vmatprep.subr.bf16.mxu0 0
    %748 = vmatpush1.bf16.msra.mxu0 0
    %749 = vmatprep.subr.bf16.mxu0 0
    %750 = vmatpush1.bf16.msra.mxu0 0
    %751 = vmatprep.subr.bf16.mxu0 0
    %752 = vmatpush1.bf16.msra.mxu0 0
    %753 = vmatprep.mubr.bf16.mxu0 0
    %754 = vmatmul.mubr.bf16.gmra.mrb[0].mxu0 %v530
    %v755 = vpop.f32.mrb[0].mxu0
    %v756 = vadd.f32 0.0, %v755
    %v757 = vpop.f32.mrb[0].mxu0
    %v758 = vpop.f32.mrb[0].mxu0
    %v759 = vadd.f32 0.0, %v758
    %v760 = vpop.f32.mrb[0].mxu0
    %761 = vmatprep.mubr.bf16.mxu0 0
    %762 = vmatmul.mubr.bf16.gmra.mrb[0].mxu0 %v533
    %v763 = vpop.f32.mrb[0].mxu0
    %v764 = vadd.f32 0.0, %v763
    %v765 = vpop.f32.mrb[0].mxu0
    %v766 = vpop.f32.mrb[0].mxu0
    %v767 = vadd.f32 0.0, %v766
    %v768 = vpop.f32.mrb[0].mxu0
    %769 = vmatprep.mubr.bf16.mxu0 0
    %770 = vmatmul.mubr.bf16.gmra.mrb[0].mxu0 %v536
    %v771 = vpop.f32.mrb[0].mxu0
    %v772 = vadd.f32 0.0, %v771
    %v773 = vpop.f32.mrb[0].mxu0
    %v774 = vpop.f32.mrb[0].mxu0
    %v775 = vadd.f32 0.0, %v774
    %v776 = vpop.f32.mrb[0].mxu0
    %777 = vmatprep.mubr.bf16.mxu0 0
    %778 = vmatmul.mubr.bf16.gmra.mrb[0].mxu0 %v539
    %v779 = vpop.f32.mrb[0].mxu0
    %v780 = vadd.f32 0.0, %v779
    %v781 = vpop.f32.mrb[0].mxu0
    %v782 = vpop.f32.mrb[0].mxu0
    %v783 = vadd.f32 0.0, %v782
    %v784 = vpop.f32.mrb[0].mxu0
    %785 = vmatprep.mubr.bf16.mxu0 0
    %786 = vmatmul.mubr.bf16.gmra.mrb[0].mxu0 %v542
    %v787 = vpop.f32.mrb[0].mxu0
    %v788 = vadd.f32 0.0, %v787
    %v789 = vpop.f32.mrb[0].mxu0
    %v790 = vpop.f32.mrb[0].mxu0
    %v791 = vadd.f32 0.0, %v790
    %v792 = vpop.f32.mrb[0].mxu0
    %793 = vmatprep.mubr.bf16.mxu0 0
    %794 = vmatmul.mubr.bf16.gmra.mrb[0].mxu0 %v545
    %v795 = vpop.f32.mrb[0].mxu0
    %v796 = vadd.f32 0.0, %v795
    %v797 = vpop.f32.mrb[0].mxu0
    %v798 = vpop.f32.mrb[0].mxu0
    %v799 = vadd.f32 0.0, %v798
    %v800 = vpop.f32.mrb[0].mxu0
    %801 = vmatprep.mubr.bf16.mxu0 0
    %802 = vmatmul.mubr.bf16.gmra.mrb[0].mxu0 %v548
    %v803 = vpop.f32.mrb[0].mxu0
    %v804 = vadd.f32 0.0, %v803
    %v805 = vpop.f32.mrb[0].mxu0
    %v806 = vpop.f32.mrb[0].mxu0
    %v807 = vadd.f32 0.0, %v806
    %v808 = vpop.f32.mrb[0].mxu0
    %809 = vmatprep.mubr.bf16.mxu0 0
    %810 = vmatmul.mubr.bf16.gmra.mrb[0].mxu0 %v551
    %v811 = vpop.f32.mrb[0].mxu0
    %v812 = vadd.f32 0.0, %v811
    %v813 = vpop.f32.mrb[0].mxu0
    %v814 = vpop.f32.mrb[0].mxu0
    %v815 = vadd.f32 0.0, %v814
    %v816 = vpop.f32.mrb[0].mxu0
    %817 = vmatprep.mubr.bf16.mxu0 0
    %818 = vmatmul.mubr.bf16.gmra.mrb[0].mxu0 %v554
    %v819 = vpop.f32.mrb[0].mxu0
    %v820 = vadd.f32 0.0, %v819
    %v821 = vpop.f32.mrb[0].mxu0
    %v822 = vpop.f32.mrb[0].mxu0
    %v823 = vadd.f32 0.0, %v822
    %v824 = vpop.f32.mrb[0].mxu0
    %825 = vmatprep.mubr.bf16.mxu0 0
    %826 = vmatmul.mubr.bf16.gmra.mrb[0].mxu0 %v557
    %v827 = vpop.f32.mrb[0].mxu0
    %v828 = vadd.f32 0.0, %v827
    %v829 = vpop.f32.mrb[0].mxu0
    %v830 = vpop.f32.mrb[0].mxu0
    %v831 = vadd.f32 0.0, %v830
    %v832 = vpop.f32.mrb[0].mxu0
    %833 = vmatprep.mubr.bf16.mxu0 0
    %834 = vmatmul.mubr.bf16.gmra.mrb[0].mxu0 %v560
    %v835 = vpop.f32.mrb[0].mxu0
    %v836 = vadd.f32 0.0, %v835
    %v837 = vpop.f32.mrb[0].mxu0
    %v838 = vpop.f32.mrb[0].mxu0
    %v839 = vadd.f32 0.0, %v838
    %v840 = vpop.f32.mrb[0].mxu0
    %841 = vmatprep.mubr.bf16.mxu0 0
    %842 = vmatmul.mubr.bf16.gmra.mrb[0].mxu0 %v563
    %v843 = vpop.f32.mrb[0].mxu0
    %v844 = vadd.f32 0.0, %v843
    %v845 = vpop.f32.mrb[0].mxu0
    %v846 = vpop.f32.mrb[0].mxu0
    %v847 = vadd.f32 0.0, %v846
    %v848 = vpop.f32.mrb[0].mxu0
    %849 = vmatprep.mubr.bf16.mxu0 0
    %850 = vmatmul.mubr.bf16.gmra.mrb[0].mxu0 %v566
    %v851 = vpop.f32.mrb[0].mxu0
    %v852 = vadd.f32 0.0, %v851
    %v853 = vpop.f32.mrb[0].mxu0
    %v854 = vpop.f32.mrb[0].mxu0
    %v855 = vadd.f32 0.0, %v854
    %v856 = vpop.f32.mrb[0].mxu0
    %857 = vmatprep.mubr.bf16.mxu0 0
    %858 = vmatmul.mubr.bf16.gmra.mrb[0].mxu0 %v569
    %v859 = vpop.f32.mrb[0].mxu0
    %v860 = vadd.f32 0.0, %v859
    %v861 = vpop.f32.mrb[0].mxu0
    %v862 = vpop.f32.mrb[0].mxu0
    %v863 = vadd.f32 0.0, %v862
    %v864 = vpop.f32.mrb[0].mxu0
    %865 = vmatprep.mubr.bf16.mxu0 0
    %866 = vmatmul.mubr.bf16.gmra.mrb[0].mxu0 %v572
    %v867 = vpop.f32.mrb[0].mxu0
    %v868 = vadd.f32 0.0, %v867
    %v869 = vpop.f32.mrb[0].mxu0
    %v870 = vpop.f32.mrb[0].mxu0
    %v871 = vadd.f32 0.0, %v870
    %v872 = vpop.f32.mrb[0].mxu0
    %873 = vmatprep.mubr.bf16.mxu0 0
    %874 = vmatmul.mubr.bf16.gmra.mrb[0].mxu0 %v575
    %v875 = vpop.f32.mrb[0].mxu0
    %v876 = vadd.f32 0.0, %v875
    %v877 = vpop.f32.mrb[0].mxu0
    %v878 = vpop.f32.mrb[0].mxu0
    %v879 = vadd.f32 0.0, %v878
    %v880 = vpop.f32.mrb[0].mxu0
    %881 = vmatprep.mubr.bf16.mxu0 0
    %882 = vmatmul.mubr.bf16.gmra.mrb[0].mxu0 %v578
    %v883 = vpop.f32.mrb[0].mxu0
    %v884 = vadd.f32 0.0, %v883
    %v885 = vpop.f32.mrb[0].mxu0
    %v886 = vpop.f32.mrb[0].mxu0
    %v887 = vadd.f32 0.0, %v886
    %v888 = vpop.f32.mrb[0].mxu0
    %889 = vmatprep.mubr.bf16.mxu0 0
    %890 = vmatmul.mubr.bf16.gmra.mrb[0].mxu0 %v581
    %v891 = vpop.f32.mrb[0].mxu0
    %v892 = vadd.f32 0.0, %v891
    %v893 = vpop.f32.mrb[0].mxu0
    %v894 = vpop.f32.mrb[0].mxu0
    %v895 = vadd.f32 0.0, %v894
    %v896 = vpop.f32.mrb[0].mxu0
    %897 = vmatprep.mubr.bf16.mxu0 0
    %898 = vmatmul.mubr.bf16.gmra.mrb[0].mxu0 %v584
    %v899 = vpop.f32.mrb[0].mxu0
    %v900 = vadd.f32 0.0, %v899
    %v901 = vpop.f32.mrb[0].mxu0
    %v902 = vpop.f32.mrb[0].mxu0
    %v903 = vadd.f32 0.0, %v902
    %v904 = vpop.f32.mrb[0].mxu0
    %905 = vmatprep.mubr.bf16.mxu0 0
    %906 = vmatmul.mubr.bf16.gmra.mrb[0].mxu0 %v587
    %v907 = vpop.f32.mrb[0].mxu0
    %v908 = vadd.f32 0.0, %v907
    %v909 = vpop.f32.mrb[0].mxu0
    %v910 = vpop.f32.mrb[0].mxu0
    %v911 = vadd.f32 0.0, %v910
    %v912 = vpop.f32.mrb[0].mxu0
    %913 = vmatprep.mubr.bf16.mxu0 0
    %914 = vmatmul.mubr.bf16.gmra.mrb[0].mxu0 %v590
    %v915 = vpop.f32.mrb[0].mxu0
    %v916 = vadd.f32 0.0, %v915
    %v917 = vpop.f32.mrb[0].mxu0
    %v918 = vpop.f32.mrb[0].mxu0
    %v919 = vadd.f32 0.0, %v918
    %v920 = vpop.f32.mrb[0].mxu0
    %921 = vmatprep.mubr.bf16.mxu0 0
    %922 = vmatmul.mubr.bf16.gmra.mrb[0].mxu0 %v593
    %v923 = vpop.f32.mrb[0].mxu0
    %v924 = vadd.f32 0.0, %v923
    %v925 = vpop.f32.mrb[0].mxu0
    %v926 = vpop.f32.mrb[0].mxu0
    %v927 = vadd.f32 0.0, %v926
    %v928 = vpop.f32.mrb[0].mxu0
    %929 = vmatprep.mubr.bf16.mxu0 0
    %930 = vmatmul.mubr.bf16.gmra.mrb[0].mxu0 %v596
    %v931 = vpop.f32.mrb[0].mxu0
    %v932 = vadd.f32 0.0, %v931
    %v933 = vpop.f32.mrb[0].mxu0
    %v934 = vpop.f32.mrb[0].mxu0
    %v935 = vadd.f32 0.0, %v934
    %v936 = vpop.f32.mrb[0].mxu0
    %937 = vmatprep.mubr.bf16.mxu0 0
    %938 = vmatmul.mubr.bf16.gmra.mrb[0].mxu0 %v599
    %v939 = vpop.f32.mrb[0].mxu0
    %v940 = vadd.f32 0.0, %v939
    %v941 = vpop.f32.mrb[0].mxu0
    %v942 = vpop.f32.mrb[0].mxu0
    %v943 = vadd.f32 0.0, %v942
    %v944 = vpop.f32.mrb[0].mxu0
    %945 = vmatprep.mubr.bf16.mxu0 0
    %946 = vmatmul.mubr.bf16.gmra.mrb[0].mxu0 %v602
    %v947 = vpop.f32.mrb[0].mxu0
    %v948 = vadd.f32 0.0, %v947
    %v949 = vpop.f32.mrb[0].mxu0
    %v950 = vpop.f32.mrb[0].mxu0
    %v951 = vadd.f32 0.0, %v950
    %v952 = vpop.f32.mrb[0].mxu0
    %953 = vmatprep.mubr.bf16.mxu0 0
    %954 = vmatmul.mubr.bf16.gmra.mrb[0].mxu0 %v605
    %v955 = vpop.f32.mrb[0].mxu0
    %v956 = vadd.f32 0.0, %v955
    %v957 = vpop.f32.mrb[0].mxu0
    %v958 = vpop.f32.mrb[0].mxu0
    %v959 = vadd.f32 0.0, %v958
    %v960 = vpop.f32.mrb[0].mxu0
    %961 = vmatprep.mubr.bf16.mxu0 0
    %962 = vmatmul.mubr.bf16.gmra.mrb[0].mxu0 %v608
    %v963 = vpop.f32.mrb[0].mxu0
    %v964 = vadd.f32 0.0, %v963
    %v965 = vpop.f32.mrb[0].mxu0
    %v966 = vpop.f32.mrb[0].mxu0
    %v967 = vadd.f32 0.0, %v966
    %v968 = vpop.f32.mrb[0].mxu0
    %969 = vmatprep.mubr.bf16.mxu0 0
    %970 = vmatmul.mubr.bf16.gmra.mrb[0].mxu0 %v611
    %v971 = vpop.f32.mrb[0].mxu0
    %v972 = vadd.f32 0.0, %v971
    %v973 = vpop.f32.mrb[0].mxu0
    %v974 = vpop.f32.mrb[0].mxu0
    %v975 = vadd.f32 0.0, %v974
    %v976 = vpop.f32.mrb[0].mxu0
    %977 = vmatprep.mubr.bf16.mxu0 0
    %978 = vmatmul.mubr.bf16.gmra.mrb[0].mxu0 %v614
    %v979 = vpop.f32.mrb[0].mxu0
    %v980 = vadd.f32 0.0, %v979
    %v981 = vpop.f32.mrb[0].mxu0
    %v982 = vpop.f32.mrb[0].mxu0
    %v983 = vadd.f32 0.0, %v982
    %v984 = vpop.f32.mrb[0].mxu0
    %985 = vmatprep.mubr.bf16.mxu0 0
    %986 = vmatmul.mubr.bf16.gmra.mrb[0].mxu0 %v617
    %v987 = vpop.f32.mrb[0].mxu0
    %v988 = vadd.f32 0.0, %v987
    %v989 = vpop.f32.mrb[0].mxu0
    %v990 = vpop.f32.mrb[0].mxu0
    %v991 = vadd.f32 0.0, %v990
    %v992 = vpop.f32.mrb[0].mxu0
    %993 = vmatprep.mubr.bf16.mxu0 0
    %994 = vmatmul.mubr.bf16.gmra.mrb[0].mxu0 %v620
    %v995 = vpop.f32.mrb[0].mxu0
    %v996 = vadd.f32 0.0, %v995
    %v997 = vpop.f32.mrb[0].mxu0
    %v998 = vpop.f32.mrb[0].mxu0
    %v999 = vadd.f32 0.0, %v998
    %v1000 = vpop.f32.mrb[0].mxu0
    %1001 = vmatprep.mubr.bf16.mxu0 0
    %1002 = vmatmul.mubr.bf16.gmra.mrb[0].mxu0 %v623
    %v1003 = vpop.f32.mrb[0].mxu0
    %v1004 = vadd.f32 0.0, %v1003
    %v1005 = vpop.f32.mrb[0].mxu0
    %v1006 = vpop.f32.mrb[0].mxu0
    %v1007 = vadd.f32 0.0, %v1006
    %v1008 = vpop.f32.mrb[0].mxu0
    %1009 = vmatprep.mubr.bf16.mxu0 0
    %1010 = vmatmul.mubr.bf16.gmra.mrb[0].mxu0 %v626
    %v1011 = vpop.f32.mrb[0].mxu0
    %v1012 = vadd.f32 0.0, %v1011
    %v1013 = vpop.f32.mrb[0].mxu0
    %v1014 = vpop.f32.mrb[0].mxu0
    %v1015 = vadd.f32 0.0, %v1014
    %v1016 = vpop.f32.mrb[0].mxu0
    %1017 = vmatprep.mubr.bf16.mxu0 0
    %1018 = vmatmul.mubr.bf16.gmra.mrb[0].mxu0 %v629
    %v1019 = vpop.f32.mrb[0].mxu0
    %v1020 = vadd.f32 0.0, %v1019
    %v1021 = vpop.f32.mrb[0].mxu0
    %v1022 = vpop.f32.mrb[0].mxu0
    %v1023 = vadd.f32 0.0, %v1022
    %v1024 = vpop.f32.mrb[0].mxu0
    %1025 = vmatprep.mubr.bf16.mxu0 0
    %1026 = vmatmul.mubr.bf16.gmra.mrb[0].mxu0 %v632
    %v1027 = vpop.f32.mrb[0].mxu0
    %v1028 = vadd.f32 0.0, %v1027
    %v1029 = vpop.f32.mrb[0].mxu0
    %v1030 = vpop.f32.mrb[0].mxu0
    %v1031 = vadd.f32 0.0, %v1030
    %v1032 = vpop.f32.mrb[0].mxu0
    %1033 = vmatprep.mubr.bf16.mxu0 0
    %1034 = vmatmul.mubr.bf16.gmra.mrb[0].mxu0 %v635
    %v1035 = vpop.f32.mrb[0].mxu0
    %v1036 = vadd.f32 0.0, %v1035
    %v1037 = vpop.f32.mrb[0].mxu0
    %v1038 = vpop.f32.mrb[0].mxu0
    %v1039 = vadd.f32 0.0, %v1038
    %v1040 = vpop.f32.mrb[0].mxu0
    %1041 = vmatprep.mubr.bf16.mxu0 0
    %1042 = vmatmul.mubr.bf16.gmra.mrb[0].mxu0 %v638
    %v1043 = vpop.f32.mrb[0].mxu0
    %v1044 = vadd.f32 0.0, %v1043
    %v1045 = vpop.f32.mrb[0].mxu0
    %v1046 = vpop.f32.mrb[0].mxu0
    %v1047 = vadd.f32 0.0, %v1046
    %v1048 = vpop.f32.mrb[0].mxu0
    %1049 = vmatprep.mubr.bf16.mxu0 0
    %1050 = vmatmul.mubr.bf16.gmra.mrb[0].mxu0 %v641
    %v1051 = vpop.f32.mrb[0].mxu0
    %v1052 = vadd.f32 0.0, %v1051
    %v1053 = vpop.f32.mrb[0].mxu0
    %v1054 = vpop.f32.mrb[0].mxu0
    %v1055 = vadd.f32 0.0, %v1054
    %v1056 = vpop.f32.mrb[0].mxu0
    %1057 = vmatprep.mubr.bf16.mxu0 0
    %1058 = vmatmul.mubr.bf16.gmra.mrb[0].mxu0 %v644
    %v1059 = vpop.f32.mrb[0].mxu0
    %v1060 = vadd.f32 0.0, %v1059
    %v1061 = vpop.f32.mrb[0].mxu0
    %v1062 = vpop.f32.mrb[0].mxu0
    %v1063 = vadd.f32 0.0, %v1062
    %v1064 = vpop.f32.mrb[0].mxu0
    %1065 = vmatprep.mubr.bf16.mxu0 0
    %1066 = vmatmul.mubr.bf16.gmra.mrb[0].mxu0 %v647
    %v1067 = vpop.f32.mrb[0].mxu0
    %v1068 = vadd.f32 0.0, %v1067
    %v1069 = vpop.f32.mrb[0].mxu0
    %v1070 = vpop.f32.mrb[0].mxu0
    %v1071 = vadd.f32 0.0, %v1070
    %v1072 = vpop.f32.mrb[0].mxu0
    %1073 = vmatprep.mubr.bf16.mxu0 0
    %1074 = vmatmul.mubr.bf16.gmra.mrb[0].mxu0 %v650
    %v1075 = vpop.f32.mrb[0].mxu0
    %v1076 = vadd.f32 0.0, %v1075
    %v1077 = vpop.f32.mrb[0].mxu0
    %v1078 = vpop.f32.mrb[0].mxu0
    %v1079 = vadd.f32 0.0, %v1078
    %v1080 = vpop.f32.mrb[0].mxu0
    %1081 = vmatprep.mubr.bf16.mxu0 0
    %1082 = vmatmul.mubr.bf16.gmra.mrb[0].mxu0 %v653
    %v1083 = vpop.f32.mrb[0].mxu0
    %v1084 = vadd.f32 0.0, %v1083
    %v1085 = vpop.f32.mrb[0].mxu0
    %v1086 = vpop.f32.mrb[0].mxu0
    %v1087 = vadd.f32 0.0, %v1086
    %v1088 = vpop.f32.mrb[0].mxu0
    %1089 = vmatprep.mubr.bf16.mxu0 0
    %1090 = vmatmul.mubr.bf16.gmra.mrb[0].mxu0 %v656
    %v1091 = vpop.f32.mrb[0].mxu0
    %v1092 = vadd.f32 0.0, %v1091
    %v1093 = vpop.f32.mrb[0].mxu0
    %v1094 = vpop.f32.mrb[0].mxu0
    %v1095 = vadd.f32 0.0, %v1094
    %v1096 = vpop.f32.mrb[0].mxu0
    %1097 = vmatprep.mubr.bf16.mxu0 0
    %1098 = vmatmul.mubr.bf16.gmra.mrb[0].mxu0 %v659
    %v1099 = vpop.f32.mrb[0].mxu0
    %v1100 = vadd.f32 0.0, %v1099
    %v1101 = vpop.f32.mrb[0].mxu0
    %v1102 = vpop.f32.mrb[0].mxu0
    %v1103 = vadd.f32 0.0, %v1102
    %v1104 = vpop.f32.mrb[0].mxu0
    %1105 = vmatprep.mubr.bf16.mxu0 0
    %1106 = vmatmul.mubr.bf16.gmra.mrb[0].mxu0 %v662
    %v1107 = vpop.f32.mrb[0].mxu0
    %v1108 = vadd.f32 0.0, %v1107
    %v1109 = vpop.f32.mrb[0].mxu0
    %v1110 = vpop.f32.mrb[0].mxu0
    %v1111 = vadd.f32 0.0, %v1110
    %v1112 = vpop.f32.mrb[0].mxu0
    %1113 = vmatprep.mubr.bf16.mxu0 0
    %1114 = vmatmul.mubr.bf16.gmra.mrb[0].mxu0 %v665
    %v1115 = vpop.f32.mrb[0].mxu0
    %v1116 = vadd.f32 0.0, %v1115
    %v1117 = vpop.f32.mrb[0].mxu0
    %v1118 = vpop.f32.mrb[0].mxu0
    %v1119 = vadd.f32 0.0, %v1118
    %v1120 = vpop.f32.mrb[0].mxu0
    %1121 = vmatprep.mubr.bf16.mxu0 0
    %1122 = vmatmul.mubr.bf16.gmra.mrb[0].mxu0 %v668
    %v1123 = vpop.f32.mrb[0].mxu0
    %v1124 = vadd.f32 0.0, %v1123
    %v1125 = vpop.f32.mrb[0].mxu0
    %v1126 = vpop.f32.mrb[0].mxu0
    %v1127 = vadd.f32 0.0, %v1126
    %v1128 = vpop.f32.mrb[0].mxu0
    %1129 = vmatprep.mubr.bf16.mxu0 0
    %1130 = vmatmul.mubr.bf16.gmra.mrb[0].mxu0 %v671
    %v1131 = vpop.f32.mrb[0].mxu0
    %v1132 = vadd.f32 0.0, %v1131
    %v1133 = vpop.f32.mrb[0].mxu0
    %v1134 = vpop.f32.mrb[0].mxu0
    %v1135 = vadd.f32 0.0, %v1134
    %v1136 = vpop.f32.mrb[0].mxu0
    %1137 = vmatprep.mubr.bf16.mxu0 0
    %1138 = vmatmul.mubr.bf16.gmra.mrb[0].mxu0 %v674
    %v1139 = vpop.f32.mrb[0].mxu0
    %v1140 = vadd.f32 0.0, %v1139
    %v1141 = vpop.f32.mrb[0].mxu0
    %v1142 = vpop.f32.mrb[0].mxu0
    %v1143 = vadd.f32 0.0, %v1142
    %v1144 = vpop.f32.mrb[0].mxu0
    %1145 = vmatprep.mubr.bf16.mxu0 0
    %1146 = vmatmul.mubr.bf16.gmra.mrb[0].mxu0 %v677
    %v1147 = vpop.f32.mrb[0].mxu0
    %v1148 = vadd.f32 0.0, %v1147
    %v1149 = vpop.f32.mrb[0].mxu0
    %v1150 = vpop.f32.mrb[0].mxu0
    %v1151 = vadd.f32 0.0, %v1150
    %v1152 = vpop.f32.mrb[0].mxu0
    %1153 = vmatprep.mubr.bf16.mxu0 0
    %1154 = vmatmul.mubr.bf16.gmra.mrb[0].mxu0 %v680
    %v1155 = vpop.f32.mrb[0].mxu0
    %v1156 = vadd.f32 0.0, %v1155
    %v1157 = vpop.f32.mrb[0].mxu0
    %v1158 = vpop.f32.mrb[0].mxu0
    %v1159 = vadd.f32 0.0, %v1158
    %v1160 = vpop.f32.mrb[0].mxu0
    %1161 = vmatprep.mubr.bf16.mxu0 0
    %1162 = vmatmul.mubr.bf16.gmra.mrb[0].mxu0 %v683
    %v1163 = vpop.f32.mrb[0].mxu0
    %v1164 = vadd.f32 0.0, %v1163
    %v1165 = vpop.f32.mrb[0].mxu0
    %v1166 = vpop.f32.mrb[0].mxu0
    %v1167 = vadd.f32 0.0, %v1166
    %v1168 = vpop.f32.mrb[0].mxu0
    %1169 = vmatprep.mubr.bf16.mxu0 0
    %1170 = vmatmul.mubr.bf16.gmra.mrb[0].mxu0 %v686
    %v1171 = vpop.f32.mrb[0].mxu0
    %v1172 = vadd.f32 0.0, %v1171
    %v1173 = vpop.f32.mrb[0].mxu0
    %v1174 = vpop.f32.mrb[0].mxu0
    %v1175 = vadd.f32 0.0, %v1174
    %v1176 = vpop.f32.mrb[0].mxu0
    %1177 = vmatprep.mubr.bf16.mxu0 0
    %1178 = vmatmul.mubr.bf16.gmra.mrb[0].mxu0 %v689
    %v1179 = vpop.f32.mrb[0].mxu0
    %v1180 = vadd.f32 0.0, %v1179
    %v1181 = vpop.f32.mrb[0].mxu0
    %v1182 = vpop.f32.mrb[0].mxu0
    %v1183 = vadd.f32 0.0, %v1182
    %v1184 = vpop.f32.mrb[0].mxu0
    %1185 = vmatprep.mubr.bf16.mxu0 0
    %1186 = vmatmul.mubr.bf16.gmra.mrb[0].mxu0 %v692
    %v1187 = vpop.f32.mrb[0].mxu0
    %v1188 = vadd.f32 0.0, %v1187
    %v1189 = vpop.f32.mrb[0].mxu0
    %v1190 = vpop.f32.mrb[0].mxu0
    %v1191 = vadd.f32 0.0, %v1190
    %v1192 = vpop.f32.mrb[0].mxu0
    %1193 = vmatprep.mubr.bf16.mxu0 0
    %1194 = vmatmul.mubr.bf16.gmra.mrb[0].mxu0 %v695
    %v1195 = vpop.f32.mrb[0].mxu0
    %v1196 = vadd.f32 0.0, %v1195
    %v1197 = vpop.f32.mrb[0].mxu0
    %v1198 = vpop.f32.mrb[0].mxu0
    %v1199 = vadd.f32 0.0, %v1198
    %v1200 = vpop.f32.mrb[0].mxu0
    %1201 = vmatprep.mubr.bf16.mxu0 0
    %1202 = vmatmul.mubr.bf16.gmra.mrb[0].mxu0 %v698
    %v1203 = vpop.f32.mrb[0].mxu0
    %v1204 = vadd.f32 0.0, %v1203
    %v1205 = vpop.f32.mrb[0].mxu0
    %v1206 = vpop.f32.mrb[0].mxu0
    %v1207 = vadd.f32 0.0, %v1206
    %v1208 = vpop.f32.mrb[0].mxu0
    %1209 = vmatprep.mubr.bf16.mxu0 0
    %1210 = vmatmul.mubr.bf16.gmra.mrb[0].mxu0 %v701
    %v1211 = vpop.f32.mrb[0].mxu0
    %v1212 = vadd.f32 0.0, %v1211
    %v1213 = vpop.f32.mrb[0].mxu0
    %v1214 = vpop.f32.mrb[0].mxu0
    %v1215 = vadd.f32 0.0, %v1214
    %v1216 = vpop.f32.mrb[0].mxu0
    %1217 = vmatprep.mubr.bf16.mxu0 0
    %1218 = vmatmul.mubr.bf16.gmra.mrb[0].mxu0 %v704
    %v1219 = vpop.f32.mrb[0].mxu0
    %v1220 = vadd.f32 0.0, %v1219
    %v1221 = vpop.f32.mrb[0].mxu0
    %v1222 = vpop.f32.mrb[0].mxu0
    %v1223 = vadd.f32 0.0, %v1222
    %v1224 = vpop.f32.mrb[0].mxu0
    %1225 = vmatprep.mubr.bf16.mxu0 0
    %1226 = vmatmul.mubr.bf16.gmra.mrb[0].mxu0 %v707
    %v1227 = vpop.f32.mrb[0].mxu0
    %v1228 = vadd.f32 0.0, %v1227
    %v1229 = vpop.f32.mrb[0].mxu0
    %v1230 = vpop.f32.mrb[0].mxu0
    %v1231 = vadd.f32 0.0, %v1230
    %v1232 = vpop.f32.mrb[0].mxu0
    %1233 = vmatprep.mubr.bf16.mxu0 0
    %1234 = vmatmul.mubr.bf16.gmra.mrb[0].mxu0 %v710
    %v1235 = vpop.f32.mrb[0].mxu0
    %v1236 = vadd.f32 0.0, %v1235
    %v1237 = vpop.f32.mrb[0].mxu0
    %v1238 = vpop.f32.mrb[0].mxu0
    %v1239 = vadd.f32 0.0, %v1238
    %v1240 = vpop.f32.mrb[0].mxu0
    %1241 = vmatprep.mubr.bf16.mxu0 0
    %1242 = vmatmul.mubr.bf16.gmra.mrb[0].mxu0 %v713
    %v1243 = vpop.f32.mrb[0].mxu0
    %v1244 = vadd.f32 0.0, %v1243
    %v1245 = vpop.f32.mrb[0].mxu0
    %v1246 = vpop.f32.mrb[0].mxu0
    %v1247 = vadd.f32 0.0, %v1246
    %v1248 = vpop.f32.mrb[0].mxu0
    %1249 = vmatprep.mubr.bf16.mxu0 0
    %1250 = vmatmul.mubr.bf16.gmra.mrb[0].mxu0 %v716
    %v1251 = vpop.f32.mrb[0].mxu0
    %v1252 = vadd.f32 0.0, %v1251
    %v1253 = vpop.f32.mrb[0].mxu0
    %v1254 = vpop.f32.mrb[0].mxu0
    %v1255 = vadd.f32 0.0, %v1254
    %v1256 = vpop.f32.mrb[0].mxu0
    %1257 = vmatprep.mubr.bf16.mxu0 0
    %1258 = vmatmul.mubr.bf16.gmra.mrb[0].mxu0 %v719
    %v1259 = vpop.f32.mrb[0].mxu0
    %v1260 = vadd.f32 0.0, %v1259
    %v1261 = vpop.f32.mrb[0].mxu0
    %v1262 = vpop.f32.mrb[0].mxu0
    %v1263 = vadd.f32 0.0, %v1262
    %v1264 = vpop.f32.mrb[0].mxu0
    %1265 = vdwg.mxu0
    %v1266 = vmax.f32 %v756, %v1012
    %v1267 = vmax.f32 %v759, %v1015
    %v1268 = vmax.f32 %v764, %v1020
    %v1269 = vmax.f32 %v767, %v1023
    %v1270 = vmax.f32 %v772, %v1028
    %v1271 = vmax.f32 %v775, %v1031
    %v1272 = vmax.f32 %v780, %v1036
    %v1273 = vmax.f32 %v783, %v1039
    %v1274 = vmax.f32 %v788, %v1044
    %v1275 = vmax.f32 %v791, %v1047
    %v1276 = vmax.f32 %v796, %v1052
    %v1277 = vmax.f32 %v799, %v1055
    %v1278 = vmax.f32 %v804, %v1060
    %v1279 = vmax.f32 %v807, %v1063
    %v1280 = vmax.f32 %v812, %v1068
    %v1281 = vmax.f32 %v815, %v1071
    %v1282 = vmax.f32 %v820, %v1076
    %v1283 = vmax.f32 %v823, %v1079
    %v1284 = vmax.f32 %v828, %v1084
    %v1285 = vmax.f32 %v831, %v1087
    %v1286 = vmax.f32 %v836, %v1092
    %v1287 = vmax.f32 %v839, %v1095
    %v1288 = vmax.f32 %v844, %v1100
    %v1289 = vmax.f32 %v847, %v1103
    %v1290 = vmax.f32 %v852, %v1108
    %v1291 = vmax.f32 %v855, %v1111
    %v1292 = vmax.f32 %v860, %v1116
    %v1293 = vmax.f32 %v863, %v1119
    %v1294 = vmax.f32 %v868, %v1124
    %v1295 = vmax.f32 %v871, %v1127
    %v1296 = vmax.f32 %v876, %v1132
    %v1297 = vmax.f32 %v879, %v1135
    %v1298 = vmax.f32 %v884, %v1140
    %v1299 = vmax.f32 %v887, %v1143
    %v1300 = vmax.f32 %v892, %v1148
    %v1301 = vmax.f32 %v895, %v1151
    %v1302 = vmax.f32 %v900, %v1156
    %v1303 = vmax.f32 %v903, %v1159
    %v1304 = vmax.f32 %v908, %v1164
    %v1305 = vmax.f32 %v911, %v1167
    %v1306 = vmax.f32 %v916, %v1172
    %v1307 = vmax.f32 %v919, %v1175
    %v1308 = vmax.f32 %v924, %v1180
    %v1309 = vmax.f32 %v927, %v1183
    %v1310 = vmax.f32 %v932, %v1188
    %v1311 = vmax.f32 %v935, %v1191
    %v1312 = vmax.f32 %v940, %v1196
    %v1313 = vmax.f32 %v943, %v1199
    %v1314 = vmax.f32 %v948, %v1204
    %v1315 = vmax.f32 %v951, %v1207
    %v1316 = vmax.f32 %v956, %v1212
    %v1317 = vmax.f32 %v959, %v1215
    %v1318 = vmax.f32 %v964, %v1220
    %v1319 = vmax.f32 %v967, %v1223
    %v1320 = vmax.f32 %v972, %v1228
    %v1321 = vmax.f32 %v975, %v1231
    %v1322 = vmax.f32 %v980, %v1236
    %v1323 = vmax.f32 %v983, %v1239
    %v1324 = vmax.f32 %v988, %v1244
    %v1325 = vmax.f32 %v991, %v1247
    %v1326 = vmax.f32 %v996, %v1252
    %v1327 = vmax.f32 %v999, %v1255
    %v1328 = vmax.f32 %v1004, %v1260
    %v1329 = vmax.f32 %v1007, %v1263
    %v1330 = vld [vmem:[%s2] sm:$0xff]
    %v1331 = vld [vmem:[%s2 + $0x8] sm:$0xff]
    %v1332 = vld [vmem:[%s2 + $0x10] sm:$0xff]
    %v1333 = vld [vmem:[%s2 + $0x18] sm:$0xff]
    %v1334 = vld [vmem:[%s2 + $0x20] sm:$0xff]
    %v1335 = vld [vmem:[%s2 + $0x28] sm:$0xff]
    %v1336 = vld [vmem:[%s2 + $0x30] sm:$0xff]
    %v1337 = vld [vmem:[%s2 + $0x38] sm:$0xff]
    %v1338 = vld [vmem:[%s2 + $0x40] sm:$0xff]
    %v1339 = vld [vmem:[%s2 + $0x48] sm:$0xff]
    %v1340 = vld [vmem:[%s2 + $0x50] sm:$0xff]
    %v1341 = vld [vmem:[%s2 + $0x58] sm:$0xff]
    %v1342 = vld [vmem:[%s2 + $0x60] sm:$0xff]
    %v1343 = vld [vmem:[%s2 + $0x68] sm:$0xff]
    %v1344 = vld [vmem:[%s2 + $0x70] sm:$0xff]
    %v1345 = vld [vmem:[%s2 + $0x78] sm:$0xff]
    %v1346 = vld [vmem:[%s2 + $0x80] sm:$0xff]
    %v1347 = vld [vmem:[%s2 + $0x88] sm:$0xff]
    %v1348 = vld [vmem:[%s2 + $0x90] sm:$0xff]
    %v1349 = vld [vmem:[%s2 + $0x98] sm:$0xff]
    %v1350 = vld [vmem:[%s2 + $0xa0] sm:$0xff]
    %v1351 = vld [vmem:[%s2 + $0xa8] sm:$0xff]
    %v1352 = vld [vmem:[%s2 + $0xb0] sm:$0xff]
    %v1353 = vld [vmem:[%s2 + $0xb8] sm:$0xff]
    %v1354 = vld [vmem:[%s2 + $0xc0] sm:$0xff]
    %v1355 = vld [vmem:[%s2 + $0xc8] sm:$0xff]
    %v1356 = vld [vmem:[%s2 + $0xd0] sm:$0xff]
    %v1357 = vld [vmem:[%s2 + $0xd8] sm:$0xff]
    %v1358 = vld [vmem:[%s2 + $0xe0] sm:$0xff]
    %v1359 = vld [vmem:[%s2 + $0xe8] sm:$0xff]
    %v1360 = vld [vmem:[%s2 + $0xf0] sm:$0xff]
    %v1361 = vld [vmem:[%s2 + $0xf8] sm:$0xff]
    %v1362 = vld [vmem:[%s2 + $0x100] sm:$0xff]
    %v1363 = vld [vmem:[%s2 + $0x108] sm:$0xff]
    %v1364 = vld [vmem:[%s2 + $0x110] sm:$0xff]
    %v1365 = vld [vmem:[%s2 + $0x118] sm:$0xff]
    %v1366 = vld [vmem:[%s2 + $0x120] sm:$0xff]
    %v1367 = vld [vmem:[%s2 + $0x128] sm:$0xff]
    %v1368 = vld [vmem:[%s2 + $0x130] sm:$0xff]
    %v1369 = vld [vmem:[%s2 + $0x138] sm:$0xff]
    %v1370 = vld [vmem:[%s2 + $0x140] sm:$0xff]
    %v1371 = vld [vmem:[%s2 + $0x148] sm:$0xff]
    %v1372 = vld [vmem:[%s2 + $0x150] sm:$0xff]
    %v1373 = vld [vmem:[%s2 + $0x158] sm:$0xff]
    %v1374 = vld [vmem:[%s2 + $0x160] sm:$0xff]
    %v1375 = vld [vmem:[%s2 + $0x168] sm:$0xff]
    %v1376 = vld [vmem:[%s2 + $0x170] sm:$0xff]
    %v1377 = vld [vmem:[%s2 + $0x178] sm:$0xff]
    %v1378 = vld [vmem:[%s2 + $0x180] sm:$0xff]
    %v1379 = vld [vmem:[%s2 + $0x188] sm:$0xff]
    %v1380 = vld [vmem:[%s2 + $0x190] sm:$0xff]
    %v1381 = vld [vmem:[%s2 + $0x198] sm:$0xff]
    %v1382 = vld [vmem:[%s2 + $0x1a0] sm:$0xff]
    %v1383 = vld [vmem:[%s2 + $0x1a8] sm:$0xff]
    %v1384 = vld [vmem:[%s2 + $0x1b0] sm:$0xff]
    %v1385 = vld [vmem:[%s2 + $0x1b8] sm:$0xff]
    %v1386 = vld [vmem:[%s2 + $0x1c0] sm:$0xff]
    %v1387 = vld [vmem:[%s2 + $0x1c8] sm:$0xff]
    %v1388 = vld [vmem:[%s2 + $0x1d0] sm:$0xff]
    %v1389 = vld [vmem:[%s2 + $0x1d8] sm:$0xff]
    %v1390 = vld [vmem:[%s2 + $0x1e0] sm:$0xff]
    %v1391 = vld [vmem:[%s2 + $0x1e8] sm:$0xff]
    %v1392 = vld [vmem:[%s2 + $0x1f0] sm:$0xff]
    %v1393 = vld [vmem:[%s2 + $0x1f8] sm:$0xff]
    %1395 = vset.pattern.permute.xlu0 0
    %1396 = vperm.xlu0 %1395, %v1330
    %v1397 = vpop.permute.xlu0 %1396
    %1400 = vset.pattern.permute.xlu0 0
    %1401 = vperm.xlu0 %1400, %v1331
    %v1402 = vpop.permute.xlu0 %1401
    %1405 = vset.pattern.permute.xlu0 0
    %1406 = vperm.xlu0 %1405, %v1332
    %v1407 = vpop.permute.xlu0 %1406
    %1410 = vset.pattern.permute.xlu0 0
    %1411 = vperm.xlu0 %1410, %v1333
    %v1412 = vpop.permute.xlu0 %1411
    %1415 = vset.pattern.permute.xlu0 0
    %1416 = vperm.xlu0 %1415, %v1334
    %v1417 = vpop.permute.xlu0 %1416
    %1420 = vset.pattern.permute.xlu0 0
    %1421 = vperm.xlu0 %1420, %v1335
    %v1422 = vpop.permute.xlu0 %1421
    %1425 = vset.pattern.permute.xlu0 0
    %1426 = vperm.xlu0 %1425, %v1336
    %v1427 = vpop.permute.xlu0 %1426
    %1430 = vset.pattern.permute.xlu0 0
    %1431 = vperm.xlu0 %1430, %v1337
    %v1432 = vpop.permute.xlu0 %1431
    %1435 = vset.pattern.permute.xlu0 0
    %1436 = vperm.xlu0 %1435, %v1338
    %v1437 = vpop.permute.xlu0 %1436
    %1440 = vset.pattern.permute.xlu0 0
    %1441 = vperm.xlu0 %1440, %v1339
    %v1442 = vpop.permute.xlu0 %1441
    %1445 = vset.pattern.permute.xlu0 0
    %1446 = vperm.xlu0 %1445, %v1340
    %v1447 = vpop.permute.xlu0 %1446
    %1450 = vset.pattern.permute.xlu0 0
    %1451 = vperm.xlu0 %1450, %v1341
    %v1452 = vpop.permute.xlu0 %1451
    %1455 = vset.pattern.permute.xlu0 0
    %1456 = vperm.xlu0 %1455, %v1342
    %v1457 = vpop.permute.xlu0 %1456
    %1460 = vset.pattern.permute.xlu0 0
    %1461 = vperm.xlu0 %1460, %v1343
    %v1462 = vpop.permute.xlu0 %1461
    %1465 = vset.pattern.permute.xlu0 0
    %1466 = vperm.xlu0 %1465, %v1344
    %v1467 = vpop.permute.xlu0 %1466
    %1470 = vset.pattern.permute.xlu0 0
    %1471 = vperm.xlu0 %1470, %v1345
    %v1472 = vpop.permute.xlu0 %1471
    %1475 = vset.pattern.permute.xlu0 0
    %1476 = vperm.xlu0 %1475, %v1346
    %v1477 = vpop.permute.xlu0 %1476
    %1480 = vset.pattern.permute.xlu0 0
    %1481 = vperm.xlu0 %1480, %v1347
    %v1482 = vpop.permute.xlu0 %1481
    %1485 = vset.pattern.permute.xlu0 0
    %1486 = vperm.xlu0 %1485, %v1348
    %v1487 = vpop.permute.xlu0 %1486
    %1490 = vset.pattern.permute.xlu0 0
    %1491 = vperm.xlu0 %1490, %v1349
    %v1492 = vpop.permute.xlu0 %1491
    %1495 = vset.pattern.permute.xlu0 0
    %1496 = vperm.xlu0 %1495, %v1350
    %v1497 = vpop.permute.xlu0 %1496
    %1500 = vset.pattern.permute.xlu0 0
    %1501 = vperm.xlu0 %1500, %v1351
    %v1502 = vpop.permute.xlu0 %1501
    %1505 = vset.pattern.permute.xlu0 0
    %1506 = vperm.xlu0 %1505, %v1352
    %v1507 = vpop.permute.xlu0 %1506
    %1510 = vset.pattern.permute.xlu0 0
    %1511 = vperm.xlu0 %1510, %v1353
    %v1512 = vpop.permute.xlu0 %1511
    %1515 = vset.pattern.permute.xlu0 0
    %1516 = vperm.xlu0 %1515, %v1354
    %v1517 = vpop.permute.xlu0 %1516
    %1520 = vset.pattern.permute.xlu0 0
    %1521 = vperm.xlu0 %1520, %v1355
    %v1522 = vpop.permute.xlu0 %1521
    %1525 = vset.pattern.permute.xlu0 0
    %1526 = vperm.xlu0 %1525, %v1356
    %v1527 = vpop.permute.xlu0 %1526
    %1530 = vset.pattern.permute.xlu0 0
    %1531 = vperm.xlu0 %1530, %v1357
    %v1532 = vpop.permute.xlu0 %1531
    %1535 = vset.pattern.permute.xlu0 0
    %1536 = vperm.xlu0 %1535, %v1358
    %v1537 = vpop.permute.xlu0 %1536
    %1540 = vset.pattern.permute.xlu0 0
    %1541 = vperm.xlu0 %1540, %v1359
    %v1542 = vpop.permute.xlu0 %1541
    %1545 = vset.pattern.permute.xlu0 0
    %1546 = vperm.xlu0 %1545, %v1360
    %v1547 = vpop.permute.xlu0 %1546
    %1550 = vset.pattern.permute.xlu0 0
    %1551 = vperm.xlu0 %1550, %v1361
    %v1552 = vpop.permute.xlu0 %1551
    %1555 = vset.pattern.permute.xlu0 0
    %1556 = vperm.xlu0 %1555, %v1362
    %v1557 = vpop.permute.xlu0 %1556
    %1560 = vset.pattern.permute.xlu0 0
    %1561 = vperm.xlu0 %1560, %v1363
    %v1562 = vpop.permute.xlu0 %1561
    %1565 = vset.pattern.permute.xlu0 0
    %1566 = vperm.xlu0 %1565, %v1364
    %v1567 = vpop.permute.xlu0 %1566
    %1570 = vset.pattern.permute.xlu0 0
    %1571 = vperm.xlu0 %1570, %v1365
    %v1572 = vpop.permute.xlu0 %1571
    %1575 = vset.pattern.permute.xlu0 0
    %1576 = vperm.xlu0 %1575, %v1366
    %v1577 = vpop.permute.xlu0 %1576
    %1580 = vset.pattern.permute.xlu0 0
    %1581 = vperm.xlu0 %1580, %v1367
    %v1582 = vpop.permute.xlu0 %1581
    %1585 = vset.pattern.permute.xlu0 0
    %1586 = vperm.xlu0 %1585, %v1368
    %v1587 = vpop.permute.xlu0 %1586
    %1590 = vset.pattern.permute.xlu0 0
    %1591 = vperm.xlu0 %1590, %v1369
    %v1592 = vpop.permute.xlu0 %1591
    %1595 = vset.pattern.permute.xlu0 0
    %1596 = vperm.xlu0 %1595, %v1370
    %v1597 = vpop.permute.xlu0 %1596
    %1600 = vset.pattern.permute.xlu0 0
    %1601 = vperm.xlu0 %1600, %v1371
    %v1602 = vpop.permute.xlu0 %1601
    %1605 = vset.pattern.permute.xlu0 0
    %1606 = vperm.xlu0 %1605, %v1372
    %v1607 = vpop.permute.xlu0 %1606
    %1610 = vset.pattern.permute.xlu0 0
    %1611 = vperm.xlu0 %1610, %v1373
    %v1612 = vpop.permute.xlu0 %1611
    %1615 = vset.pattern.permute.xlu0 0
    %1616 = vperm.xlu0 %1615, %v1374
    %v1617 = vpop.permute.xlu0 %1616
    %1620 = vset.pattern.permute.xlu0 0
    %1621 = vperm.xlu0 %1620, %v1375
    %v1622 = vpop.permute.xlu0 %1621
    %1625 = vset.pattern.permute.xlu0 0
    %1626 = vperm.xlu0 %1625, %v1376
    %v1627 = vpop.permute.xlu0 %1626
    %1630 = vset.pattern.permute.xlu0 0
    %1631 = vperm.xlu0 %1630, %v1377
    %v1632 = vpop.permute.xlu0 %1631
    %1635 = vset.pattern.permute.xlu0 0
    %1636 = vperm.xlu0 %1635, %v1378
    %v1637 = vpop.permute.xlu0 %1636
    %1640 = vset.pattern.permute.xlu0 0
    %1641 = vperm.xlu0 %1640, %v1379
    %v1642 = vpop.permute.xlu0 %1641
    %1645 = vset.pattern.permute.xlu0 0
    %1646 = vperm.xlu0 %1645, %v1380
    %v1647 = vpop.permute.xlu0 %1646
    %1650 = vset.pattern.permute.xlu0 0
    %1651 = vperm.xlu0 %1650, %v1381
    %v1652 = vpop.permute.xlu0 %1651
    %1655 = vset.pattern.permute.xlu0 0
    %1656 = vperm.xlu0 %1655, %v1382
    %v1657 = vpop.permute.xlu0 %1656
    %1660 = vset.pattern.permute.xlu0 0
    %1661 = vperm.xlu0 %1660, %v1383
    %v1662 = vpop.permute.xlu0 %1661
    %1665 = vset.pattern.permute.xlu0 0
    %1666 = vperm.xlu0 %1665, %v1384
    %v1667 = vpop.permute.xlu0 %1666
    %1670 = vset.pattern.permute.xlu0 0
    %1671 = vperm.xlu0 %1670, %v1385
    %v1672 = vpop.permute.xlu0 %1671
    %1675 = vset.pattern.permute.xlu0 0
    %1676 = vperm.xlu0 %1675, %v1386
    %v1677 = vpop.permute.xlu0 %1676
    %1680 = vset.pattern.permute.xlu0 0
    %1681 = vperm.xlu0 %1680, %v1387
    %v1682 = vpop.permute.xlu0 %1681
    %1685 = vset.pattern.permute.xlu0 0
    %1686 = vperm.xlu0 %1685, %v1388
    %v1687 = vpop.permute.xlu0 %1686
    %1690 = vset.pattern.permute.xlu0 0
    %1691 = vperm.xlu0 %1690, %v1389
    %v1692 = vpop.permute.xlu0 %1691
    %1695 = vset.pattern.permute.xlu0 0
    %1696 = vperm.xlu0 %1695, %v1390
    %v1697 = vpop.permute.xlu0 %1696
    %1700 = vset.pattern.permute.xlu0 0
    %1701 = vperm.xlu0 %1700, %v1391
    %v1702 = vpop.permute.xlu0 %1701
    %1705 = vset.pattern.permute.xlu0 0
    %1706 = vperm.xlu0 %1705, %v1392
    %v1707 = vpop.permute.xlu0 %1706
    %1710 = vset.pattern.permute.xlu0 0
    %1711 = vperm.xlu0 %1710, %v1393
    %v1712 = vpop.permute.xlu0 %1711
    %v1714 = vadd.f32 %v1266, %v1397
    %v1715 = vadd.f32 %v1267, %v1402
    %v1716 = vadd.f32 %v1268, %v1407
    %v1717 = vadd.f32 %v1269, %v1412
    %v1718 = vadd.f32 %v1270, %v1417
    %v1719 = vadd.f32 %v1271, %v1422
    %v1720 = vadd.f32 %v1272, %v1427
    %v1721 = vadd.f32 %v1273, %v1432
    %v1722 = vadd.f32 %v1274, %v1437
    %v1723 = vadd.f32 %v1275, %v1442
    %v1724 = vadd.f32 %v1276, %v1447
    %v1725 = vadd.f32 %v1277, %v1452
    %v1726 = vadd.f32 %v1278, %v1457
    %v1727 = vadd.f32 %v1279, %v1462
    %v1728 = vadd.f32 %v1280, %v1467
    %v1729 = vadd.f32 %v1281, %v1472
    %v1730 = vadd.f32 %v1282, %v1477
    %v1731 = vadd.f32 %v1283, %v1482
    %v1732 = vadd.f32 %v1284, %v1487
    %v1733 = vadd.f32 %v1285, %v1492
    %v1734 = vadd.f32 %v1286, %v1497
    %v1735 = vadd.f32 %v1287, %v1502
    %v1736 = vadd.f32 %v1288, %v1507
    %v1737 = vadd.f32 %v1289, %v1512
    %v1738 = vadd.f32 %v1290, %v1517
    %v1739 = vadd.f32 %v1291, %v1522
    %v1740 = vadd.f32 %v1292, %v1527
    %v1741 = vadd.f32 %v1293, %v1532
    %v1742 = vadd.f32 %v1294, %v1537
    %v1743 = vadd.f32 %v1295, %v1542
    %v1744 = vadd.f32 %v1296, %v1547
    %v1745 = vadd.f32 %v1297, %v1552
    %v1746 = vadd.f32 %v1298, %v1557
    %v1747 = vadd.f32 %v1299, %v1562
    %v1748 = vadd.f32 %v1300, %v1567
    %v1749 = vadd.f32 %v1301, %v1572
    %v1750 = vadd.f32 %v1302, %v1577
    %v1751 = vadd.f32 %v1303, %v1582
    %v1752 = vadd.f32 %v1304, %v1587
    %v1753 = vadd.f32 %v1305, %v1592
    %v1754 = vadd.f32 %v1306, %v1597
    %v1755 = vadd.f32 %v1307, %v1602
    %v1756 = vadd.f32 %v1308, %v1607
    %v1757 = vadd.f32 %v1309, %v1612
    %v1758 = vadd.f32 %v1310, %v1617
    %v1759 = vadd.f32 %v1311, %v1622
    %v1760 = vadd.f32 %v1312, %v1627
    %v1761 = vadd.f32 %v1313, %v1632
    %v1762 = vadd.f32 %v1314, %v1637
    %v1763 = vadd.f32 %v1315, %v1642
    %v1764 = vadd.f32 %v1316, %v1647
    %v1765 = vadd.f32 %v1317, %v1652
    %v1766 = vadd.f32 %v1318, %v1657
    %v1767 = vadd.f32 %v1319, %v1662
    %v1768 = vadd.f32 %v1320, %v1667
    %v1769 = vadd.f32 %v1321, %v1672
    %v1770 = vadd.f32 %v1322, %v1677
    %v1771 = vadd.f32 %v1323, %v1682
    %v1772 = vadd.f32 %v1324, %v1687
    %v1773 = vadd.f32 %v1325, %v1692
    %v1774 = vadd.f32 %v1326, %v1697
    %v1775 = vadd.f32 %v1327, %v1702
    %v1776 = vadd.f32 %v1328, %v1707
    %v1777 = vadd.f32 %v1329, %v1712
    %v1778 = vmax.f32 %v1714, 0.0
    %v1779 = vmax.f32 %v1715, 0.0
    %v1780 = vmax.f32 %v1716, 0.0
    %v1781 = vmax.f32 %v1717, 0.0
    %v1782 = vmax.f32 %v1718, 0.0
    %v1783 = vmax.f32 %v1719, 0.0
    %v1784 = vmax.f32 %v1720, 0.0
    %v1785 = vmax.f32 %v1721, 0.0
    %v1786 = vmax.f32 %v1722, 0.0
    %v1787 = vmax.f32 %v1723, 0.0
    %v1788 = vmax.f32 %v1724, 0.0
    %v1789 = vmax.f32 %v1725, 0.0
    %v1790 = vmax.f32 %v1726, 0.0
    %v1791 = vmax.f32 %v1727, 0.0
    %v1792 = vmax.f32 %v1728, 0.0
    %v1793 = vmax.f32 %v1729, 0.0
    %v1794 = vmax.f32 %v1730, 0.0
    %v1795 = vmax.f32 %v1731, 0.0
    %v1796 = vmax.f32 %v1732, 0.0
    %v1797 = vmax.f32 %v1733, 0.0
    %v1798 = vmax.f32 %v1734, 0.0
    %v1799 = vmax.f32 %v1735, 0.0
    %v1800 = vmax.f32 %v1736, 0.0
    %v1801 = vmax.f32 %v1737, 0.0
    %v1802 = vmax.f32 %v1738, 0.0
    %v1803 = vmax.f32 %v1739, 0.0
    %v1804 = vmax.f32 %v1740, 0.0
    %v1805 = vmax.f32 %v1741, 0.0
    %v1806 = vmax.f32 %v1742, 0.0
    %v1807 = vmax.f32 %v1743, 0.0
    %v1808 = vmax.f32 %v1744, 0.0
    %v1809 = vmax.f32 %v1745, 0.0
    %v1810 = vmax.f32 %v1746, 0.0
    %v1811 = vmax.f32 %v1747, 0.0
    %v1812 = vmax.f32 %v1748, 0.0
    %v1813 = vmax.f32 %v1749, 0.0
    %v1814 = vmax.f32 %v1750, 0.0
    %v1815 = vmax.f32 %v1751, 0.0
    %v1816 = vmax.f32 %v1752, 0.0
    %v1817 = vmax.f32 %v1753, 0.0
    %v1818 = vmax.f32 %v1754, 0.0
    %v1819 = vmax.f32 %v1755, 0.0
    %v1820 = vmax.f32 %v1756, 0.0
    %v1821 = vmax.f32 %v1757, 0.0
    %v1822 = vmax.f32 %v1758, 0.0
    %v1823 = vmax.f32 %v1759, 0.0
    %v1824 = vmax.f32 %v1760, 0.0
    %v1825 = vmax.f32 %v1761, 0.0
    %v1826 = vmax.f32 %v1762, 0.0
    %v1827 = vmax.f32 %v1763, 0.0
    %v1828 = vmax.f32 %v1764, 0.0
    %v1829 = vmax.f32 %v1765, 0.0
    %v1830 = vmax.f32 %v1766, 0.0
    %v1831 = vmax.f32 %v1767, 0.0
    %v1832 = vmax.f32 %v1768, 0.0
    %v1833 = vmax.f32 %v1769, 0.0
    %v1834 = vmax.f32 %v1770, 0.0
    %v1835 = vmax.f32 %v1771, 0.0
    %v1836 = vmax.f32 %v1772, 0.0
    %v1837 = vmax.f32 %v1773, 0.0
    %v1838 = vmax.f32 %v1774, 0.0
    %v1839 = vmax.f32 %v1775, 0.0
    %v1840 = vmax.f32 %v1776, 0.0
    %v1841 = vmax.f32 %v1777, 0.0
    %v1842 = vld [vmem:[#allocation2] sm:$0xff]
    %v1843 = vld [vmem:[#allocation2 + $0x8] sm:$0xff]
    %v1844 = vld [vmem:[#allocation2 + $0x10] sm:$0xff]
    %v1845 = vld [vmem:[#allocation2 + $0x18] sm:$0xff]
    %v1846 = vld [vmem:[#allocation2 + $0x20] sm:$0xff]
    %v1847 = vld [vmem:[#allocation2 + $0x28] sm:$0xff]
    %v1848 = vld [vmem:[#allocation2 + $0x30] sm:$0xff]
    %v1849 = vld [vmem:[#allocation2 + $0x38] sm:$0xff]
    %v1850 = vld [vmem:[#allocation2 + $0x40] sm:$0xff]
    %v1851 = vld [vmem:[#allocation2 + $0x48] sm:$0xff]
    %v1852 = vld [vmem:[#allocation2 + $0x50] sm:$0xff]
    %v1853 = vld [vmem:[#allocation2 + $0x58] sm:$0xff]
    %v1854 = vld [vmem:[#allocation2 + $0x60] sm:$0xff]
    %v1855 = vld [vmem:[#allocation2 + $0x68] sm:$0xff]
    %v1856 = vld [vmem:[#allocation2 + $0x70] sm:$0xff]
    %v1857 = vld [vmem:[#allocation2 + $0x78] sm:$0xff]
    %v1858 = vld [vmem:[#allocation2 + $0x80] sm:$0xff]
    %v1859 = vld [vmem:[#allocation2 + $0x88] sm:$0xff]
    %v1860 = vld [vmem:[#allocation2 + $0x90] sm:$0xff]
    %v1861 = vld [vmem:[#allocation2 + $0x98] sm:$0xff]
    %v1862 = vld [vmem:[#allocation2 + $0xa0] sm:$0xff]
    %v1863 = vld [vmem:[#allocation2 + $0xa8] sm:$0xff]
    %v1864 = vld [vmem:[#allocation2 + $0xb0] sm:$0xff]
    %v1865 = vld [vmem:[#allocation2 + $0xb8] sm:$0xff]
    %v1866 = vld [vmem:[#allocation2 + $0xc0] sm:$0xff]
    %v1867 = vld [vmem:[#allocation2 + $0xc8] sm:$0xff]
    %v1868 = vld [vmem:[#allocation2 + $0xd0] sm:$0xff]
    %v1869 = vld [vmem:[#allocation2 + $0xd8] sm:$0xff]
    %v1870 = vld [vmem:[#allocation2 + $0xe0] sm:$0xff]
    %v1871 = vld [vmem:[#allocation2 + $0xe8] sm:$0xff]
    %v1872 = vld [vmem:[#allocation2 + $0xf0] sm:$0xff]
    %v1873 = vld [vmem:[#allocation2 + $0xf8] sm:$0xff]
    %v1874 = vld [vmem:[#allocation2 + $0x100] sm:$0xff]
    %v1875 = vld [vmem:[#allocation2 + $0x108] sm:$0xff]
    %v1876 = vld [vmem:[#allocation2 + $0x110] sm:$0xff]
    %v1877 = vld [vmem:[#allocation2 + $0x118] sm:$0xff]
    %v1878 = vld [vmem:[#allocation2 + $0x120] sm:$0xff]
    %v1879 = vld [vmem:[#allocation2 + $0x128] sm:$0xff]
    %v1880 = vld [vmem:[#allocation2 + $0x130] sm:$0xff]
    %v1881 = vld [vmem:[#allocation2 + $0x138] sm:$0xff]
    %v1882 = vld [vmem:[#allocation2 + $0x140] sm:$0xff]
    %v1883 = vld [vmem:[#allocation2 + $0x148] sm:$0xff]
    %v1884 = vld [vmem:[#allocation2 + $0x150] sm:$0xff]
    %v1885 = vld [vmem:[#allocation2 + $0x158] sm:$0xff]
    %v1886 = vld [vmem:[#allocation2 + $0x160] sm:$0xff]
    %v1887 = vld [vmem:[#allocation2 + $0x168] sm:$0xff]
    %v1888 = vld [vmem:[#allocation2 + $0x170] sm:$0xff]
    %v1889 = vld [vmem:[#allocation2 + $0x178] sm:$0xff]
    %v1890 = vld [vmem:[#allocation2 + $0x180] sm:$0xff]
    %v1891 = vld [vmem:[#allocation2 + $0x188] sm:$0xff]
    %v1892 = vld [vmem:[#allocation2 + $0x190] sm:$0xff]
    %v1893 = vld [vmem:[#allocation2 + $0x198] sm:$0xff]
    %v1894 = vld [vmem:[#allocation2 + $0x1a0] sm:$0xff]
    %v1895 = vld [vmem:[#allocation2 + $0x1a8] sm:$0xff]
    %v1896 = vld [vmem:[#allocation2 + $0x1b0] sm:$0xff]
    %v1897 = vld [vmem:[#allocation2 + $0x1b8] sm:$0xff]
    %v1898 = vld [vmem:[#allocation2 + $0x1c0] sm:$0xff]
    %v1899 = vld [vmem:[#allocation2 + $0x1c8] sm:$0xff]
    %v1900 = vld [vmem:[#allocation2 + $0x1d0] sm:$0xff]
    %v1901 = vld [vmem:[#allocation2 + $0x1d8] sm:$0xff]
    %v1902 = vld [vmem:[#allocation2 + $0x1e0] sm:$0xff]
    %v1903 = vld [vmem:[#allocation2 + $0x1e8] sm:$0xff]
    %v1904 = vld [vmem:[#allocation2 + $0x1f0] sm:$0xff]
    %v1905 = vld [vmem:[#allocation2 + $0x1f8] sm:$0xff]
    %v1906 = vld [vmem:[#allocation2 + $0x200] sm:$0xff]
    %v1907 = vld [vmem:[#allocation2 + $0x208] sm:$0xff]
    %v1908 = vld [vmem:[#allocation2 + $0x210] sm:$0xff]
    %v1909 = vld [vmem:[#allocation2 + $0x218] sm:$0xff]
    %v1910 = vld [vmem:[#allocation2 + $0x220] sm:$0xff]
    %v1911 = vld [vmem:[#allocation2 + $0x228] sm:$0xff]
    %v1912 = vld [vmem:[#allocation2 + $0x230] sm:$0xff]
    %v1913 = vld [vmem:[#allocation2 + $0x238] sm:$0xff]
    %v1914 = vld [vmem:[#allocation2 + $0x240] sm:$0xff]
    %v1915 = vld [vmem:[#allocation2 + $0x248] sm:$0xff]
    %v1916 = vld [vmem:[#allocation2 + $0x250] sm:$0xff]
    %v1917 = vld [vmem:[#allocation2 + $0x258] sm:$0xff]
    %v1918 = vld [vmem:[#allocation2 + $0x260] sm:$0xff]
    %v1919 = vld [vmem:[#allocation2 + $0x268] sm:$0xff]
    %v1920 = vld [vmem:[#allocation2 + $0x270] sm:$0xff]
    %v1921 = vld [vmem:[#allocation2 + $0x278] sm:$0xff]
    %v1922 = vld [vmem:[#allocation2 + $0x280] sm:$0xff]
    %v1923 = vld [vmem:[#allocation2 + $0x288] sm:$0xff]
    %v1924 = vld [vmem:[#allocation2 + $0x290] sm:$0xff]
    %v1925 = vld [vmem:[#allocation2 + $0x298] sm:$0xff]
    %v1926 = vld [vmem:[#allocation2 + $0x2a0] sm:$0xff]
    %v1927 = vld [vmem:[#allocation2 + $0x2a8] sm:$0xff]
    %v1928 = vld [vmem:[#allocation2 + $0x2b0] sm:$0xff]
    %v1929 = vld [vmem:[#allocation2 + $0x2b8] sm:$0xff]
    %v1930 = vld [vmem:[#allocation2 + $0x2c0] sm:$0xff]
    %v1931 = vld [vmem:[#allocation2 + $0x2c8] sm:$0xff]
    %v1932 = vld [vmem:[#allocation2 + $0x2d0] sm:$0xff]
    %v1933 = vld [vmem:[#allocation2 + $0x2d8] sm:$0xff]
    %v1934 = vld [vmem:[#allocation2 + $0x2e0] sm:$0xff]
    %v1935 = vld [vmem:[#allocation2 + $0x2e8] sm:$0xff]
    %v1936 = vld [vmem:[#allocation2 + $0x2f0] sm:$0xff]
    %v1937 = vld [vmem:[#allocation2 + $0x2f8] sm:$0xff]
    %v1938 = vld [vmem:[#allocation2 + $0x300] sm:$0xff]
    %v1939 = vld [vmem:[#allocation2 + $0x308] sm:$0xff]
    %v1940 = vld [vmem:[#allocation2 + $0x310] sm:$0xff]
    %v1941 = vld [vmem:[#allocation2 + $0x318] sm:$0xff]
    %v1942 = vld [vmem:[#allocation2 + $0x320] sm:$0xff]
    %v1943 = vld [vmem:[#allocation2 + $0x328] sm:$0xff]
    %v1944 = vld [vmem:[#allocation2 + $0x330] sm:$0xff]
    %v1945 = vld [vmem:[#allocation2 + $0x338] sm:$0xff]
    %v1946 = vld [vmem:[#allocation2 + $0x340] sm:$0xff]
    %v1947 = vld [vmem:[#allocation2 + $0x348] sm:$0xff]
    %v1948 = vld [vmem:[#allocation2 + $0x350] sm:$0xff]
    %v1949 = vld [vmem:[#allocation2 + $0x358] sm:$0xff]
    %v1950 = vld [vmem:[#allocation2 + $0x360] sm:$0xff]
    %v1951 = vld [vmem:[#allocation2 + $0x368] sm:$0xff]
    %v1952 = vld [vmem:[#allocation2 + $0x370] sm:$0xff]
    %v1953 = vld [vmem:[#allocation2 + $0x378] sm:$0xff]
    %v1954 = vld [vmem:[#allocation2 + $0x380] sm:$0xff]
    %v1955 = vld [vmem:[#allocation2 + $0x388] sm:$0xff]
    %v1956 = vld [vmem:[#allocation2 + $0x390] sm:$0xff]
    %v1957 = vld [vmem:[#allocation2 + $0x398] sm:$0xff]
    %v1958 = vld [vmem:[#allocation2 + $0x3a0] sm:$0xff]
    %v1959 = vld [vmem:[#allocation2 + $0x3a8] sm:$0xff]
    %v1960 = vld [vmem:[#allocation2 + $0x3b0] sm:$0xff]
    %v1961 = vld [vmem:[#allocation2 + $0x3b8] sm:$0xff]
    %v1962 = vld [vmem:[#allocation2 + $0x3c0] sm:$0xff]
    %v1963 = vld [vmem:[#allocation2 + $0x3c8] sm:$0xff]
    %v1964 = vld [vmem:[#allocation2 + $0x3d0] sm:$0xff]
    %v1965 = vld [vmem:[#allocation2 + $0x3d8] sm:$0xff]
    %v1966 = vld [vmem:[#allocation2 + $0x3e0] sm:$0xff]
    %v1967 = vld [vmem:[#allocation2 + $0x3e8] sm:$0xff]
    %v1968 = vld [vmem:[#allocation2 + $0x3f0] sm:$0xff]
    %v1969 = vld [vmem:[#allocation2 + $0x3f8] sm:$0xff]
    %v1970 = vld [vmem:[#allocation2 + $0x400] sm:$0xff]
    %v1971 = vld [vmem:[#allocation2 + $0x408] sm:$0xff]
    %v1972 = vld [vmem:[#allocation2 + $0x410] sm:$0xff]
    %v1973 = vld [vmem:[#allocation2 + $0x418] sm:$0xff]
    %v1974 = vld [vmem:[#allocation2 + $0x420] sm:$0xff]
    %v1975 = vld [vmem:[#allocation2 + $0x428] sm:$0xff]
    %v1976 = vld [vmem:[#allocation2 + $0x430] sm:$0xff]
    %v1977 = vld [vmem:[#allocation2 + $0x438] sm:$0xff]
    %v1978 = vld [vmem:[#allocation2 + $0x440] sm:$0xff]
    %v1979 = vld [vmem:[#allocation2 + $0x448] sm:$0xff]
    %v1980 = vld [vmem:[#allocation2 + $0x450] sm:$0xff]
    %v1981 = vld [vmem:[#allocation2 + $0x458] sm:$0xff]
    %v1982 = vld [vmem:[#allocation2 + $0x460] sm:$0xff]
    %v1983 = vld [vmem:[#allocation2 + $0x468] sm:$0xff]
    %v1984 = vld [vmem:[#allocation2 + $0x470] sm:$0xff]
    %v1985 = vld [vmem:[#allocation2 + $0x478] sm:$0xff]
    %v1986 = vld [vmem:[#allocation2 + $0x480] sm:$0xff]
    %v1987 = vld [vmem:[#allocation2 + $0x488] sm:$0xff]
    %v1988 = vld [vmem:[#allocation2 + $0x490] sm:$0xff]
    %v1989 = vld [vmem:[#allocation2 + $0x498] sm:$0xff]
    %v1990 = vld [vmem:[#allocation2 + $0x4a0] sm:$0xff]
    %v1991 = vld [vmem:[#allocation2 + $0x4a8] sm:$0xff]
    %v1992 = vld [vmem:[#allocation2 + $0x4b0] sm:$0xff]
    %v1993 = vld [vmem:[#allocation2 + $0x4b8] sm:$0xff]
    %v1994 = vld [vmem:[#allocation2 + $0x4c0] sm:$0xff]
    %v1995 = vld [vmem:[#allocation2 + $0x4c8] sm:$0xff]
    %v1996 = vld [vmem:[#allocation2 + $0x4d0] sm:$0xff]
    %v1997 = vld [vmem:[#allocation2 + $0x4d8] sm:$0xff]
    %v1998 = vld [vmem:[#allocation2 + $0x4e0] sm:$0xff]
    %v1999 = vld [vmem:[#allocation2 + $0x4e8] sm:$0xff]
    %v2000 = vld [vmem:[#allocation2 + $0x4f0] sm:$0xff]
    %v2001 = vld [vmem:[#allocation2 + $0x4f8] sm:$0xff]
    %v2002 = vld [vmem:[#allocation2 + $0x500] sm:$0xff]
    %v2003 = vld [vmem:[#allocation2 + $0x508] sm:$0xff]
    %v2004 = vld [vmem:[#allocation2 + $0x510] sm:$0xff]
    %v2005 = vld [vmem:[#allocation2 + $0x518] sm:$0xff]
    %v2006 = vld [vmem:[#allocation2 + $0x520] sm:$0xff]
    %v2007 = vld [vmem:[#allocation2 + $0x528] sm:$0xff]
    %v2008 = vld [vmem:[#allocation2 + $0x530] sm:$0xff]
    %v2009 = vld [vmem:[#allocation2 + $0x538] sm:$0xff]
    %v2010 = vld [vmem:[#allocation2 + $0x540] sm:$0xff]
    %v2011 = vld [vmem:[#allocation2 + $0x548] sm:$0xff]
    %v2012 = vld [vmem:[#allocation2 + $0x550] sm:$0xff]
    %v2013 = vld [vmem:[#allocation2 + $0x558] sm:$0xff]
    %v2014 = vld [vmem:[#allocation2 + $0x560] sm:$0xff]
    %v2015 = vld [vmem:[#allocation2 + $0x568] sm:$0xff]
    %v2016 = vld [vmem:[#allocation2 + $0x570] sm:$0xff]
    %v2017 = vld [vmem:[#allocation2 + $0x578] sm:$0xff]
    %v2018 = vld [vmem:[#allocation2 + $0x580] sm:$0xff]
    %v2019 = vld [vmem:[#allocation2 + $0x588] sm:$0xff]
    %v2020 = vld [vmem:[#allocation2 + $0x590] sm:$0xff]
    %v2021 = vld [vmem:[#allocation2 + $0x598] sm:$0xff]
    %v2022 = vld [vmem:[#allocation2 + $0x5a0] sm:$0xff]
    %v2023 = vld [vmem:[#allocation2 + $0x5a8] sm:$0xff]
    %v2024 = vld [vmem:[#allocation2 + $0x5b0] sm:$0xff]
    %v2025 = vld [vmem:[#allocation2 + $0x5b8] sm:$0xff]
    %v2026 = vld [vmem:[#allocation2 + $0x5c0] sm:$0xff]
    %v2027 = vld [vmem:[#allocation2 + $0x5c8] sm:$0xff]
    %v2028 = vld [vmem:[#allocation2 + $0x5d0] sm:$0xff]
    %v2029 = vld [vmem:[#allocation2 + $0x5d8] sm:$0xff]
    %v2030 = vld [vmem:[#allocation2 + $0x5e0] sm:$0xff]
    %v2031 = vld [vmem:[#allocation2 + $0x5e8] sm:$0xff]
    %v2032 = vld [vmem:[#allocation2 + $0x5f0] sm:$0xff]
    %v2033 = vld [vmem:[#allocation2 + $0x5f8] sm:$0xff]
    %v2034 = vld [vmem:[#allocation2 + $0x600] sm:$0xff]
    %v2035 = vld [vmem:[#allocation2 + $0x608] sm:$0xff]
    %v2036 = vld [vmem:[#allocation2 + $0x610] sm:$0xff]
    %v2037 = vld [vmem:[#allocation2 + $0x618] sm:$0xff]
    %v2038 = vld [vmem:[#allocation2 + $0x620] sm:$0xff]
    %v2039 = vld [vmem:[#allocation2 + $0x628] sm:$0xff]
    %v2040 = vld [vmem:[#allocation2 + $0x630] sm:$0xff]
    %v2041 = vld [vmem:[#allocation2 + $0x638] sm:$0xff]
    %v2042 = vld [vmem:[#allocation2 + $0x640] sm:$0xff]
    %v2043 = vld [vmem:[#allocation2 + $0x648] sm:$0xff]
    %v2044 = vld [vmem:[#allocation2 + $0x650] sm:$0xff]
    %v2045 = vld [vmem:[#allocation2 + $0x658] sm:$0xff]
    %v2046 = vld [vmem:[#allocation2 + $0x660] sm:$0xff]
    %v2047 = vld [vmem:[#allocation2 + $0x668] sm:$0xff]
    %v2048 = vld [vmem:[#allocation2 + $0x670] sm:$0xff]
    %v2049 = vld [vmem:[#allocation2 + $0x678] sm:$0xff]
    %v2050 = vld [vmem:[#allocation2 + $0x680] sm:$0xff]
    %v2051 = vld [vmem:[#allocation2 + $0x688] sm:$0xff]
    %v2052 = vld [vmem:[#allocation2 + $0x690] sm:$0xff]
    %v2053 = vld [vmem:[#allocation2 + $0x698] sm:$0xff]
    %v2054 = vld [vmem:[#allocation2 + $0x6a0] sm:$0xff]
    %v2055 = vld [vmem:[#allocation2 + $0x6a8] sm:$0xff]
    %v2056 = vld [vmem:[#allocation2 + $0x6b0] sm:$0xff]
    %v2057 = vld [vmem:[#allocation2 + $0x6b8] sm:$0xff]
    %v2058 = vld [vmem:[#allocation2 + $0x6c0] sm:$0xff]
    %v2059 = vld [vmem:[#allocation2 + $0x6c8] sm:$0xff]
    %v2060 = vld [vmem:[#allocation2 + $0x6d0] sm:$0xff]
    %v2061 = vld [vmem:[#allocation2 + $0x6d8] sm:$0xff]
    %v2062 = vld [vmem:[#allocation2 + $0x6e0] sm:$0xff]
    %v2063 = vld [vmem:[#allocation2 + $0x6e8] sm:$0xff]
    %v2064 = vld [vmem:[#allocation2 + $0x6f0] sm:$0xff]
    %v2065 = vld [vmem:[#allocation2 + $0x6f8] sm:$0xff]
    %v2066 = vld [vmem:[#allocation2 + $0x700] sm:$0xff]
    %v2067 = vld [vmem:[#allocation2 + $0x708] sm:$0xff]
    %v2068 = vld [vmem:[#allocation2 + $0x710] sm:$0xff]
    %v2069 = vld [vmem:[#allocation2 + $0x718] sm:$0xff]
    %v2070 = vld [vmem:[#allocation2 + $0x720] sm:$0xff]
    %v2071 = vld [vmem:[#allocation2 + $0x728] sm:$0xff]
    %v2072 = vld [vmem:[#allocation2 + $0x730] sm:$0xff]
    %v2073 = vld [vmem:[#allocation2 + $0x738] sm:$0xff]
    %v2074 = vld [vmem:[#allocation2 + $0x740] sm:$0xff]
    %v2075 = vld [vmem:[#allocation2 + $0x748] sm:$0xff]
    %v2076 = vld [vmem:[#allocation2 + $0x750] sm:$0xff]
    %v2077 = vld [vmem:[#allocation2 + $0x758] sm:$0xff]
    %v2078 = vld [vmem:[#allocation2 + $0x760] sm:$0xff]
    %v2079 = vld [vmem:[#allocation2 + $0x768] sm:$0xff]
    %v2080 = vld [vmem:[#allocation2 + $0x770] sm:$0xff]
    %v2081 = vld [vmem:[#allocation2 + $0x778] sm:$0xff]
    %v2082 = vld [vmem:[#allocation2 + $0x780] sm:$0xff]
    %v2083 = vld [vmem:[#allocation2 + $0x788] sm:$0xff]
    %v2084 = vld [vmem:[#allocation2 + $0x790] sm:$0xff]
    %v2085 = vld [vmem:[#allocation2 + $0x798] sm:$0xff]
    %v2086 = vld [vmem:[#allocation2 + $0x7a0] sm:$0xff]
    %v2087 = vld [vmem:[#allocation2 + $0x7a8] sm:$0xff]
    %v2088 = vld [vmem:[#allocation2 + $0x7b0] sm:$0xff]
    %v2089 = vld [vmem:[#allocation2 + $0x7b8] sm:$0xff]
    %v2090 = vld [vmem:[#allocation2 + $0x7c0] sm:$0xff]
    %v2091 = vld [vmem:[#allocation2 + $0x7c8] sm:$0xff]
    %v2092 = vld [vmem:[#allocation2 + $0x7d0] sm:$0xff]
    %v2093 = vld [vmem:[#allocation2 + $0x7d8] sm:$0xff]
    %v2094 = vld [vmem:[#allocation2 + $0x7e0] sm:$0xff]
    %v2095 = vld [vmem:[#allocation2 + $0x7e8] sm:$0xff]
    %v2096 = vld [vmem:[#allocation2 + $0x7f0] sm:$0xff]
    %v2097 = vld [vmem:[#allocation2 + $0x7f8] sm:$0xff]
    %v2098 = vpack.c.bf16 %v1779, %v1778
    %v2099 = vpack.c.bf16 %v1781, %v1780
    %v2100 = vpack.c.bf16 %v1783, %v1782
    %v2101 = vpack.c.bf16 %v1785, %v1784
    %v2102 = vpack.c.bf16 %v1787, %v1786
    %v2103 = vpack.c.bf16 %v1789, %v1788
    %v2104 = vpack.c.bf16 %v1791, %v1790
    %v2105 = vpack.c.bf16 %v1793, %v1792
    %v2106 = vpack.c.bf16 %v1795, %v1794
    %v2107 = vpack.c.bf16 %v1797, %v1796
    %v2108 = vpack.c.bf16 %v1799, %v1798
    %v2109 = vpack.c.bf16 %v1801, %v1800
    %v2110 = vpack.c.bf16 %v1803, %v1802
    %v2111 = vpack.c.bf16 %v1805, %v1804
    %v2112 = vpack.c.bf16 %v1807, %v1806
    %v2113 = vpack.c.bf16 %v1809, %v1808
    %v2114 = vpack.c.bf16 %v1811, %v1810
    %v2115 = vpack.c.bf16 %v1813, %v1812
    %v2116 = vpack.c.bf16 %v1815, %v1814
    %v2117 = vpack.c.bf16 %v1817, %v1816
    %v2118 = vpack.c.bf16 %v1819, %v1818
    %v2119 = vpack.c.bf16 %v1821, %v1820
    %v2120 = vpack.c.bf16 %v1823, %v1822
    %v2121 = vpack.c.bf16 %v1825, %v1824
    %v2122 = vpack.c.bf16 %v1827, %v1826
    %v2123 = vpack.c.bf16 %v1829, %v1828
    %v2124 = vpack.c.bf16 %v1831, %v1830
    %v2125 = vpack.c.bf16 %v1833, %v1832
    %v2126 = vpack.c.bf16 %v1835, %v1834
    %v2127 = vpack.c.bf16 %v1837, %v1836
    %v2128 = vpack.c.bf16 %v1839, %v1838
    %v2129 = vpack.c.bf16 %v1841, %v1840
    %v2386 = vunpack.c.l.b16 %v1842
    %v2387 = vunpack.c.h.b16 %v1842
    %v2388 = vunpack.c.l.b16 %v1843
    %v2389 = vunpack.c.h.b16 %v1843
    %v2390 = vunpack.c.l.b16 %v1844
    %v2391 = vunpack.c.h.b16 %v1844
    %v2392 = vunpack.c.l.b16 %v1845
    %v2393 = vunpack.c.h.b16 %v1845
    %v2394 = vunpack.c.l.b16 %v1846
    %v2395 = vunpack.c.h.b16 %v1846
    %v2396 = vunpack.c.l.b16 %v1847
    %v2397 = vunpack.c.h.b16 %v1847
    %v2398 = vunpack.c.l.b16 %v1848
    %v2399 = vunpack.c.h.b16 %v1848
    %v2400 = vunpack.c.l.b16 %v1849
    %v2401 = vunpack.c.h.b16 %v1849
    %v2402 = vunpack.c.l.b16 %v1850
    %v2403 = vunpack.c.h.b16 %v1850
    %v2404 = vunpack.c.l.b16 %v1851
    %v2405 = vunpack.c.h.b16 %v1851
    %v2406 = vunpack.c.l.b16 %v1852
    %v2407 = vunpack.c.h.b16 %v1852
    %v2408 = vunpack.c.l.b16 %v1853
    %v2409 = vunpack.c.h.b16 %v1853
    %v2410 = vunpack.c.l.b16 %v1854
    %v2411 = vunpack.c.h.b16 %v1854
    %v2412 = vunpack.c.l.b16 %v1855
    %v2413 = vunpack.c.h.b16 %v1855
    %v2414 = vunpack.c.l.b16 %v1856
    %v2415 = vunpack.c.h.b16 %v1856
    %v2416 = vunpack.c.l.b16 %v1857
    %v2417 = vunpack.c.h.b16 %v1857
    %v2418 = vunpack.c.l.b16 %v1858
    %v2419 = vunpack.c.h.b16 %v1858
    %v2420 = vunpack.c.l.b16 %v1859
    %v2421 = vunpack.c.h.b16 %v1859
    %v2422 = vunpack.c.l.b16 %v1860
    %v2423 = vunpack.c.h.b16 %v1860
    %v2424 = vunpack.c.l.b16 %v1861
    %v2425 = vunpack.c.h.b16 %v1861
    %v2426 = vunpack.c.l.b16 %v1862
    %v2427 = vunpack.c.h.b16 %v1862
    %v2428 = vunpack.c.l.b16 %v1863
    %v2429 = vunpack.c.h.b16 %v1863
    %v2430 = vunpack.c.l.b16 %v1864
    %v2431 = vunpack.c.h.b16 %v1864
    %v2432 = vunpack.c.l.b16 %v1865
    %v2433 = vunpack.c.h.b16 %v1865
    %v2434 = vunpack.c.l.b16 %v1866
    %v2435 = vunpack.c.h.b16 %v1866
    %v2436 = vunpack.c.l.b16 %v1867
    %v2437 = vunpack.c.h.b16 %v1867
    %v2438 = vunpack.c.l.b16 %v1868
    %v2439 = vunpack.c.h.b16 %v1868
    %v2440 = vunpack.c.l.b16 %v1869
    %v2441 = vunpack.c.h.b16 %v1869
    %v2442 = vunpack.c.l.b16 %v1870
    %v2443 = vunpack.c.h.b16 %v1870
    %v2444 = vunpack.c.l.b16 %v1871
    %v2445 = vunpack.c.h.b16 %v1871
    %v2446 = vunpack.c.l.b16 %v1872
    %v2447 = vunpack.c.h.b16 %v1872
    %v2448 = vunpack.c.l.b16 %v1873
    %v2449 = vunpack.c.h.b16 %v1873
    %v2450 = vunpack.c.l.b16 %v1874
    %v2451 = vunpack.c.h.b16 %v1874
    %v2452 = vunpack.c.l.b16 %v1875
    %v2453 = vunpack.c.h.b16 %v1875
    %v2454 = vunpack.c.l.b16 %v1876
    %v2455 = vunpack.c.h.b16 %v1876
    %v2456 = vunpack.c.l.b16 %v1877
    %v2457 = vunpack.c.h.b16 %v1877
    %v2458 = vunpack.c.l.b16 %v1878
    %v2459 = vunpack.c.h.b16 %v1878
    %v2460 = vunpack.c.l.b16 %v1879
    %v2461 = vunpack.c.h.b16 %v1879
    %v2462 = vunpack.c.l.b16 %v1880
    %v2463 = vunpack.c.h.b16 %v1880
    %v2464 = vunpack.c.l.b16 %v1881
    %v2465 = vunpack.c.h.b16 %v1881
    %v2466 = vunpack.c.l.b16 %v1882
    %v2467 = vunpack.c.h.b16 %v1882
    %v2468 = vunpack.c.l.b16 %v1883
    %v2469 = vunpack.c.h.b16 %v1883
    %v2470 = vunpack.c.l.b16 %v1884
    %v2471 = vunpack.c.h.b16 %v1884
    %v2472 = vunpack.c.l.b16 %v1885
    %v2473 = vunpack.c.h.b16 %v1885
    %v2474 = vunpack.c.l.b16 %v1886
    %v2475 = vunpack.c.h.b16 %v1886
    %v2476 = vunpack.c.l.b16 %v1887
    %v2477 = vunpack.c.h.b16 %v1887
    %v2478 = vunpack.c.l.b16 %v1888
    %v2479 = vunpack.c.h.b16 %v1888
    %v2480 = vunpack.c.l.b16 %v1889
    %v2481 = vunpack.c.h.b16 %v1889
    %v2482 = vunpack.c.l.b16 %v1890
    %v2483 = vunpack.c.h.b16 %v1890
    %v2484 = vunpack.c.l.b16 %v1891
    %v2485 = vunpack.c.h.b16 %v1891
    %v2486 = vunpack.c.l.b16 %v1892
    %v2487 = vunpack.c.h.b16 %v1892
    %v2488 = vunpack.c.l.b16 %v1893
    %v2489 = vunpack.c.h.b16 %v1893
    %v2490 = vunpack.c.l.b16 %v1894
    %v2491 = vunpack.c.h.b16 %v1894
    %v2492 = vunpack.c.l.b16 %v1895
    %v2493 = vunpack.c.h.b16 %v1895
    %v2494 = vunpack.c.l.b16 %v1896
    %v2495 = vunpack.c.h.b16 %v1896
    %v2496 = vunpack.c.l.b16 %v1897
    %v2497 = vunpack.c.h.b16 %v1897
    %v2498 = vunpack.c.l.b16 %v1898
    %v2499 = vunpack.c.h.b16 %v1898
    %v2500 = vunpack.c.l.b16 %v1899
    %v2501 = vunpack.c.h.b16 %v1899
    %v2502 = vunpack.c.l.b16 %v1900
    %v2503 = vunpack.c.h.b16 %v1900
    %v2504 = vunpack.c.l.b16 %v1901
    %v2505 = vunpack.c.h.b16 %v1901
    %v2506 = vunpack.c.l.b16 %v1902
    %v2507 = vunpack.c.h.b16 %v1902
    %v2508 = vunpack.c.l.b16 %v1903
    %v2509 = vunpack.c.h.b16 %v1903
    %v2510 = vunpack.c.l.b16 %v1904
    %v2511 = vunpack.c.h.b16 %v1904
    %v2512 = vunpack.c.l.b16 %v1905
    %v2513 = vunpack.c.h.b16 %v1905
    %v2514 = vunpack.c.l.b16 %v1906
    %v2515 = vunpack.c.h.b16 %v1906
    %v2516 = vunpack.c.l.b16 %v1907
    %v2517 = vunpack.c.h.b16 %v1907
    %v2518 = vunpack.c.l.b16 %v1908
    %v2519 = vunpack.c.h.b16 %v1908
    %v2520 = vunpack.c.l.b16 %v1909
    %v2521 = vunpack.c.h.b16 %v1909
    %v2522 = vunpack.c.l.b16 %v1910
    %v2523 = vunpack.c.h.b16 %v1910
    %v2524 = vunpack.c.l.b16 %v1911
    %v2525 = vunpack.c.h.b16 %v1911
    %v2526 = vunpack.c.l.b16 %v1912
    %v2527 = vunpack.c.h.b16 %v1912
    %v2528 = vunpack.c.l.b16 %v1913
    %v2529 = vunpack.c.h.b16 %v1913
    %v2530 = vunpack.c.l.b16 %v1914
    %v2531 = vunpack.c.h.b16 %v1914
    %v2532 = vunpack.c.l.b16 %v1915
    %v2533 = vunpack.c.h.b16 %v1915
    %v2534 = vunpack.c.l.b16 %v1916
    %v2535 = vunpack.c.h.b16 %v1916
    %v2536 = vunpack.c.l.b16 %v1917
    %v2537 = vunpack.c.h.b16 %v1917
    %v2538 = vunpack.c.l.b16 %v1918
    %v2539 = vunpack.c.h.b16 %v1918
    %v2540 = vunpack.c.l.b16 %v1919
    %v2541 = vunpack.c.h.b16 %v1919
    %v2542 = vunpack.c.l.b16 %v1920
    %v2543 = vunpack.c.h.b16 %v1920
    %v2544 = vunpack.c.l.b16 %v1921
    %v2545 = vunpack.c.h.b16 %v1921
    %v2546 = vunpack.c.l.b16 %v1922
    %v2547 = vunpack.c.h.b16 %v1922
    %v2548 = vunpack.c.l.b16 %v1923
    %v2549 = vunpack.c.h.b16 %v1923
    %v2550 = vunpack.c.l.b16 %v1924
    %v2551 = vunpack.c.h.b16 %v1924
    %v2552 = vunpack.c.l.b16 %v1925
    %v2553 = vunpack.c.h.b16 %v1925
    %v2554 = vunpack.c.l.b16 %v1926
    %v2555 = vunpack.c.h.b16 %v1926
    %v2556 = vunpack.c.l.b16 %v1927
    %v2557 = vunpack.c.h.b16 %v1927
    %v2558 = vunpack.c.l.b16 %v1928
    %v2559 = vunpack.c.h.b16 %v1928
    %v2560 = vunpack.c.l.b16 %v1929
    %v2561 = vunpack.c.h.b16 %v1929
    %v2562 = vunpack.c.l.b16 %v1930
    %v2563 = vunpack.c.h.b16 %v1930
    %v2564 = vunpack.c.l.b16 %v1931
    %v2565 = vunpack.c.h.b16 %v1931
    %v2566 = vunpack.c.l.b16 %v1932
    %v2567 = vunpack.c.h.b16 %v1932
    %v2568 = vunpack.c.l.b16 %v1933
    %v2569 = vunpack.c.h.b16 %v1933
    %v2570 = vunpack.c.l.b16 %v1934
    %v2571 = vunpack.c.h.b16 %v1934
    %v2572 = vunpack.c.l.b16 %v1935
    %v2573 = vunpack.c.h.b16 %v1935
    %v2574 = vunpack.c.l.b16 %v1936
    %v2575 = vunpack.c.h.b16 %v1936
    %v2576 = vunpack.c.l.b16 %v1937
    %v2577 = vunpack.c.h.b16 %v1937
    %v2578 = vunpack.c.l.b16 %v1938
    %v2579 = vunpack.c.h.b16 %v1938
    %v2580 = vunpack.c.l.b16 %v1939
    %v2581 = vunpack.c.h.b16 %v1939
    %v2582 = vunpack.c.l.b16 %v1940
    %v2583 = vunpack.c.h.b16 %v1940
    %v2584 = vunpack.c.l.b16 %v1941
    %v2585 = vunpack.c.h.b16 %v1941
    %v2586 = vunpack.c.l.b16 %v1942
    %v2587 = vunpack.c.h.b16 %v1942
    %v2588 = vunpack.c.l.b16 %v1943
    %v2589 = vunpack.c.h.b16 %v1943
    %v2590 = vunpack.c.l.b16 %v1944
    %v2591 = vunpack.c.h.b16 %v1944
    %v2592 = vunpack.c.l.b16 %v1945
    %v2593 = vunpack.c.h.b16 %v1945
    %v2594 = vunpack.c.l.b16 %v1946
    %v2595 = vunpack.c.h.b16 %v1946
    %v2596 = vunpack.c.l.b16 %v1947
    %v2597 = vunpack.c.h.b16 %v1947
    %v2598 = vunpack.c.l.b16 %v1948
    %v2599 = vunpack.c.h.b16 %v1948
    %v2600 = vunpack.c.l.b16 %v1949
    %v2601 = vunpack.c.h.b16 %v1949
    %v2602 = vunpack.c.l.b16 %v1950
    %v2603 = vunpack.c.h.b16 %v1950
    %v2604 = vunpack.c.l.b16 %v1951
    %v2605 = vunpack.c.h.b16 %v1951
    %v2606 = vunpack.c.l.b16 %v1952
    %v2607 = vunpack.c.h.b16 %v1952
    %v2608 = vunpack.c.l.b16 %v1953
    %v2609 = vunpack.c.h.b16 %v1953
    %v2610 = vunpack.c.l.b16 %v1954
    %v2611 = vunpack.c.h.b16 %v1954
    %v2612 = vunpack.c.l.b16 %v1955
    %v2613 = vunpack.c.h.b16 %v1955
    %v2614 = vunpack.c.l.b16 %v1956
    %v2615 = vunpack.c.h.b16 %v1956
    %v2616 = vunpack.c.l.b16 %v1957
    %v2617 = vunpack.c.h.b16 %v1957
    %v2618 = vunpack.c.l.b16 %v1958
    %v2619 = vunpack.c.h.b16 %v1958
    %v2620 = vunpack.c.l.b16 %v1959
    %v2621 = vunpack.c.h.b16 %v1959
    %v2622 = vunpack.c.l.b16 %v1960
    %v2623 = vunpack.c.h.b16 %v1960
    %v2624 = vunpack.c.l.b16 %v1961
    %v2625 = vunpack.c.h.b16 %v1961
    %v2626 = vunpack.c.l.b16 %v1962
    %v2627 = vunpack.c.h.b16 %v1962
    %v2628 = vunpack.c.l.b16 %v1963
    %v2629 = vunpack.c.h.b16 %v1963
    %v2630 = vunpack.c.l.b16 %v1964
    %v2631 = vunpack.c.h.b16 %v1964
    %v2632 = vunpack.c.l.b16 %v1965
    %v2633 = vunpack.c.h.b16 %v1965
    %v2634 = vunpack.c.l.b16 %v1966
    %v2635 = vunpack.c.h.b16 %v1966
    %v2636 = vunpack.c.l.b16 %v1967
    %v2637 = vunpack.c.h.b16 %v1967
    %v2638 = vunpack.c.l.b16 %v1968
    %v2639 = vunpack.c.h.b16 %v1968
    %v2640 = vunpack.c.l.b16 %v1969
    %v2641 = vunpack.c.h.b16 %v1969
    %v2642 = vunpack.c.l.b16 %v1970
    %v2643 = vunpack.c.h.b16 %v1970
    %v2644 = vunpack.c.l.b16 %v1971
    %v2645 = vunpack.c.h.b16 %v1971
    %v2646 = vunpack.c.l.b16 %v1972
    %v2647 = vunpack.c.h.b16 %v1972
    %v2648 = vunpack.c.l.b16 %v1973
    %v2649 = vunpack.c.h.b16 %v1973
    %v2650 = vunpack.c.l.b16 %v1974
    %v2651 = vunpack.c.h.b16 %v1974
    %v2652 = vunpack.c.l.b16 %v1975
    %v2653 = vunpack.c.h.b16 %v1975
    %v2654 = vunpack.c.l.b16 %v1976
    %v2655 = vunpack.c.h.b16 %v1976
    %v2656 = vunpack.c.l.b16 %v1977
    %v2657 = vunpack.c.h.b16 %v1977
    %v2658 = vunpack.c.l.b16 %v1978
    %v2659 = vunpack.c.h.b16 %v1978
    %v2660 = vunpack.c.l.b16 %v1979
    %v2661 = vunpack.c.h.b16 %v1979
    %v2662 = vunpack.c.l.b16 %v1980
    %v2663 = vunpack.c.h.b16 %v1980
    %v2664 = vunpack.c.l.b16 %v1981
    %v2665 = vunpack.c.h.b16 %v1981
    %v2666 = vunpack.c.l.b16 %v1982
    %v2667 = vunpack.c.h.b16 %v1982
    %v2668 = vunpack.c.l.b16 %v1983
    %v2669 = vunpack.c.h.b16 %v1983
    %v2670 = vunpack.c.l.b16 %v1984
    %v2671 = vunpack.c.h.b16 %v1984
    %v2672 = vunpack.c.l.b16 %v1985
    %v2673 = vunpack.c.h.b16 %v1985
    %v2674 = vunpack.c.l.b16 %v1986
    %v2675 = vunpack.c.h.b16 %v1986
    %v2676 = vunpack.c.l.b16 %v1987
    %v2677 = vunpack.c.h.b16 %v1987
    %v2678 = vunpack.c.l.b16 %v1988
    %v2679 = vunpack.c.h.b16 %v1988
    %v2680 = vunpack.c.l.b16 %v1989
    %v2681 = vunpack.c.h.b16 %v1989
    %v2682 = vunpack.c.l.b16 %v1990
    %v2683 = vunpack.c.h.b16 %v1990
    %v2684 = vunpack.c.l.b16 %v1991
    %v2685 = vunpack.c.h.b16 %v1991
    %v2686 = vunpack.c.l.b16 %v1992
    %v2687 = vunpack.c.h.b16 %v1992
    %v2688 = vunpack.c.l.b16 %v1993
    %v2689 = vunpack.c.h.b16 %v1993
    %v2690 = vunpack.c.l.b16 %v1994
    %v2691 = vunpack.c.h.b16 %v1994
    %v2692 = vunpack.c.l.b16 %v1995
    %v2693 = vunpack.c.h.b16 %v1995
    %v2694 = vunpack.c.l.b16 %v1996
    %v2695 = vunpack.c.h.b16 %v1996
    %v2696 = vunpack.c.l.b16 %v1997
    %v2697 = vunpack.c.h.b16 %v1997
    %v2698 = vunpack.c.l.b16 %v1998
    %v2699 = vunpack.c.h.b16 %v1998
    %v2700 = vunpack.c.l.b16 %v1999
    %v2701 = vunpack.c.h.b16 %v1999
    %v2702 = vunpack.c.l.b16 %v2000
    %v2703 = vunpack.c.h.b16 %v2000
    %v2704 = vunpack.c.l.b16 %v2001
    %v2705 = vunpack.c.h.b16 %v2001
    %v2706 = vunpack.c.l.b16 %v2002
    %v2707 = vunpack.c.h.b16 %v2002
    %v2708 = vunpack.c.l.b16 %v2003
    %v2709 = vunpack.c.h.b16 %v2003
    %v2710 = vunpack.c.l.b16 %v2004
    %v2711 = vunpack.c.h.b16 %v2004
    %v2712 = vunpack.c.l.b16 %v2005
    %v2713 = vunpack.c.h.b16 %v2005
    %v2714 = vunpack.c.l.b16 %v2006
    %v2715 = vunpack.c.h.b16 %v2006
    %v2716 = vunpack.c.l.b16 %v2007
    %v2717 = vunpack.c.h.b16 %v2007
    %v2718 = vunpack.c.l.b16 %v2008
    %v2719 = vunpack.c.h.b16 %v2008
    %v2720 = vunpack.c.l.b16 %v2009
    %v2721 = vunpack.c.h.b16 %v2009
    %v2722 = vunpack.c.l.b16 %v2010
    %v2723 = vunpack.c.h.b16 %v2010
    %v2724 = vunpack.c.l.b16 %v2011
    %v2725 = vunpack.c.h.b16 %v2011
    %v2726 = vunpack.c.l.b16 %v2012
    %v2727 = vunpack.c.h.b16 %v2012
    %v2728 = vunpack.c.l.b16 %v2013
    %v2729 = vunpack.c.h.b16 %v2013
    %v2730 = vunpack.c.l.b16 %v2014
    %v2731 = vunpack.c.h.b16 %v2014
    %v2732 = vunpack.c.l.b16 %v2015
    %v2733 = vunpack.c.h.b16 %v2015
    %v2734 = vunpack.c.l.b16 %v2016
    %v2735 = vunpack.c.h.b16 %v2016
    %v2736 = vunpack.c.l.b16 %v2017
    %v2737 = vunpack.c.h.b16 %v2017
    %v2738 = vunpack.c.l.b16 %v2018
    %v2739 = vunpack.c.h.b16 %v2018
    %v2740 = vunpack.c.l.b16 %v2019
    %v2741 = vunpack.c.h.b16 %v2019
    %v2742 = vunpack.c.l.b16 %v2020
    %v2743 = vunpack.c.h.b16 %v2020
    %v2744 = vunpack.c.l.b16 %v2021
    %v2745 = vunpack.c.h.b16 %v2021
    %v2746 = vunpack.c.l.b16 %v2022
    %v2747 = vunpack.c.h.b16 %v2022
    %v2748 = vunpack.c.l.b16 %v2023
    %v2749 = vunpack.c.h.b16 %v2023
    %v2750 = vunpack.c.l.b16 %v2024
    %v2751 = vunpack.c.h.b16 %v2024
    %v2752 = vunpack.c.l.b16 %v2025
    %v2753 = vunpack.c.h.b16 %v2025
    %v2754 = vunpack.c.l.b16 %v2026
    %v2755 = vunpack.c.h.b16 %v2026
    %v2756 = vunpack.c.l.b16 %v2027
    %v2757 = vunpack.c.h.b16 %v2027
    %v2758 = vunpack.c.l.b16 %v2028
    %v2759 = vunpack.c.h.b16 %v2028
    %v2760 = vunpack.c.l.b16 %v2029
    %v2761 = vunpack.c.h.b16 %v2029
    %v2762 = vunpack.c.l.b16 %v2030
    %v2763 = vunpack.c.h.b16 %v2030
    %v2764 = vunpack.c.l.b16 %v2031
    %v2765 = vunpack.c.h.b16 %v2031
    %v2766 = vunpack.c.l.b16 %v2032
    %v2767 = vunpack.c.h.b16 %v2032
    %v2768 = vunpack.c.l.b16 %v2033
    %v2769 = vunpack.c.h.b16 %v2033
    %v2770 = vunpack.c.l.b16 %v2034
    %v2771 = vunpack.c.h.b16 %v2034
    %v2772 = vunpack.c.l.b16 %v2035
    %v2773 = vunpack.c.h.b16 %v2035
    %v2774 = vunpack.c.l.b16 %v2036
    %v2775 = vunpack.c.h.b16 %v2036
    %v2776 = vunpack.c.l.b16 %v2037
    %v2777 = vunpack.c.h.b16 %v2037
    %v2778 = vunpack.c.l.b16 %v2038
    %v2779 = vunpack.c.h.b16 %v2038
    %v2780 = vunpack.c.l.b16 %v2039
    %v2781 = vunpack.c.h.b16 %v2039
    %v2782 = vunpack.c.l.b16 %v2040
    %v2783 = vunpack.c.h.b16 %v2040
    %v2784 = vunpack.c.l.b16 %v2041
    %v2785 = vunpack.c.h.b16 %v2041
    %v2786 = vunpack.c.l.b16 %v2042
    %v2787 = vunpack.c.h.b16 %v2042
    %v2788 = vunpack.c.l.b16 %v2043
    %v2789 = vunpack.c.h.b16 %v2043
    %v2790 = vunpack.c.l.b16 %v2044
    %v2791 = vunpack.c.h.b16 %v2044
    %v2792 = vunpack.c.l.b16 %v2045
    %v2793 = vunpack.c.h.b16 %v2045
    %v2794 = vunpack.c.l.b16 %v2046
    %v2795 = vunpack.c.h.b16 %v2046
    %v2796 = vunpack.c.l.b16 %v2047
    %v2797 = vunpack.c.h.b16 %v2047
    %v2798 = vunpack.c.l.b16 %v2048
    %v2799 = vunpack.c.h.b16 %v2048
    %v2800 = vunpack.c.l.b16 %v2049
    %v2801 = vunpack.c.h.b16 %v2049
    %v2802 = vunpack.c.l.b16 %v2050
    %v2803 = vunpack.c.h.b16 %v2050
    %v2804 = vunpack.c.l.b16 %v2051
    %v2805 = vunpack.c.h.b16 %v2051
    %v2806 = vunpack.c.l.b16 %v2052
    %v2807 = vunpack.c.h.b16 %v2052
    %v2808 = vunpack.c.l.b16 %v2053
    %v2809 = vunpack.c.h.b16 %v2053
    %v2810 = vunpack.c.l.b16 %v2054
    %v2811 = vunpack.c.h.b16 %v2054
    %v2812 = vunpack.c.l.b16 %v2055
    %v2813 = vunpack.c.h.b16 %v2055
    %v2814 = vunpack.c.l.b16 %v2056
    %v2815 = vunpack.c.h.b16 %v2056
    %v2816 = vunpack.c.l.b16 %v2057
    %v2817 = vunpack.c.h.b16 %v2057
    %v2818 = vunpack.c.l.b16 %v2058
    %v2819 = vunpack.c.h.b16 %v2058
    %v2820 = vunpack.c.l.b16 %v2059
    %v2821 = vunpack.c.h.b16 %v2059
    %v2822 = vunpack.c.l.b16 %v2060
    %v2823 = vunpack.c.h.b16 %v2060
    %v2824 = vunpack.c.l.b16 %v2061
    %v2825 = vunpack.c.h.b16 %v2061
    %v2826 = vunpack.c.l.b16 %v2062
    %v2827 = vunpack.c.h.b16 %v2062
    %v2828 = vunpack.c.l.b16 %v2063
    %v2829 = vunpack.c.h.b16 %v2063
    %v2830 = vunpack.c.l.b16 %v2064
    %v2831 = vunpack.c.h.b16 %v2064
    %v2832 = vunpack.c.l.b16 %v2065
    %v2833 = vunpack.c.h.b16 %v2065
    %v2834 = vunpack.c.l.b16 %v2066
    %v2835 = vunpack.c.h.b16 %v2066
    %v2836 = vunpack.c.l.b16 %v2067
    %v2837 = vunpack.c.h.b16 %v2067
    %v2838 = vunpack.c.l.b16 %v2068
    %v2839 = vunpack.c.h.b16 %v2068
    %v2840 = vunpack.c.l.b16 %v2069
    %v2841 = vunpack.c.h.b16 %v2069
    %v2842 = vunpack.c.l.b16 %v2070
    %v2843 = vunpack.c.h.b16 %v2070
    %v2844 = vunpack.c.l.b16 %v2071
    %v2845 = vunpack.c.h.b16 %v2071
    %v2846 = vunpack.c.l.b16 %v2072
    %v2847 = vunpack.c.h.b16 %v2072
    %v2848 = vunpack.c.l.b16 %v2073
    %v2849 = vunpack.c.h.b16 %v2073
    %v2850 = vunpack.c.l.b16 %v2074
    %v2851 = vunpack.c.h.b16 %v2074
    %v2852 = vunpack.c.l.b16 %v2075
    %v2853 = vunpack.c.h.b16 %v2075
    %v2854 = vunpack.c.l.b16 %v2076
    %v2855 = vunpack.c.h.b16 %v2076
    %v2856 = vunpack.c.l.b16 %v2077
    %v2857 = vunpack.c.h.b16 %v2077
    %v2858 = vunpack.c.l.b16 %v2078
    %v2859 = vunpack.c.h.b16 %v2078
    %v2860 = vunpack.c.l.b16 %v2079
    %v2861 = vunpack.c.h.b16 %v2079
    %v2862 = vunpack.c.l.b16 %v2080
    %v2863 = vunpack.c.h.b16 %v2080
    %v2864 = vunpack.c.l.b16 %v2081
    %v2865 = vunpack.c.h.b16 %v2081
    %v2866 = vunpack.c.l.b16 %v2082
    %v2867 = vunpack.c.h.b16 %v2082
    %v2868 = vunpack.c.l.b16 %v2083
    %v2869 = vunpack.c.h.b16 %v2083
    %v2870 = vunpack.c.l.b16 %v2084
    %v2871 = vunpack.c.h.b16 %v2084
    %v2872 = vunpack.c.l.b16 %v2085
    %v2873 = vunpack.c.h.b16 %v2085
    %v2874 = vunpack.c.l.b16 %v2086
    %v2875 = vunpack.c.h.b16 %v2086
    %v2876 = vunpack.c.l.b16 %v2087
    %v2877 = vunpack.c.h.b16 %v2087
    %v2878 = vunpack.c.l.b16 %v2088
    %v2879 = vunpack.c.h.b16 %v2088
    %v2880 = vunpack.c.l.b16 %v2089
    %v2881 = vunpack.c.h.b16 %v2089
    %v2882 = vunpack.c.l.b16 %v2090
    %v2883 = vunpack.c.h.b16 %v2090
    %v2884 = vunpack.c.l.b16 %v2091
    %v2885 = vunpack.c.h.b16 %v2091
    %v2886 = vunpack.c.l.b16 %v2092
    %v2887 = vunpack.c.h.b16 %v2092
    %v2888 = vunpack.c.l.b16 %v2093
    %v2889 = vunpack.c.h.b16 %v2093
    %v2890 = vunpack.c.l.b16 %v2094
    %v2891 = vunpack.c.h.b16 %v2094
    %v2892 = vunpack.c.l.b16 %v2095
    %v2893 = vunpack.c.h.b16 %v2095
    %v2894 = vunpack.c.l.b16 %v2096
    %v2895 = vunpack.c.h.b16 %v2096
    %v2896 = vunpack.c.l.b16 %v2097
    %v2897 = vunpack.c.h.b16 %v2097
    %v2898 = vpack.c.b16 %v2390, %v2386
    %v2899 = vpack.c.b16 %v2391, %v2387
    %v2900 = vpack.c.b16 %v2392, %v2388
    %v2901 = vpack.c.b16 %v2393, %v2389
    %v2902 = vpack.c.b16 %v2398, %v2394
    %v2903 = vpack.c.b16 %v2399, %v2395
    %v2904 = vpack.c.b16 %v2400, %v2396
    %v2905 = vpack.c.b16 %v2401, %v2397
    %v2906 = vpack.c.b16 %v2406, %v2402
    %v2907 = vpack.c.b16 %v2407, %v2403
    %v2908 = vpack.c.b16 %v2408, %v2404
    %v2909 = vpack.c.b16 %v2409, %v2405
    %v2910 = vpack.c.b16 %v2414, %v2410
    %v2911 = vpack.c.b16 %v2415, %v2411
    %v2912 = vpack.c.b16 %v2416, %v2412
    %v2913 = vpack.c.b16 %v2417, %v2413
    %v2914 = vpack.c.b16 %v2422, %v2418
    %v2915 = vpack.c.b16 %v2423, %v2419
    %v2916 = vpack.c.b16 %v2424, %v2420
    %v2917 = vpack.c.b16 %v2425, %v2421
    %v2918 = vpack.c.b16 %v2430, %v2426
    %v2919 = vpack.c.b16 %v2431, %v2427
    %v2920 = vpack.c.b16 %v2432, %v2428
    %v2921 = vpack.c.b16 %v2433, %v2429
    %v2922 = vpack.c.b16 %v2438, %v2434
    %v2923 = vpack.c.b16 %v2439, %v2435
    %v2924 = vpack.c.b16 %v2440, %v2436
    %v2925 = vpack.c.b16 %v2441, %v2437
    %v2926 = vpack.c.b16 %v2446, %v2442
    %v2927 = vpack.c.b16 %v2447, %v2443
    %v2928 = vpack.c.b16 %v2448, %v2444
    %v2929 = vpack.c.b16 %v2449, %v2445
    %v2930 = vpack.c.b16 %v2454, %v2450
    %v2931 = vpack.c.b16 %v2455, %v2451
    %v2932 = vpack.c.b16 %v2456, %v2452
    %v2933 = vpack.c.b16 %v2457, %v2453
    %v2934 = vpack.c.b16 %v2462, %v2458
    %v2935 = vpack.c.b16 %v2463, %v2459
    %v2936 = vpack.c.b16 %v2464, %v2460
    %v2937 = vpack.c.b16 %v2465, %v2461
    %v2938 = vpack.c.b16 %v2470, %v2466
    %v2939 = vpack.c.b16 %v2471, %v2467
    %v2940 = vpack.c.b16 %v2472, %v2468
    %v2941 = vpack.c.b16 %v2473, %v2469
    %v2942 = vpack.c.b16 %v2478, %v2474
    %v2943 = vpack.c.b16 %v2479, %v2475
    %v2944 = vpack.c.b16 %v2480, %v2476
    %v2945 = vpack.c.b16 %v2481, %v2477
    %v2946 = vpack.c.b16 %v2486, %v2482
    %v2947 = vpack.c.b16 %v2487, %v2483
    %v2948 = vpack.c.b16 %v2488, %v2484
    %v2949 = vpack.c.b16 %v2489, %v2485
    %v2950 = vpack.c.b16 %v2494, %v2490
    %v2951 = vpack.c.b16 %v2495, %v2491
    %v2952 = vpack.c.b16 %v2496, %v2492
    %v2953 = vpack.c.b16 %v2497, %v2493
    %v2954 = vpack.c.b16 %v2502, %v2498
    %v2955 = vpack.c.b16 %v2503, %v2499
    %v2956 = vpack.c.b16 %v2504, %v2500
    %v2957 = vpack.c.b16 %v2505, %v2501
    %v2958 = vpack.c.b16 %v2510, %v2506
    %v2959 = vpack.c.b16 %v2511, %v2507
    %v2960 = vpack.c.b16 %v2512, %v2508
    %v2961 = vpack.c.b16 %v2513, %v2509
    %v2962 = vpack.c.b16 %v2518, %v2514
    %v2963 = vpack.c.b16 %v2519, %v2515
    %v2964 = vpack.c.b16 %v2520, %v2516
    %v2965 = vpack.c.b16 %v2521, %v2517
    %v2966 = vpack.c.b16 %v2526, %v2522
    %v2967 = vpack.c.b16 %v2527, %v2523
    %v2968 = vpack.c.b16 %v2528, %v2524
    %v2969 = vpack.c.b16 %v2529, %v2525
    %v2970 = vpack.c.b16 %v2534, %v2530
    %v2971 = vpack.c.b16 %v2535, %v2531
    %v2972 = vpack.c.b16 %v2536, %v2532
    %v2973 = vpack.c.b16 %v2537, %v2533
    %v2974 = vpack.c.b16 %v2542, %v2538
    %v2975 = vpack.c.b16 %v2543, %v2539
    %v2976 = vpack.c.b16 %v2544, %v2540
    %v2977 = vpack.c.b16 %v2545, %v2541
    %v2978 = vpack.c.b16 %v2550, %v2546
    %v2979 = vpack.c.b16 %v2551, %v2547
    %v2980 = vpack.c.b16 %v2552, %v2548
    %v2981 = vpack.c.b16 %v2553, %v2549
    %v2982 = vpack.c.b16 %v2558, %v2554
    %v2983 = vpack.c.b16 %v2559, %v2555
    %v2984 = vpack.c.b16 %v2560, %v2556
    %v2985 = vpack.c.b16 %v2561, %v2557
    %v2986 = vpack.c.b16 %v2566, %v2562
    %v2987 = vpack.c.b16 %v2567, %v2563
    %v2988 = vpack.c.b16 %v2568, %v2564
    %v2989 = vpack.c.b16 %v2569, %v2565
    %v2990 = vpack.c.b16 %v2574, %v2570
    %v2991 = vpack.c.b16 %v2575, %v2571
    %v2992 = vpack.c.b16 %v2576, %v2572
    %v2993 = vpack.c.b16 %v2577, %v2573
    %v2994 = vpack.c.b16 %v2582, %v2578
    %v2995 = vpack.c.b16 %v2583, %v2579
    %v2996 = vpack.c.b16 %v2584, %v2580
    %v2997 = vpack.c.b16 %v2585, %v2581
    %v2998 = vpack.c.b16 %v2590, %v2586
    %v2999 = vpack.c.b16 %v2591, %v2587
    %v3000 = vpack.c.b16 %v2592, %v2588
    %v3001 = vpack.c.b16 %v2593, %v2589
    %v3002 = vpack.c.b16 %v2598, %v2594
    %v3003 = vpack.c.b16 %v2599, %v2595
    %v3004 = vpack.c.b16 %v2600, %v2596
    %v3005 = vpack.c.b16 %v2601, %v2597
    %v3006 = vpack.c.b16 %v2606, %v2602
    %v3007 = vpack.c.b16 %v2607, %v2603
    %v3008 = vpack.c.b16 %v2608, %v2604
    %v3009 = vpack.c.b16 %v2609, %v2605
    %v3010 = vpack.c.b16 %v2614, %v2610
    %v3011 = vpack.c.b16 %v2615, %v2611
    %v3012 = vpack.c.b16 %v2616, %v2612
    %v3013 = vpack.c.b16 %v2617, %v2613
    %v3014 = vpack.c.b16 %v2622, %v2618
    %v3015 = vpack.c.b16 %v2623, %v2619
    %v3016 = vpack.c.b16 %v2624, %v2620
    %v3017 = vpack.c.b16 %v2625, %v2621
    %v3018 = vpack.c.b16 %v2630, %v2626
    %v3019 = vpack.c.b16 %v2631, %v2627
    %v3020 = vpack.c.b16 %v2632, %v2628
    %v3021 = vpack.c.b16 %v2633, %v2629
    %v3022 = vpack.c.b16 %v2638, %v2634
    %v3023 = vpack.c.b16 %v2639, %v2635
    %v3024 = vpack.c.b16 %v2640, %v2636
    %v3025 = vpack.c.b16 %v2641, %v2637
    %v3026 = vpack.c.b16 %v2646, %v2642
    %v3027 = vpack.c.b16 %v2647, %v2643
    %v3028 = vpack.c.b16 %v2648, %v2644
    %v3029 = vpack.c.b16 %v2649, %v2645
    %v3030 = vpack.c.b16 %v2654, %v2650
    %v3031 = vpack.c.b16 %v2655, %v2651
    %v3032 = vpack.c.b16 %v2656, %v2652
    %v3033 = vpack.c.b16 %v2657, %v2653
    %v3034 = vpack.c.b16 %v2662, %v2658
    %v3035 = vpack.c.b16 %v2663, %v2659
    %v3036 = vpack.c.b16 %v2664, %v2660
    %v3037 = vpack.c.b16 %v2665, %v2661
    %v3038 = vpack.c.b16 %v2670, %v2666
    %v3039 = vpack.c.b16 %v2671, %v2667
    %v3040 = vpack.c.b16 %v2672, %v2668
    %v3041 = vpack.c.b16 %v2673, %v2669
    %v3042 = vpack.c.b16 %v2678, %v2674
    %v3043 = vpack.c.b16 %v2679, %v2675
    %v3044 = vpack.c.b16 %v2680, %v2676
    %v3045 = vpack.c.b16 %v2681, %v2677
    %v3046 = vpack.c.b16 %v2686, %v2682
    %v3047 = vpack.c.b16 %v2687, %v2683
    %v3048 = vpack.c.b16 %v2688, %v2684
    %v3049 = vpack.c.b16 %v2689, %v2685
    %v3050 = vpack.c.b16 %v2694, %v2690
    %v3051 = vpack.c.b16 %v2695, %v2691
    %v3052 = vpack.c.b16 %v2696, %v2692
    %v3053 = vpack.c.b16 %v2697, %v2693
    %v3054 = vpack.c.b16 %v2702, %v2698
    %v3055 = vpack.c.b16 %v2703, %v2699
    %v3056 = vpack.c.b16 %v2704, %v2700
    %v3057 = vpack.c.b16 %v2705, %v2701
    %v3058 = vpack.c.b16 %v2710, %v2706
    %v3059 = vpack.c.b16 %v2711, %v2707
    %v3060 = vpack.c.b16 %v2712, %v2708
    %v3061 = vpack.c.b16 %v2713, %v2709
    %v3062 = vpack.c.b16 %v2718, %v2714
    %v3063 = vpack.c.b16 %v2719, %v2715
    %v3064 = vpack.c.b16 %v2720, %v2716
    %v3065 = vpack.c.b16 %v2721, %v2717
    %v3066 = vpack.c.b16 %v2726, %v2722
    %v3067 = vpack.c.b16 %v2727, %v2723
    %v3068 = vpack.c.b16 %v2728, %v2724
    %v3069 = vpack.c.b16 %v2729, %v2725
    %v3070 = vpack.c.b16 %v2734, %v2730
    %v3071 = vpack.c.b16 %v2735, %v2731
    %v3072 = vpack.c.b16 %v2736, %v2732
    %v3073 = vpack.c.b16 %v2737, %v2733
    %v3074 = vpack.c.b16 %v2742, %v2738
    %v3075 = vpack.c.b16 %v2743, %v2739
    %v3076 = vpack.c.b16 %v2744, %v2740
    %v3077 = vpack.c.b16 %v2745, %v2741
    %v3078 = vpack.c.b16 %v2750, %v2746
    %v3079 = vpack.c.b16 %v2751, %v2747
    %v3080 = vpack.c.b16 %v2752, %v2748
    %v3081 = vpack.c.b16 %v2753, %v2749
    %v3082 = vpack.c.b16 %v2758, %v2754
    %v3083 = vpack.c.b16 %v2759, %v2755
    %v3084 = vpack.c.b16 %v2760, %v2756
    %v3085 = vpack.c.b16 %v2761, %v2757
    %v3086 = vpack.c.b16 %v2766, %v2762
    %v3087 = vpack.c.b16 %v2767, %v2763
    %v3088 = vpack.c.b16 %v2768, %v2764
    %v3089 = vpack.c.b16 %v2769, %v2765
    %v3090 = vpack.c.b16 %v2774, %v2770
    %v3091 = vpack.c.b16 %v2775, %v2771
    %v3092 = vpack.c.b16 %v2776, %v2772
    %v3093 = vpack.c.b16 %v2777, %v2773
    %v3094 = vpack.c.b16 %v2782, %v2778
    %v3095 = vpack.c.b16 %v2783, %v2779
    %v3096 = vpack.c.b16 %v2784, %v2780
    %v3097 = vpack.c.b16 %v2785, %v2781
    %v3098 = vpack.c.b16 %v2790, %v2786
    %v3099 = vpack.c.b16 %v2791, %v2787
    %v3100 = vpack.c.b16 %v2792, %v2788
    %v3101 = vpack.c.b16 %v2793, %v2789
    %v3102 = vpack.c.b16 %v2798, %v2794
    %v3103 = vpack.c.b16 %v2799, %v2795
    %v3104 = vpack.c.b16 %v2800, %v2796
    %v3105 = vpack.c.b16 %v2801, %v2797
    %v3106 = vpack.c.b16 %v2806, %v2802
    %v3107 = vpack.c.b16 %v2807, %v2803
    %v3108 = vpack.c.b16 %v2808, %v2804
    %v3109 = vpack.c.b16 %v2809, %v2805
    %v3110 = vpack.c.b16 %v2814, %v2810
    %v3111 = vpack.c.b16 %v2815, %v2811
    %v3112 = vpack.c.b16 %v2816, %v2812
    %v3113 = vpack.c.b16 %v2817, %v2813
    %v3114 = vpack.c.b16 %v2822, %v2818
    %v3115 = vpack.c.b16 %v2823, %v2819
    %v3116 = vpack.c.b16 %v2824, %v2820
    %v3117 = vpack.c.b16 %v2825, %v2821
    %v3118 = vpack.c.b16 %v2830, %v2826
    %v3119 = vpack.c.b16 %v2831, %v2827
    %v3120 = vpack.c.b16 %v2832, %v2828
    %v3121 = vpack.c.b16 %v2833, %v2829
    %v3122 = vpack.c.b16 %v2838, %v2834
    %v3123 = vpack.c.b16 %v2839, %v2835
    %v3124 = vpack.c.b16 %v2840, %v2836
    %v3125 = vpack.c.b16 %v2841, %v2837
    %v3126 = vpack.c.b16 %v2846, %v2842
    %v3127 = vpack.c.b16 %v2847, %v2843
    %v3128 = vpack.c.b16 %v2848, %v2844
    %v3129 = vpack.c.b16 %v2849, %v2845
    %v3130 = vpack.c.b16 %v2854, %v2850
    %v3131 = vpack.c.b16 %v2855, %v2851
    %v3132 = vpack.c.b16 %v2856, %v2852
    %v3133 = vpack.c.b16 %v2857, %v2853
    %v3134 = vpack.c.b16 %v2862, %v2858
    %v3135 = vpack.c.b16 %v2863, %v2859
    %v3136 = vpack.c.b16 %v2864, %v2860
    %v3137 = vpack.c.b16 %v2865, %v2861
    %v3138 = vpack.c.b16 %v2870, %v2866
    %v3139 = vpack.c.b16 %v2871, %v2867
    %v3140 = vpack.c.b16 %v2872, %v2868
    %v3141 = vpack.c.b16 %v2873, %v2869
    %v3142 = vpack.c.b16 %v2878, %v2874
    %v3143 = vpack.c.b16 %v2879, %v2875
    %v3144 = vpack.c.b16 %v2880, %v2876
    %v3145 = vpack.c.b16 %v2881, %v2877
    %v3146 = vpack.c.b16 %v2886, %v2882
    %v3147 = vpack.c.b16 %v2887, %v2883
    %v3148 = vpack.c.b16 %v2888, %v2884
    %v3149 = vpack.c.b16 %v2889, %v2885
    %v3150 = vpack.c.b16 %v2894, %v2890
    %v3151 = vpack.c.b16 %v2895, %v2891
    %v3152 = vpack.c.b16 %v2896, %v2892
    %v3153 = vpack.c.b16 %v2897, %v2893
    %3410 = vmatprep.subr.bf16.mxu0 0
    %3411 = vmatpush1.bf16.msra.mxu0 %v2098
    %3412 = vmatprep.subr.bf16.mxu0 0
    %3413 = vmatpush1.bf16.msra.mxu0 %v2099
    %3414 = vmatprep.subr.bf16.mxu0 0
    %3415 = vmatpush1.bf16.msra.mxu0 %v2100
    %3416 = vmatprep.subr.bf16.mxu0 0
    %3417 = vmatpush1.bf16.msra.mxu0 %v2101
    %3418 = vmatprep.subr.bf16.mxu0 0
    %3419 = vmatpush1.bf16.msra.mxu0 %v2102
    %3420 = vmatprep.subr.bf16.mxu0 0
    %3421 = vmatpush1.bf16.msra.mxu0 %v2103
    %3422 = vmatprep.subr.bf16.mxu0 0
    %3423 = vmatpush1.bf16.msra.mxu0 %v2104
    %3424 = vmatprep.subr.bf16.mxu0 0
    %3425 = vmatpush1.bf16.msra.mxu0 %v2105
    %3426 = vmatprep.subr.bf16.mxu0 0
    %3427 = vmatpush1.bf16.msra.mxu0 %v2106
    %3428 = vmatprep.subr.bf16.mxu0 0
    %3429 = vmatpush1.bf16.msra.mxu0 %v2107
    %3430 = vmatprep.subr.bf16.mxu0 0
    %3431 = vmatpush1.bf16.msra.mxu0 %v2108
    %3432 = vmatprep.subr.bf16.mxu0 0
    %3433 = vmatpush1.bf16.msra.mxu0 %v2109
    %3434 = vmatprep.subr.bf16.mxu0 0
    %3435 = vmatpush1.bf16.msra.mxu0 %v2110
    %3436 = vmatprep.subr.bf16.mxu0 0
    %3437 = vmatpush1.bf16.msra.mxu0 %v2111
    %3438 = vmatprep.subr.bf16.mxu0 0
    %3439 = vmatpush1.bf16.msra.mxu0 %v2112
    %3440 = vmatprep.subr.bf16.mxu0 0
    %3441 = vmatpush1.bf16.msra.mxu0 %v2113
    %3442 = vmatprep.mubr.bf16.mxu0 %v2899
    %3443 = vmatmul.mubr.bf16.gmra.mrb[0].mxu0 %v2898
    %v3444 = vpop.f32.mrb[0].mxu0
    %v3445 = vadd.f32 0.0, %v3444
    %v3446 = vpop.f32.mrb[0].mxu0
    %v3447 = vpop.f32.mrb[0].mxu0
    %v3448 = vadd.f32 0.0, %v3447
    %v3449 = vpop.f32.mrb[0].mxu0
    %3450 = vmatprep.mubr.bf16.mxu0 %v2903
    %3451 = vmatmul.mubr.bf16.gmra.mrb[0].mxu0 %v2902
    %v3452 = vpop.f32.mrb[0].mxu0
    %v3453 = vadd.f32 0.0, %v3452
    %v3454 = vpop.f32.mrb[0].mxu0
    %v3455 = vpop.f32.mrb[0].mxu0
    %v3456 = vadd.f32 0.0, %v3455
    %v3457 = vpop.f32.mrb[0].mxu0
    %3458 = vmatprep.mubr.bf16.mxu0 %v2907
    %3459 = vmatmul.mubr.bf16.gmra.mrb[0].mxu0 %v2906
    %v3460 = vpop.f32.mrb[0].mxu0
    %v3461 = vadd.f32 0.0, %v3460
    %v3462 = vpop.f32.mrb[0].mxu0
    %v3463 = vpop.f32.mrb[0].mxu0
    %v3464 = vadd.f32 0.0, %v3463
    %v3465 = vpop.f32.mrb[0].mxu0
    %3466 = vmatprep.mubr.bf16.mxu0 %v2911
    %3467 = vmatmul.mubr.bf16.gmra.mrb[0].mxu0 %v2910
    %v3468 = vpop.f32.mrb[0].mxu0
    %v3469 = vadd.f32 0.0, %v3468
    %v3470 = vpop.f32.mrb[0].mxu0
    %v3471 = vpop.f32.mrb[0].mxu0
    %v3472 = vadd.f32 0.0, %v3471
    %v3473 = vpop.f32.mrb[0].mxu0
    %3474 = vmatprep.mubr.bf16.mxu0 %v2915
    %3475 = vmatmul.mubr.bf16.gmra.mrb[0].mxu0 %v2914
    %v3476 = vpop.f32.mrb[0].mxu0
    %v3477 = vadd.f32 0.0, %v3476
    %v3478 = vpop.f32.mrb[0].mxu0
    %v3479 = vpop.f32.mrb[0].mxu0
    %v3480 = vadd.f32 0.0, %v3479
    %v3481 = vpop.f32.mrb[0].mxu0
    %3482 = vmatprep.mubr.bf16.mxu0 %v2919
    %3483 = vmatmul.mubr.bf16.gmra.mrb[0].mxu0 %v2918
    %v3484 = vpop.f32.mrb[0].mxu0
    %v3485 = vadd.f32 0.0, %v3484
    %v3486 = vpop.f32.mrb[0].mxu0
    %v3487 = vpop.f32.mrb[0].mxu0
    %v3488 = vadd.f32 0.0, %v3487
    %v3489 = vpop.f32.mrb[0].mxu0
    %3490 = vmatprep.mubr.bf16.mxu0 %v2923
    %3491 = vmatmul.mubr.bf16.gmra.mrb[0].mxu0 %v2922
    %v3492 = vpop.f32.mrb[0].mxu0
    %v3493 = vadd.f32 0.0, %v3492
    %v3494 = vpop.f32.mrb[0].mxu0
    %v3495 = vpop.f32.mrb[0].mxu0
    %v3496 = vadd.f32 0.0, %v3495
    %v3497 = vpop.f32.mrb[0].mxu0
    %3498 = vmatprep.mubr.bf16.mxu0 %v2927
    %3499 = vmatmul.mubr.bf16.gmra.mrb[0].mxu0 %v2926
    %v3500 = vpop.f32.mrb[0].mxu0
    %v3501 = vadd.f32 0.0, %v3500
    %v3502 = vpop.f32.mrb[0].mxu0
    %v3503 = vpop.f32.mrb[0].mxu0
    %v3504 = vadd.f32 0.0, %v3503
    %v3505 = vpop.f32.mrb[0].mxu0
    %3506 = vmatprep.mubr.bf16.mxu0 %v2931
    %3507 = vmatmul.mubr.bf16.gmra.mrb[0].mxu0 %v2930
    %v3508 = vpop.f32.mrb[0].mxu0
    %v3509 = vadd.f32 0.0, %v3508
    %v3510 = vpop.f32.mrb[0].mxu0
    %v3511 = vpop.f32.mrb[0].mxu0
    %v3512 = vadd.f32 0.0, %v3511
    %v3513 = vpop.f32.mrb[0].mxu0
    %3514 = vmatprep.mubr.bf16.mxu0 %v2935
    %3515 = vmatmul.mubr.bf16.gmra.mrb[0].mxu0 %v2934
    %v3516 = vpop.f32.mrb[0].mxu0
    %v3517 = vadd.f32 0.0, %v3516
    %v3518 = vpop.f32.mrb[0].mxu0
    %v3519 = vpop.f32.mrb[0].mxu0
    %v3520 = vadd.f32 0.0, %v3519
    %v3521 = vpop.f32.mrb[0].mxu0
    %3522 = vmatprep.mubr.bf16.mxu0 %v2939
    %3523 = vmatmul.mubr.bf16.gmra.mrb[0].mxu0 %v2938
    %v3524 = vpop.f32.mrb[0].mxu0
    %v3525 = vadd.f32 0.0, %v3524
    %v3526 = vpop.f32.mrb[0].mxu0
    %v3527 = vpop.f32.mrb[0].mxu0
    %v3528 = vadd.f32 0.0, %v3527
    %v3529 = vpop.f32.mrb[0].mxu0
    %3530 = vmatprep.mubr.bf16.mxu0 %v2943
    %3531 = vmatmul.mubr.bf16.gmra.mrb[0].mxu0 %v2942
    %v3532 = vpop.f32.mrb[0].mxu0
    %v3533 = vadd.f32 0.0, %v3532
    %v3534 = vpop.f32.mrb[0].mxu0
    %v3535 = vpop.f32.mrb[0].mxu0
    %v3536 = vadd.f32 0.0, %v3535
    %v3537 = vpop.f32.mrb[0].mxu0
    %3538 = vmatprep.mubr.bf16.mxu0 %v2947
    %3539 = vmatmul.mubr.bf16.gmra.mrb[0].mxu0 %v2946
    %v3540 = vpop.f32.mrb[0].mxu0
    %v3541 = vadd.f32 0.0, %v3540
    %v3542 = vpop.f32.mrb[0].mxu0
    %v3543 = vpop.f32.mrb[0].mxu0
    %v3544 = vadd.f32 0.0, %v3543
    %v3545 = vpop.f32.mrb[0].mxu0
    %3546 = vmatprep.mubr.bf16.mxu0 %v2951
    %3547 = vmatmul.mubr.bf16.gmra.mrb[0].mxu0 %v2950
    %v3548 = vpop.f32.mrb[0].mxu0
    %v3549 = vadd.f32 0.0, %v3548
    %v3550 = vpop.f32.mrb[0].mxu0
    %v3551 = vpop.f32.mrb[0].mxu0
    %v3552 = vadd.f32 0.0, %v3551
    %v3553 = vpop.f32.mrb[0].mxu0
    %3554 = vmatprep.mubr.bf16.mxu0 %v2955
    %3555 = vmatmul.mubr.bf16.gmra.mrb[0].mxu0 %v2954
    %v3556 = vpop.f32.mrb[0].mxu0
    %v3557 = vadd.f32 0.0, %v3556
    %v3558 = vpop.f32.mrb[0].mxu0
    %v3559 = vpop.f32.mrb[0].mxu0
    %v3560 = vadd.f32 0.0, %v3559
    %v3561 = vpop.f32.mrb[0].mxu0
    %3562 = vmatprep.mubr.bf16.mxu0 %v2959
    %3563 = vmatmul.mubr.bf16.gmra.mrb[0].mxu0 %v2958
    %v3564 = vpop.f32.mrb[0].mxu0
    %v3565 = vadd.f32 0.0, %v3564
    %v3566 = vpop.f32.mrb[0].mxu0
    %v3567 = vpop.f32.mrb[0].mxu0
    %v3568 = vadd.f32 0.0, %v3567
    %v3569 = vpop.f32.mrb[0].mxu0
    %3570 = vmatprep.mubr.bf16.mxu0 %v2963
    %3571 = vmatmul.mubr.bf16.gmra.mrb[0].mxu0 %v2962
    %v3572 = vpop.f32.mrb[0].mxu0
    %v3573 = vadd.f32 0.0, %v3572
    %v3574 = vpop.f32.mrb[0].mxu0
    %v3575 = vpop.f32.mrb[0].mxu0
    %v3576 = vadd.f32 0.0, %v3575
    %v3577 = vpop.f32.mrb[0].mxu0
    %3578 = vmatprep.mubr.bf16.mxu0 %v2967
    %3579 = vmatmul.mubr.bf16.gmra.mrb[0].mxu0 %v2966
    %v3580 = vpop.f32.mrb[0].mxu0
    %v3581 = vadd.f32 0.0, %v3580
    %v3582 = vpop.f32.mrb[0].mxu0
    %v3583 = vpop.f32.mrb[0].mxu0
    %v3584 = vadd.f32 0.0, %v3583
    %v3585 = vpop.f32.mrb[0].mxu0
    %3586 = vmatprep.mubr.bf16.mxu0 %v2971
    %3587 = vmatmul.mubr.bf16.gmra.mrb[0].mxu0 %v2970
    %v3588 = vpop.f32.mrb[0].mxu0
    %v3589 = vadd.f32 0.0, %v3588
    %v3590 = vpop.f32.mrb[0].mxu0
    %v3591 = vpop.f32.mrb[0].mxu0
    %v3592 = vadd.f32 0.0, %v3591
    %v3593 = vpop.f32.mrb[0].mxu0
    %3594 = vmatprep.mubr.bf16.mxu0 %v2975
    %3595 = vmatmul.mubr.bf16.gmra.mrb[0].mxu0 %v2974
    %v3596 = vpop.f32.mrb[0].mxu0
    %v3597 = vadd.f32 0.0, %v3596
    %v3598 = vpop.f32.mrb[0].mxu0
    %v3599 = vpop.f32.mrb[0].mxu0
    %v3600 = vadd.f32 0.0, %v3599
    %v3601 = vpop.f32.mrb[0].mxu0
    %3602 = vmatprep.mubr.bf16.mxu0 %v2979
    %3603 = vmatmul.mubr.bf16.gmra.mrb[0].mxu0 %v2978
    %v3604 = vpop.f32.mrb[0].mxu0
    %v3605 = vadd.f32 0.0, %v3604
    %v3606 = vpop.f32.mrb[0].mxu0
    %v3607 = vpop.f32.mrb[0].mxu0
    %v3608 = vadd.f32 0.0, %v3607
    %v3609 = vpop.f32.mrb[0].mxu0
    %3610 = vmatprep.mubr.bf16.mxu0 %v2983
    %3611 = vmatmul.mubr.bf16.gmra.mrb[0].mxu0 %v2982
    %v3612 = vpop.f32.mrb[0].mxu0
    %v3613 = vadd.f32 0.0, %v3612
    %v3614 = vpop.f32.mrb[0].mxu0
    %v3615 = vpop.f32.mrb[0].mxu0
    %v3616 = vadd.f32 0.0, %v3615
    %v3617 = vpop.f32.mrb[0].mxu0
    %3618 = vmatprep.mubr.bf16.mxu0 %v2987
    %3619 = vmatmul.mubr.bf16.gmra.mrb[0].mxu0 %v2986
    %v3620 = vpop.f32.mrb[0].mxu0
    %v3621 = vadd.f32 0.0, %v3620
    %v3622 = vpop.f32.mrb[0].mxu0
    %v3623 = vpop.f32.mrb[0].mxu0
    %v3624 = vadd.f32 0.0, %v3623
    %v3625 = vpop.f32.mrb[0].mxu0
    %3626 = vmatprep.mubr.bf16.mxu0 %v2991
    %3627 = vmatmul.mubr.bf16.gmra.mrb[0].mxu0 %v2990
    %v3628 = vpop.f32.mrb[0].mxu0
    %v3629 = vadd.f32 0.0, %v3628
    %v3630 = vpop.f32.mrb[0].mxu0
    %v3631 = vpop.f32.mrb[0].mxu0
    %v3632 = vadd.f32 0.0, %v3631
    %v3633 = vpop.f32.mrb[0].mxu0
    %3634 = vmatprep.mubr.bf16.mxu0 %v2995
    %3635 = vmatmul.mubr.bf16.gmra.mrb[0].mxu0 %v2994
    %v3636 = vpop.f32.mrb[0].mxu0
    %v3637 = vadd.f32 0.0, %v3636
    %v3638 = vpop.f32.mrb[0].mxu0
    %v3639 = vpop.f32.mrb[0].mxu0
    %v3640 = vadd.f32 0.0, %v3639
    %v3641 = vpop.f32.mrb[0].mxu0
    %3642 = vmatprep.mubr.bf16.mxu0 %v2999
    %3643 = vmatmul.mubr.bf16.gmra.mrb[0].mxu0 %v2998
    %v3644 = vpop.f32.mrb[0].mxu0
    %v3645 = vadd.f32 0.0, %v3644
    %v3646 = vpop.f32.mrb[0].mxu0
    %v3647 = vpop.f32.mrb[0].mxu0
    %v3648 = vadd.f32 0.0, %v3647
    %v3649 = vpop.f32.mrb[0].mxu0
    %3650 = vmatprep.mubr.bf16.mxu0 %v3003
    %3651 = vmatmul.mubr.bf16.gmra.mrb[0].mxu0 %v3002
    %v3652 = vpop.f32.mrb[0].mxu0
    %v3653 = vadd.f32 0.0, %v3652
    %v3654 = vpop.f32.mrb[0].mxu0
    %v3655 = vpop.f32.mrb[0].mxu0
    %v3656 = vadd.f32 0.0, %v3655
    %v3657 = vpop.f32.mrb[0].mxu0
    %3658 = vmatprep.mubr.bf16.mxu0 %v3007
    %3659 = vmatmul.mubr.bf16.gmra.mrb[0].mxu0 %v3006
    %v3660 = vpop.f32.mrb[0].mxu0
    %v3661 = vadd.f32 0.0, %v3660
    %v3662 = vpop.f32.mrb[0].mxu0
    %v3663 = vpop.f32.mrb[0].mxu0
    %v3664 = vadd.f32 0.0, %v3663
    %v3665 = vpop.f32.mrb[0].mxu0
    %3666 = vmatprep.mubr.bf16.mxu0 %v3011
    %3667 = vmatmul.mubr.bf16.gmra.mrb[0].mxu0 %v3010
    %v3668 = vpop.f32.mrb[0].mxu0
    %v3669 = vadd.f32 0.0, %v3668
    %v3670 = vpop.f32.mrb[0].mxu0
    %v3671 = vpop.f32.mrb[0].mxu0
    %v3672 = vadd.f32 0.0, %v3671
    %v3673 = vpop.f32.mrb[0].mxu0
    %3674 = vmatprep.mubr.bf16.mxu0 %v3015
    %3675 = vmatmul.mubr.bf16.gmra.mrb[0].mxu0 %v3014
    %v3676 = vpop.f32.mrb[0].mxu0
    %v3677 = vadd.f32 0.0, %v3676
    %v3678 = vpop.f32.mrb[0].mxu0
    %v3679 = vpop.f32.mrb[0].mxu0
    %v3680 = vadd.f32 0.0, %v3679
    %v3681 = vpop.f32.mrb[0].mxu0
    %3682 = vmatprep.mubr.bf16.mxu0 %v3019
    %3683 = vmatmul.mubr.bf16.gmra.mrb[0].mxu0 %v3018
    %v3684 = vpop.f32.mrb[0].mxu0
    %v3685 = vadd.f32 0.0, %v3684
    %v3686 = vpop.f32.mrb[0].mxu0
    %v3687 = vpop.f32.mrb[0].mxu0
    %v3688 = vadd.f32 0.0, %v3687
    %v3689 = vpop.f32.mrb[0].mxu0
    %3690 = vmatprep.mubr.bf16.mxu0 %v3023
    %3691 = vmatmul.mubr.bf16.gmra.mrb[0].mxu0 %v3022
    %v3692 = vpop.f32.mrb[0].mxu0
    %v3693 = vadd.f32 0.0, %v3692
    %v3694 = vpop.f32.mrb[0].mxu0
    %v3695 = vpop.f32.mrb[0].mxu0
    %v3696 = vadd.f32 0.0, %v3695
    %v3697 = vpop.f32.mrb[0].mxu0
    %3698 = vmatprep.mubr.bf16.mxu0 %v3027
    %3699 = vmatmul.mubr.bf16.gmra.mrb[0].mxu0 %v3026
    %v3700 = vpop.f32.mrb[0].mxu0
    %v3701 = vadd.f32 0.0, %v3700
    %v3702 = vpop.f32.mrb[0].mxu0
    %v3703 = vpop.f32.mrb[0].mxu0
    %v3704 = vadd.f32 0.0, %v3703
    %v3705 = vpop.f32.mrb[0].mxu0
    %3706 = vmatprep.mubr.bf16.mxu0 %v3031
    %3707 = vmatmul.mubr.bf16.gmra.mrb[0].mxu0 %v3030
    %v3708 = vpop.f32.mrb[0].mxu0
    %v3709 = vadd.f32 0.0, %v3708
    %v3710 = vpop.f32.mrb[0].mxu0
    %v3711 = vpop.f32.mrb[0].mxu0
    %v3712 = vadd.f32 0.0, %v3711
    %v3713 = vpop.f32.mrb[0].mxu0
    %3714 = vmatprep.mubr.bf16.mxu0 %v3035
    %3715 = vmatmul.mubr.bf16.gmra.mrb[0].mxu0 %v3034
    %v3716 = vpop.f32.mrb[0].mxu0
    %v3717 = vadd.f32 0.0, %v3716
    %v3718 = vpop.f32.mrb[0].mxu0
    %v3719 = vpop.f32.mrb[0].mxu0
    %v3720 = vadd.f32 0.0, %v3719
    %v3721 = vpop.f32.mrb[0].mxu0
    %3722 = vmatprep.mubr.bf16.mxu0 %v3039
    %3723 = vmatmul.mubr.bf16.gmra.mrb[0].mxu0 %v3038
    %v3724 = vpop.f32.mrb[0].mxu0
    %v3725 = vadd.f32 0.0, %v3724
    %v3726 = vpop.f32.mrb[0].mxu0
    %v3727 = vpop.f32.mrb[0].mxu0
    %v3728 = vadd.f32 0.0, %v3727
    %v3729 = vpop.f32.mrb[0].mxu0
    %3730 = vmatprep.mubr.bf16.mxu0 %v3043
    %3731 = vmatmul.mubr.bf16.gmra.mrb[0].mxu0 %v3042
    %v3732 = vpop.f32.mrb[0].mxu0
    %v3733 = vadd.f32 0.0, %v3732
    %v3734 = vpop.f32.mrb[0].mxu0
    %v3735 = vpop.f32.mrb[0].mxu0
    %v3736 = vadd.f32 0.0, %v3735
    %v3737 = vpop.f32.mrb[0].mxu0
    %3738 = vmatprep.mubr.bf16.mxu0 %v3047
    %3739 = vmatmul.mubr.bf16.gmra.mrb[0].mxu0 %v3046
    %v3740 = vpop.f32.mrb[0].mxu0
    %v3741 = vadd.f32 0.0, %v3740
    %v3742 = vpop.f32.mrb[0].mxu0
    %v3743 = vpop.f32.mrb[0].mxu0
    %v3744 = vadd.f32 0.0, %v3743
    %v3745 = vpop.f32.mrb[0].mxu0
    %3746 = vmatprep.mubr.bf16.mxu0 %v3051
    %3747 = vmatmul.mubr.bf16.gmra.mrb[0].mxu0 %v3050
    %v3748 = vpop.f32.mrb[0].mxu0
    %v3749 = vadd.f32 0.0, %v3748
    %v3750 = vpop.f32.mrb[0].mxu0
    %v3751 = vpop.f32.mrb[0].mxu0
    %v3752 = vadd.f32 0.0, %v3751
    %v3753 = vpop.f32.mrb[0].mxu0
    %3754 = vmatprep.mubr.bf16.mxu0 %v3055
    %3755 = vmatmul.mubr.bf16.gmra.mrb[0].mxu0 %v3054
    %v3756 = vpop.f32.mrb[0].mxu0
    %v3757 = vadd.f32 0.0, %v3756
    %v3758 = vpop.f32.mrb[0].mxu0
    %v3759 = vpop.f32.mrb[0].mxu0
    %v3760 = vadd.f32 0.0, %v3759
    %v3761 = vpop.f32.mrb[0].mxu0
    %3762 = vmatprep.mubr.bf16.mxu0 %v3059
    %3763 = vmatmul.mubr.bf16.gmra.mrb[0].mxu0 %v3058
    %v3764 = vpop.f32.mrb[0].mxu0
    %v3765 = vadd.f32 0.0, %v3764
    %v3766 = vpop.f32.mrb[0].mxu0
    %v3767 = vpop.f32.mrb[0].mxu0
    %v3768 = vadd.f32 0.0, %v3767
    %v3769 = vpop.f32.mrb[0].mxu0
    %3770 = vmatprep.mubr.bf16.mxu0 %v3063
    %3771 = vmatmul.mubr.bf16.gmra.mrb[0].mxu0 %v3062
    %v3772 = vpop.f32.mrb[0].mxu0
    %v3773 = vadd.f32 0.0, %v3772
    %v3774 = vpop.f32.mrb[0].mxu0
    %v3775 = vpop.f32.mrb[0].mxu0
    %v3776 = vadd.f32 0.0, %v3775
    %v3777 = vpop.f32.mrb[0].mxu0
    %3778 = vmatprep.mubr.bf16.mxu0 %v3067
    %3779 = vmatmul.mubr.bf16.gmra.mrb[0].mxu0 %v3066
    %v3780 = vpop.f32.mrb[0].mxu0
    %v3781 = vadd.f32 0.0, %v3780
    %v3782 = vpop.f32.mrb[0].mxu0
    %v3783 = vpop.f32.mrb[0].mxu0
    %v3784 = vadd.f32 0.0, %v3783
    %v3785 = vpop.f32.mrb[0].mxu0
    %3786 = vmatprep.mubr.bf16.mxu0 %v3071
    %3787 = vmatmul.mubr.bf16.gmra.mrb[0].mxu0 %v3070
    %v3788 = vpop.f32.mrb[0].mxu0
    %v3789 = vadd.f32 0.0, %v3788
    %v3790 = vpop.f32.mrb[0].mxu0
    %v3791 = vpop.f32.mrb[0].mxu0
    %v3792 = vadd.f32 0.0, %v3791
    %v3793 = vpop.f32.mrb[0].mxu0
    %3794 = vmatprep.mubr.bf16.mxu0 %v3075
    %3795 = vmatmul.mubr.bf16.gmra.mrb[0].mxu0 %v3074
    %v3796 = vpop.f32.mrb[0].mxu0
    %v3797 = vadd.f32 0.0, %v3796
    %v3798 = vpop.f32.mrb[0].mxu0
    %v3799 = vpop.f32.mrb[0].mxu0
    %v3800 = vadd.f32 0.0, %v3799
    %v3801 = vpop.f32.mrb[0].mxu0
    %3802 = vmatprep.mubr.bf16.mxu0 %v3079
    %3803 = vmatmul.mubr.bf16.gmra.mrb[0].mxu0 %v3078
    %v3804 = vpop.f32.mrb[0].mxu0
    %v3805 = vadd.f32 0.0, %v3804
    %v3806 = vpop.f32.mrb[0].mxu0
    %v3807 = vpop.f32.mrb[0].mxu0
    %v3808 = vadd.f32 0.0, %v3807
    %v3809 = vpop.f32.mrb[0].mxu0
    %3810 = vmatprep.mubr.bf16.mxu0 %v3083
    %3811 = vmatmul.mubr.bf16.gmra.mrb[0].mxu0 %v3082
    %v3812 = vpop.f32.mrb[0].mxu0
    %v3813 = vadd.f32 0.0, %v3812
    %v3814 = vpop.f32.mrb[0].mxu0
    %v3815 = vpop.f32.mrb[0].mxu0
    %v3816 = vadd.f32 0.0, %v3815
    %v3817 = vpop.f32.mrb[0].mxu0
    %3818 = vmatprep.mubr.bf16.mxu0 %v3087
    %3819 = vmatmul.mubr.bf16.gmra.mrb[0].mxu0 %v3086
    %v3820 = vpop.f32.mrb[0].mxu0
    %v3821 = vadd.f32 0.0, %v3820
    %v3822 = vpop.f32.mrb[0].mxu0
    %v3823 = vpop.f32.mrb[0].mxu0
    %v3824 = vadd.f32 0.0, %v3823
    %v3825 = vpop.f32.mrb[0].mxu0
    %3826 = vmatprep.mubr.bf16.mxu0 %v3091
    %3827 = vmatmul.mubr.bf16.gmra.mrb[0].mxu0 %v3090
    %v3828 = vpop.f32.mrb[0].mxu0
    %v3829 = vadd.f32 0.0, %v3828
    %v3830 = vpop.f32.mrb[0].mxu0
    %v3831 = vpop.f32.mrb[0].mxu0
    %v3832 = vadd.f32 0.0, %v3831
    %v3833 = vpop.f32.mrb[0].mxu0
    %3834 = vmatprep.mubr.bf16.mxu0 %v3095
    %3835 = vmatmul.mubr.bf16.gmra.mrb[0].mxu0 %v3094
    %v3836 = vpop.f32.mrb[0].mxu0
    %v3837 = vadd.f32 0.0, %v3836
    %v3838 = vpop.f32.mrb[0].mxu0
    %v3839 = vpop.f32.mrb[0].mxu0
    %v3840 = vadd.f32 0.0, %v3839
    %v3841 = vpop.f32.mrb[0].mxu0
    %3842 = vmatprep.mubr.bf16.mxu0 %v3099
    %3843 = vmatmul.mubr.bf16.gmra.mrb[0].mxu0 %v3098
    %v3844 = vpop.f32.mrb[0].mxu0
    %v3845 = vadd.f32 0.0, %v3844
    %v3846 = vpop.f32.mrb[0].mxu0
    %v3847 = vpop.f32.mrb[0].mxu0
    %v3848 = vadd.f32 0.0, %v3847
    %v3849 = vpop.f32.mrb[0].mxu0
    %3850 = vmatprep.mubr.bf16.mxu0 %v3103
    %3851 = vmatmul.mubr.bf16.gmra.mrb[0].mxu0 %v3102
    %v3852 = vpop.f32.mrb[0].mxu0
    %v3853 = vadd.f32 0.0, %v3852
    %v3854 = vpop.f32.mrb[0].mxu0
    %v3855 = vpop.f32.mrb[0].mxu0
    %v3856 = vadd.f32 0.0, %v3855
    %v3857 = vpop.f32.mrb[0].mxu0
    %3858 = vmatprep.mubr.bf16.mxu0 %v3107
    %3859 = vmatmul.mubr.bf16.gmra.mrb[0].mxu0 %v3106
    %v3860 = vpop.f32.mrb[0].mxu0
    %v3861 = vadd.f32 0.0, %v3860
    %v3862 = vpop.f32.mrb[0].mxu0
    %v3863 = vpop.f32.mrb[0].mxu0
    %v3864 = vadd.f32 0.0, %v3863
    %v3865 = vpop.f32.mrb[0].mxu0
    %3866 = vmatprep.mubr.bf16.mxu0 %v3111
    %3867 = vmatmul.mubr.bf16.gmra.mrb[0].mxu0 %v3110
    %v3868 = vpop.f32.mrb[0].mxu0
    %v3869 = vadd.f32 0.0, %v3868
    %v3870 = vpop.f32.mrb[0].mxu0
    %v3871 = vpop.f32.mrb[0].mxu0
    %v3872 = vadd.f32 0.0, %v3871
    %v3873 = vpop.f32.mrb[0].mxu0
    %3874 = vmatprep.mubr.bf16.mxu0 %v3115
    %3875 = vmatmul.mubr.bf16.gmra.mrb[0].mxu0 %v3114
    %v3876 = vpop.f32.mrb[0].mxu0
    %v3877 = vadd.f32 0.0, %v3876
    %v3878 = vpop.f32.mrb[0].mxu0
    %v3879 = vpop.f32.mrb[0].mxu0
    %v3880 = vadd.f32 0.0, %v3879
    %v3881 = vpop.f32.mrb[0].mxu0
    %3882 = vmatprep.mubr.bf16.mxu0 %v3119
    %3883 = vmatmul.mubr.bf16.gmra.mrb[0].mxu0 %v3118
    %v3884 = vpop.f32.mrb[0].mxu0
    %v3885 = vadd.f32 0.0, %v3884
    %v3886 = vpop.f32.mrb[0].mxu0
    %v3887 = vpop.f32.mrb[0].mxu0
    %v3888 = vadd.f32 0.0, %v3887
    %v3889 = vpop.f32.mrb[0].mxu0
    %3890 = vmatprep.mubr.bf16.mxu0 %v3123
    %3891 = vmatmul.mubr.bf16.gmra.mrb[0].mxu0 %v3122
    %v3892 = vpop.f32.mrb[0].mxu0
    %v3893 = vadd.f32 0.0, %v3892
    %v3894 = vpop.f32.mrb[0].mxu0
    %v3895 = vpop.f32.mrb[0].mxu0
    %v3896 = vadd.f32 0.0, %v3895
    %v3897 = vpop.f32.mrb[0].mxu0
    %3898 = vmatprep.mubr.bf16.mxu0 %v3127
    %3899 = vmatmul.mubr.bf16.gmra.mrb[0].mxu0 %v3126
    %v3900 = vpop.f32.mrb[0].mxu0
    %v3901 = vadd.f32 0.0, %v3900
    %v3902 = vpop.f32.mrb[0].mxu0
    %v3903 = vpop.f32.mrb[0].mxu0
    %v3904 = vadd.f32 0.0, %v3903
    %v3905 = vpop.f32.mrb[0].mxu0
    %3906 = vmatprep.mubr.bf16.mxu0 %v3131
    %3907 = vmatmul.mubr.bf16.gmra.mrb[0].mxu0 %v3130
    %v3908 = vpop.f32.mrb[0].mxu0
    %v3909 = vadd.f32 0.0, %v3908
    %v3910 = vpop.f32.mrb[0].mxu0
    %v3911 = vpop.f32.mrb[0].mxu0
    %v3912 = vadd.f32 0.0, %v3911
    %v3913 = vpop.f32.mrb[0].mxu0
    %3914 = vmatprep.mubr.bf16.mxu0 %v3135
    %3915 = vmatmul.mubr.bf16.gmra.mrb[0].mxu0 %v3134
    %v3916 = vpop.f32.mrb[0].mxu0
    %v3917 = vadd.f32 0.0, %v3916
    %v3918 = vpop.f32.mrb[0].mxu0
    %v3919 = vpop.f32.mrb[0].mxu0
    %v3920 = vadd.f32 0.0, %v3919
    %v3921 = vpop.f32.mrb[0].mxu0
    %3922 = vmatprep.mubr.bf16.mxu0 %v3139
    %3923 = vmatmul.mubr.bf16.gmra.mrb[0].mxu0 %v3138
    %v3924 = vpop.f32.mrb[0].mxu0
    %v3925 = vadd.f32 0.0, %v3924
    %v3926 = vpop.f32.mrb[0].mxu0
    %v3927 = vpop.f32.mrb[0].mxu0
    %v3928 = vadd.f32 0.0, %v3927
    %v3929 = vpop.f32.mrb[0].mxu0
    %3930 = vmatprep.mubr.bf16.mxu0 %v3143
    %3931 = vmatmul.mubr.bf16.gmra.mrb[0].mxu0 %v3142
    %v3932 = vpop.f32.mrb[0].mxu0
    %v3933 = vadd.f32 0.0, %v3932
    %v3934 = vpop.f32.mrb[0].mxu0
    %v3935 = vpop.f32.mrb[0].mxu0
    %v3936 = vadd.f32 0.0, %v3935
    %v3937 = vpop.f32.mrb[0].mxu0
    %3938 = vmatprep.mubr.bf16.mxu0 %v3147
    %3939 = vmatmul.mubr.bf16.gmra.mrb[0].mxu0 %v3146
    %v3940 = vpop.f32.mrb[0].mxu0
    %v3941 = vadd.f32 0.0, %v3940
    %v3942 = vpop.f32.mrb[0].mxu0
    %v3943 = vpop.f32.mrb[0].mxu0
    %v3944 = vadd.f32 0.0, %v3943
    %v3945 = vpop.f32.mrb[0].mxu0
    %3946 = vmatprep.mubr.bf16.mxu0 %v3151
    %3947 = vmatmul.mubr.bf16.gmra.mrb[0].mxu0 %v3150
    %v3948 = vpop.f32.mrb[0].mxu0
    %v3949 = vadd.f32 0.0, %v3948
    %v3950 = vpop.f32.mrb[0].mxu0
    %v3951 = vpop.f32.mrb[0].mxu0
    %v3952 = vadd.f32 0.0, %v3951
    %v3953 = vpop.f32.mrb[0].mxu0
    %3954 = vdwg.mxu0
    %3955 = vmatprep.subr.bf16.mxu0 0
    %3956 = vmatpush1.bf16.msra.mxu0 %v2114
    %3957 = vmatprep.subr.bf16.mxu0 0
    %3958 = vmatpush1.bf16.msra.mxu0 %v2115
    %3959 = vmatprep.subr.bf16.mxu0 0
    %3960 = vmatpush1.bf16.msra.mxu0 %v2116
    %3961 = vmatprep.subr.bf16.mxu0 0
    %3962 = vmatpush1.bf16.msra.mxu0 %v2117
    %3963 = vmatprep.subr.bf16.mxu0 0
    %3964 = vmatpush1.bf16.msra.mxu0 %v2118
    %3965 = vmatprep.subr.bf16.mxu0 0
    %3966 = vmatpush1.bf16.msra.mxu0 %v2119
    %3967 = vmatprep.subr.bf16.mxu0 0
    %3968 = vmatpush1.bf16.msra.mxu0 %v2120
    %3969 = vmatprep.subr.bf16.mxu0 0
    %3970 = vmatpush1.bf16.msra.mxu0 %v2121
    %3971 = vmatprep.subr.bf16.mxu0 0
    %3972 = vmatpush1.bf16.msra.mxu0 %v2122
    %3973 = vmatprep.subr.bf16.mxu0 0
    %3974 = vmatpush1.bf16.msra.mxu0 %v2123
    %3975 = vmatprep.subr.bf16.mxu0 0
    %3976 = vmatpush1.bf16.msra.mxu0 %v2124
    %3977 = vmatprep.subr.bf16.mxu0 0
    %3978 = vmatpush1.bf16.msra.mxu0 %v2125
    %3979 = vmatprep.subr.bf16.mxu0 0
    %3980 = vmatpush1.bf16.msra.mxu0 %v2126
    %3981 = vmatprep.subr.bf16.mxu0 0
    %3982 = vmatpush1.bf16.msra.mxu0 %v2127
    %3983 = vmatprep.subr.bf16.mxu0 0
    %3984 = vmatpush1.bf16.msra.mxu0 %v2128
    %3985 = vmatprep.subr.bf16.mxu0 0
    %3986 = vmatpush1.bf16.msra.mxu0 %v2129
    %3987 = vmatprep.mubr.bf16.mxu0 %v2901
    %3988 = vmatmul.mubr.bf16.gmra.mrb[0].mxu0 %v2900
    %v3989 = vpop.f32.mrb[0].mxu0
    %v3990 = vadd.f32 %v3445, %v3989
    %v3991 = vpop.f32.mrb[0].mxu0
    %v3992 = vpop.f32.mrb[0].mxu0
    %v3993 = vadd.f32 %v3448, %v3992
    %v3994 = vpop.f32.mrb[0].mxu0
    %3995 = vmatprep.mubr.bf16.mxu0 %v2905
    %3996 = vmatmul.mubr.bf16.gmra.mrb[0].mxu0 %v2904
    %v3997 = vpop.f32.mrb[0].mxu0
    %v3998 = vadd.f32 %v3453, %v3997
    %v3999 = vpop.f32.mrb[0].mxu0
    %v4000 = vpop.f32.mrb[0].mxu0
    %v4001 = vadd.f32 %v3456, %v4000
    %v4002 = vpop.f32.mrb[0].mxu0
    %4003 = vmatprep.mubr.bf16.mxu0 %v2909
    %4004 = vmatmul.mubr.bf16.gmra.mrb[0].mxu0 %v2908
    %v4005 = vpop.f32.mrb[0].mxu0
    %v4006 = vadd.f32 %v3461, %v4005
    %v4007 = vpop.f32.mrb[0].mxu0
    %v4008 = vpop.f32.mrb[0].mxu0
    %v4009 = vadd.f32 %v3464, %v4008
    %v4010 = vpop.f32.mrb[0].mxu0
    %4011 = vmatprep.mubr.bf16.mxu0 %v2913
    %4012 = vmatmul.mubr.bf16.gmra.mrb[0].mxu0 %v2912
    %v4013 = vpop.f32.mrb[0].mxu0
    %v4014 = vadd.f32 %v3469, %v4013
    %v4015 = vpop.f32.mrb[0].mxu0
    %v4016 = vpop.f32.mrb[0].mxu0
    %v4017 = vadd.f32 %v3472, %v4016
    %v4018 = vpop.f32.mrb[0].mxu0
    %4019 = vmatprep.mubr.bf16.mxu0 %v2917
    %4020 = vmatmul.mubr.bf16.gmra.mrb[0].mxu0 %v2916
    %v4021 = vpop.f32.mrb[0].mxu0
    %v4022 = vadd.f32 %v3477, %v4021
    %v4023 = vpop.f32.mrb[0].mxu0
    %v4024 = vpop.f32.mrb[0].mxu0
    %v4025 = vadd.f32 %v3480, %v4024
    %v4026 = vpop.f32.mrb[0].mxu0
    %4027 = vmatprep.mubr.bf16.mxu0 %v2921
    %4028 = vmatmul.mubr.bf16.gmra.mrb[0].mxu0 %v2920
    %v4029 = vpop.f32.mrb[0].mxu0
    %v4030 = vadd.f32 %v3485, %v4029
    %v4031 = vpop.f32.mrb[0].mxu0
    %v4032 = vpop.f32.mrb[0].mxu0
    %v4033 = vadd.f32 %v3488, %v4032
    %v4034 = vpop.f32.mrb[0].mxu0
    %4035 = vmatprep.mubr.bf16.mxu0 %v2925
    %4036 = vmatmul.mubr.bf16.gmra.mrb[0].mxu0 %v2924
    %v4037 = vpop.f32.mrb[0].mxu0
    %v4038 = vadd.f32 %v3493, %v4037
    %v4039 = vpop.f32.mrb[0].mxu0
    %v4040 = vpop.f32.mrb[0].mxu0
    %v4041 = vadd.f32 %v3496, %v4040
    %v4042 = vpop.f32.mrb[0].mxu0
    %4043 = vmatprep.mubr.bf16.mxu0 %v2929
    %4044 = vmatmul.mubr.bf16.gmra.mrb[0].mxu0 %v2928
    %v4045 = vpop.f32.mrb[0].mxu0
    %v4046 = vadd.f32 %v3501, %v4045
    %v4047 = vpop.f32.mrb[0].mxu0
    %v4048 = vpop.f32.mrb[0].mxu0
    %v4049 = vadd.f32 %v3504, %v4048
    %v4050 = vpop.f32.mrb[0].mxu0
    %4051 = vmatprep.mubr.bf16.mxu0 %v2933
    %4052 = vmatmul.mubr.bf16.gmra.mrb[0].mxu0 %v2932
    %v4053 = vpop.f32.mrb[0].mxu0
    %v4054 = vadd.f32 %v3509, %v4053
    %v4055 = vpop.f32.mrb[0].mxu0
    %v4056 = vpop.f32.mrb[0].mxu0
    %v4057 = vadd.f32 %v3512, %v4056
    %v4058 = vpop.f32.mrb[0].mxu0
    %4059 = vmatprep.mubr.bf16.mxu0 %v2937
    %4060 = vmatmul.mubr.bf16.gmra.mrb[0].mxu0 %v2936
    %v4061 = vpop.f32.mrb[0].mxu0
    %v4062 = vadd.f32 %v3517, %v4061
    %v4063 = vpop.f32.mrb[0].mxu0
    %v4064 = vpop.f32.mrb[0].mxu0
    %v4065 = vadd.f32 %v3520, %v4064
    %v4066 = vpop.f32.mrb[0].mxu0
    %4067 = vmatprep.mubr.bf16.mxu0 %v2941
    %4068 = vmatmul.mubr.bf16.gmra.mrb[0].mxu0 %v2940
    %v4069 = vpop.f32.mrb[0].mxu0
    %v4070 = vadd.f32 %v3525, %v4069
    %v4071 = vpop.f32.mrb[0].mxu0
    %v4072 = vpop.f32.mrb[0].mxu0
    %v4073 = vadd.f32 %v3528, %v4072
    %v4074 = vpop.f32.mrb[0].mxu0
    %4075 = vmatprep.mubr.bf16.mxu0 %v2945
    %4076 = vmatmul.mubr.bf16.gmra.mrb[0].mxu0 %v2944
    %v4077 = vpop.f32.mrb[0].mxu0
    %v4078 = vadd.f32 %v3533, %v4077
    %v4079 = vpop.f32.mrb[0].mxu0
    %v4080 = vpop.f32.mrb[0].mxu0
    %v4081 = vadd.f32 %v3536, %v4080
    %v4082 = vpop.f32.mrb[0].mxu0
    %4083 = vmatprep.mubr.bf16.mxu0 %v2949
    %4084 = vmatmul.mubr.bf16.gmra.mrb[0].mxu0 %v2948
    %v4085 = vpop.f32.mrb[0].mxu0
    %v4086 = vadd.f32 %v3541, %v4085
    %v4087 = vpop.f32.mrb[0].mxu0
    %v4088 = vpop.f32.mrb[0].mxu0
    %v4089 = vadd.f32 %v3544, %v4088
    %v4090 = vpop.f32.mrb[0].mxu0
    %4091 = vmatprep.mubr.bf16.mxu0 %v2953
    %4092 = vmatmul.mubr.bf16.gmra.mrb[0].mxu0 %v2952
    %v4093 = vpop.f32.mrb[0].mxu0
    %v4094 = vadd.f32 %v3549, %v4093
    %v4095 = vpop.f32.mrb[0].mxu0
    %v4096 = vpop.f32.mrb[0].mxu0
    %v4097 = vadd.f32 %v3552, %v4096
    %v4098 = vpop.f32.mrb[0].mxu0
    %4099 = vmatprep.mubr.bf16.mxu0 %v2957
    %4100 = vmatmul.mubr.bf16.gmra.mrb[0].mxu0 %v2956
    %v4101 = vpop.f32.mrb[0].mxu0
    %v4102 = vadd.f32 %v3557, %v4101
    %v4103 = vpop.f32.mrb[0].mxu0
    %v4104 = vpop.f32.mrb[0].mxu0
    %v4105 = vadd.f32 %v3560, %v4104
    %v4106 = vpop.f32.mrb[0].mxu0
    %4107 = vmatprep.mubr.bf16.mxu0 %v2961
    %4108 = vmatmul.mubr.bf16.gmra.mrb[0].mxu0 %v2960
    %v4109 = vpop.f32.mrb[0].mxu0
    %v4110 = vadd.f32 %v3565, %v4109
    %v4111 = vpop.f32.mrb[0].mxu0
    %v4112 = vpop.f32.mrb[0].mxu0
    %v4113 = vadd.f32 %v3568, %v4112
    %v4114 = vpop.f32.mrb[0].mxu0
    %4115 = vmatprep.mubr.bf16.mxu0 %v2965
    %4116 = vmatmul.mubr.bf16.gmra.mrb[0].mxu0 %v2964
    %v4117 = vpop.f32.mrb[0].mxu0
    %v4118 = vadd.f32 %v3573, %v4117
    %v4119 = vpop.f32.mrb[0].mxu0
    %v4120 = vpop.f32.mrb[0].mxu0
    %v4121 = vadd.f32 %v3576, %v4120
    %v4122 = vpop.f32.mrb[0].mxu0
    %4123 = vmatprep.mubr.bf16.mxu0 %v2969
    %4124 = vmatmul.mubr.bf16.gmra.mrb[0].mxu0 %v2968
    %v4125 = vpop.f32.mrb[0].mxu0
    %v4126 = vadd.f32 %v3581, %v4125
    %v4127 = vpop.f32.mrb[0].mxu0
    %v4128 = vpop.f32.mrb[0].mxu0
    %v4129 = vadd.f32 %v3584, %v4128
    %v4130 = vpop.f32.mrb[0].mxu0
    %4131 = vmatprep.mubr.bf16.mxu0 %v2973
    %4132 = vmatmul.mubr.bf16.gmra.mrb[0].mxu0 %v2972
    %v4133 = vpop.f32.mrb[0].mxu0
    %v4134 = vadd.f32 %v3589, %v4133
    %v4135 = vpop.f32.mrb[0].mxu0
    %v4136 = vpop.f32.mrb[0].mxu0
    %v4137 = vadd.f32 %v3592, %v4136
    %v4138 = vpop.f32.mrb[0].mxu0
    %4139 = vmatprep.mubr.bf16.mxu0 %v2977
    %4140 = vmatmul.mubr.bf16.gmra.mrb[0].mxu0 %v2976
    %v4141 = vpop.f32.mrb[0].mxu0
    %v4142 = vadd.f32 %v3597, %v4141
    %v4143 = vpop.f32.mrb[0].mxu0
    %v4144 = vpop.f32.mrb[0].mxu0
    %v4145 = vadd.f32 %v3600, %v4144
    %v4146 = vpop.f32.mrb[0].mxu0
    %4147 = vmatprep.mubr.bf16.mxu0 %v2981
    %4148 = vmatmul.mubr.bf16.gmra.mrb[0].mxu0 %v2980
    %v4149 = vpop.f32.mrb[0].mxu0
    %v4150 = vadd.f32 %v3605, %v4149
    %v4151 = vpop.f32.mrb[0].mxu0
    %v4152 = vpop.f32.mrb[0].mxu0
    %v4153 = vadd.f32 %v3608, %v4152
    %v4154 = vpop.f32.mrb[0].mxu0
    %4155 = vmatprep.mubr.bf16.mxu0 %v2985
    %4156 = vmatmul.mubr.bf16.gmra.mrb[0].mxu0 %v2984
    %v4157 = vpop.f32.mrb[0].mxu0
    %v4158 = vadd.f32 %v3613, %v4157
    %v4159 = vpop.f32.mrb[0].mxu0
    %v4160 = vpop.f32.mrb[0].mxu0
    %v4161 = vadd.f32 %v3616, %v4160
    %v4162 = vpop.f32.mrb[0].mxu0
    %4163 = vmatprep.mubr.bf16.mxu0 %v2989
    %4164 = vmatmul.mubr.bf16.gmra.mrb[0].mxu0 %v2988
    %v4165 = vpop.f32.mrb[0].mxu0
    %v4166 = vadd.f32 %v3621, %v4165
    %v4167 = vpop.f32.mrb[0].mxu0
    %v4168 = vpop.f32.mrb[0].mxu0
    %v4169 = vadd.f32 %v3624, %v4168
    %v4170 = vpop.f32.mrb[0].mxu0
    %4171 = vmatprep.mubr.bf16.mxu0 %v2993
    %4172 = vmatmul.mubr.bf16.gmra.mrb[0].mxu0 %v2992
    %v4173 = vpop.f32.mrb[0].mxu0
    %v4174 = vadd.f32 %v3629, %v4173
    %v4175 = vpop.f32.mrb[0].mxu0
    %v4176 = vpop.f32.mrb[0].mxu0
    %v4177 = vadd.f32 %v3632, %v4176
    %v4178 = vpop.f32.mrb[0].mxu0
    %4179 = vmatprep.mubr.bf16.mxu0 %v2997
    %4180 = vmatmul.mubr.bf16.gmra.mrb[0].mxu0 %v2996
    %v4181 = vpop.f32.mrb[0].mxu0
    %v4182 = vadd.f32 %v3637, %v4181
    %v4183 = vpop.f32.mrb[0].mxu0
    %v4184 = vpop.f32.mrb[0].mxu0
    %v4185 = vadd.f32 %v3640, %v4184
    %v4186 = vpop.f32.mrb[0].mxu0
    %4187 = vmatprep.mubr.bf16.mxu0 %v3001
    %4188 = vmatmul.mubr.bf16.gmra.mrb[0].mxu0 %v3000
    %v4189 = vpop.f32.mrb[0].mxu0
    %v4190 = vadd.f32 %v3645, %v4189
    %v4191 = vpop.f32.mrb[0].mxu0
    %v4192 = vpop.f32.mrb[0].mxu0
    %v4193 = vadd.f32 %v3648, %v4192
    %v4194 = vpop.f32.mrb[0].mxu0
    %4195 = vmatprep.mubr.bf16.mxu0 %v3005
    %4196 = vmatmul.mubr.bf16.gmra.mrb[0].mxu0 %v3004
    %v4197 = vpop.f32.mrb[0].mxu0
    %v4198 = vadd.f32 %v3653, %v4197
    %v4199 = vpop.f32.mrb[0].mxu0
    %v4200 = vpop.f32.mrb[0].mxu0
    %v4201 = vadd.f32 %v3656, %v4200
    %v4202 = vpop.f32.mrb[0].mxu0
    %4203 = vmatprep.mubr.bf16.mxu0 %v3009
    %4204 = vmatmul.mubr.bf16.gmra.mrb[0].mxu0 %v3008
    %v4205 = vpop.f32.mrb[0].mxu0
    %v4206 = vadd.f32 %v3661, %v4205
    %v4207 = vpop.f32.mrb[0].mxu0
    %v4208 = vpop.f32.mrb[0].mxu0
    %v4209 = vadd.f32 %v3664, %v4208
    %v4210 = vpop.f32.mrb[0].mxu0
    %4211 = vmatprep.mubr.bf16.mxu0 %v3013
    %4212 = vmatmul.mubr.bf16.gmra.mrb[0].mxu0 %v3012
    %v4213 = vpop.f32.mrb[0].mxu0
    %v4214 = vadd.f32 %v3669, %v4213
    %v4215 = vpop.f32.mrb[0].mxu0
    %v4216 = vpop.f32.mrb[0].mxu0
    %v4217 = vadd.f32 %v3672, %v4216
    %v4218 = vpop.f32.mrb[0].mxu0
    %4219 = vmatprep.mubr.bf16.mxu0 %v3017
    %4220 = vmatmul.mubr.bf16.gmra.mrb[0].mxu0 %v3016
    %v4221 = vpop.f32.mrb[0].mxu0
    %v4222 = vadd.f32 %v3677, %v4221
    %v4223 = vpop.f32.mrb[0].mxu0
    %v4224 = vpop.f32.mrb[0].mxu0
    %v4225 = vadd.f32 %v3680, %v4224
    %v4226 = vpop.f32.mrb[0].mxu0
    %4227 = vmatprep.mubr.bf16.mxu0 %v3021
    %4228 = vmatmul.mubr.bf16.gmra.mrb[0].mxu0 %v3020
    %v4229 = vpop.f32.mrb[0].mxu0
    %v4230 = vadd.f32 %v3685, %v4229
    %v4231 = vpop.f32.mrb[0].mxu0
    %v4232 = vpop.f32.mrb[0].mxu0
    %v4233 = vadd.f32 %v3688, %v4232
    %v4234 = vpop.f32.mrb[0].mxu0
    %4235 = vmatprep.mubr.bf16.mxu0 %v3025
    %4236 = vmatmul.mubr.bf16.gmra.mrb[0].mxu0 %v3024
    %v4237 = vpop.f32.mrb[0].mxu0
    %v4238 = vadd.f32 %v3693, %v4237
    %v4239 = vpop.f32.mrb[0].mxu0
    %v4240 = vpop.f32.mrb[0].mxu0
    %v4241 = vadd.f32 %v3696, %v4240
    %v4242 = vpop.f32.mrb[0].mxu0
    %4243 = vmatprep.mubr.bf16.mxu0 %v3029
    %4244 = vmatmul.mubr.bf16.gmra.mrb[0].mxu0 %v3028
    %v4245 = vpop.f32.mrb[0].mxu0
    %v4246 = vadd.f32 %v3701, %v4245
    %v4247 = vpop.f32.mrb[0].mxu0
    %v4248 = vpop.f32.mrb[0].mxu0
    %v4249 = vadd.f32 %v3704, %v4248
    %v4250 = vpop.f32.mrb[0].mxu0
    %4251 = vmatprep.mubr.bf16.mxu0 %v3033
    %4252 = vmatmul.mubr.bf16.gmra.mrb[0].mxu0 %v3032
    %v4253 = vpop.f32.mrb[0].mxu0
    %v4254 = vadd.f32 %v3709, %v4253
    %v4255 = vpop.f32.mrb[0].mxu0
    %v4256 = vpop.f32.mrb[0].mxu0
    %v4257 = vadd.f32 %v3712, %v4256
    %v4258 = vpop.f32.mrb[0].mxu0
    %4259 = vmatprep.mubr.bf16.mxu0 %v3037
    %4260 = vmatmul.mubr.bf16.gmra.mrb[0].mxu0 %v3036
    %v4261 = vpop.f32.mrb[0].mxu0
    %v4262 = vadd.f32 %v3717, %v4261
    %v4263 = vpop.f32.mrb[0].mxu0
    %v4264 = vpop.f32.mrb[0].mxu0
    %v4265 = vadd.f32 %v3720, %v4264
    %v4266 = vpop.f32.mrb[0].mxu0
    %4267 = vmatprep.mubr.bf16.mxu0 %v3041
    %4268 = vmatmul.mubr.bf16.gmra.mrb[0].mxu0 %v3040
    %v4269 = vpop.f32.mrb[0].mxu0
    %v4270 = vadd.f32 %v3725, %v4269
    %v4271 = vpop.f32.mrb[0].mxu0
    %v4272 = vpop.f32.mrb[0].mxu0
    %v4273 = vadd.f32 %v3728, %v4272
    %v4274 = vpop.f32.mrb[0].mxu0
    %4275 = vmatprep.mubr.bf16.mxu0 %v3045
    %4276 = vmatmul.mubr.bf16.gmra.mrb[0].mxu0 %v3044
    %v4277 = vpop.f32.mrb[0].mxu0
    %v4278 = vadd.f32 %v3733, %v4277
    %v4279 = vpop.f32.mrb[0].mxu0
    %v4280 = vpop.f32.mrb[0].mxu0
    %v4281 = vadd.f32 %v3736, %v4280
    %v4282 = vpop.f32.mrb[0].mxu0
    %4283 = vmatprep.mubr.bf16.mxu0 %v3049
    %4284 = vmatmul.mubr.bf16.gmra.mrb[0].mxu0 %v3048
    %v4285 = vpop.f32.mrb[0].mxu0
    %v4286 = vadd.f32 %v3741, %v4285
    %v4287 = vpop.f32.mrb[0].mxu0
    %v4288 = vpop.f32.mrb[0].mxu0
    %v4289 = vadd.f32 %v3744, %v4288
    %v4290 = vpop.f32.mrb[0].mxu0
    %4291 = vmatprep.mubr.bf16.mxu0 %v3053
    %4292 = vmatmul.mubr.bf16.gmra.mrb[0].mxu0 %v3052
    %v4293 = vpop.f32.mrb[0].mxu0
    %v4294 = vadd.f32 %v3749, %v4293
    %v4295 = vpop.f32.mrb[0].mxu0
    %v4296 = vpop.f32.mrb[0].mxu0
    %v4297 = vadd.f32 %v3752, %v4296
    %v4298 = vpop.f32.mrb[0].mxu0
    %4299 = vmatprep.mubr.bf16.mxu0 %v3057
    %4300 = vmatmul.mubr.bf16.gmra.mrb[0].mxu0 %v3056
    %v4301 = vpop.f32.mrb[0].mxu0
    %v4302 = vadd.f32 %v3757, %v4301
    %v4303 = vpop.f32.mrb[0].mxu0
    %v4304 = vpop.f32.mrb[0].mxu0
    %v4305 = vadd.f32 %v3760, %v4304
    %v4306 = vpop.f32.mrb[0].mxu0
    %4307 = vmatprep.mubr.bf16.mxu0 %v3061
    %4308 = vmatmul.mubr.bf16.gmra.mrb[0].mxu0 %v3060
    %v4309 = vpop.f32.mrb[0].mxu0
    %v4310 = vadd.f32 %v3765, %v4309
    %v4311 = vpop.f32.mrb[0].mxu0
    %v4312 = vpop.f32.mrb[0].mxu0
    %v4313 = vadd.f32 %v3768, %v4312
    %v4314 = vpop.f32.mrb[0].mxu0
    %4315 = vmatprep.mubr.bf16.mxu0 %v3065
    %4316 = vmatmul.mubr.bf16.gmra.mrb[0].mxu0 %v3064
    %v4317 = vpop.f32.mrb[0].mxu0
    %v4318 = vadd.f32 %v3773, %v4317
    %v4319 = vpop.f32.mrb[0].mxu0
    %v4320 = vpop.f32.mrb[0].mxu0
    %v4321 = vadd.f32 %v3776, %v4320
    %v4322 = vpop.f32.mrb[0].mxu0
    %4323 = vmatprep.mubr.bf16.mxu0 %v3069
    %4324 = vmatmul.mubr.bf16.gmra.mrb[0].mxu0 %v3068
    %v4325 = vpop.f32.mrb[0].mxu0
    %v4326 = vadd.f32 %v3781, %v4325
    %v4327 = vpop.f32.mrb[0].mxu0
    %v4328 = vpop.f32.mrb[0].mxu0
    %v4329 = vadd.f32 %v3784, %v4328
    %v4330 = vpop.f32.mrb[0].mxu0
    %4331 = vmatprep.mubr.bf16.mxu0 %v3073
    %4332 = vmatmul.mubr.bf16.gmra.mrb[0].mxu0 %v3072
    %v4333 = vpop.f32.mrb[0].mxu0
    %v4334 = vadd.f32 %v3789, %v4333
    %v4335 = vpop.f32.mrb[0].mxu0
    %v4336 = vpop.f32.mrb[0].mxu0
    %v4337 = vadd.f32 %v3792, %v4336
    %v4338 = vpop.f32.mrb[0].mxu0
    %4339 = vmatprep.mubr.bf16.mxu0 %v3077
    %4340 = vmatmul.mubr.bf16.gmra.mrb[0].mxu0 %v3076
    %v4341 = vpop.f32.mrb[0].mxu0
    %v4342 = vadd.f32 %v3797, %v4341
    %v4343 = vpop.f32.mrb[0].mxu0
    %v4344 = vpop.f32.mrb[0].mxu0
    %v4345 = vadd.f32 %v3800, %v4344
    %v4346 = vpop.f32.mrb[0].mxu0
    %4347 = vmatprep.mubr.bf16.mxu0 %v3081
    %4348 = vmatmul.mubr.bf16.gmra.mrb[0].mxu0 %v3080
    %v4349 = vpop.f32.mrb[0].mxu0
    %v4350 = vadd.f32 %v3805, %v4349
    %v4351 = vpop.f32.mrb[0].mxu0
    %v4352 = vpop.f32.mrb[0].mxu0
    %v4353 = vadd.f32 %v3808, %v4352
    %v4354 = vpop.f32.mrb[0].mxu0
    %4355 = vmatprep.mubr.bf16.mxu0 %v3085
    %4356 = vmatmul.mubr.bf16.gmra.mrb[0].mxu0 %v3084
    %v4357 = vpop.f32.mrb[0].mxu0
    %v4358 = vadd.f32 %v3813, %v4357
    %v4359 = vpop.f32.mrb[0].mxu0
    %v4360 = vpop.f32.mrb[0].mxu0
    %v4361 = vadd.f32 %v3816, %v4360
    %v4362 = vpop.f32.mrb[0].mxu0
    %4363 = vmatprep.mubr.bf16.mxu0 %v3089
    %4364 = vmatmul.mubr.bf16.gmra.mrb[0].mxu0 %v3088
    %v4365 = vpop.f32.mrb[0].mxu0
    %v4366 = vadd.f32 %v3821, %v4365
    %v4367 = vpop.f32.mrb[0].mxu0
    %v4368 = vpop.f32.mrb[0].mxu0
    %v4369 = vadd.f32 %v3824, %v4368
    %v4370 = vpop.f32.mrb[0].mxu0
    %4371 = vmatprep.mubr.bf16.mxu0 %v3093
    %4372 = vmatmul.mubr.bf16.gmra.mrb[0].mxu0 %v3092
    %v4373 = vpop.f32.mrb[0].mxu0
    %v4374 = vadd.f32 %v3829, %v4373
    %v4375 = vpop.f32.mrb[0].mxu0
    %v4376 = vpop.f32.mrb[0].mxu0
    %v4377 = vadd.f32 %v3832, %v4376
    %v4378 = vpop.f32.mrb[0].mxu0
    %4379 = vmatprep.mubr.bf16.mxu0 %v3097
    %4380 = vmatmul.mubr.bf16.gmra.mrb[0].mxu0 %v3096
    %v4381 = vpop.f32.mrb[0].mxu0
    %v4382 = vadd.f32 %v3837, %v4381
    %v4383 = vpop.f32.mrb[0].mxu0
    %v4384 = vpop.f32.mrb[0].mxu0
    %v4385 = vadd.f32 %v3840, %v4384
    %v4386 = vpop.f32.mrb[0].mxu0
    %4387 = vmatprep.mubr.bf16.mxu0 %v3101
    %4388 = vmatmul.mubr.bf16.gmra.mrb[0].mxu0 %v3100
    %v4389 = vpop.f32.mrb[0].mxu0
    %v4390 = vadd.f32 %v3845, %v4389
    %v4391 = vpop.f32.mrb[0].mxu0
    %v4392 = vpop.f32.mrb[0].mxu0
    %v4393 = vadd.f32 %v3848, %v4392
    %v4394 = vpop.f32.mrb[0].mxu0
    %4395 = vmatprep.mubr.bf16.mxu0 %v3105
    %4396 = vmatmul.mubr.bf16.gmra.mrb[0].mxu0 %v3104
    %v4397 = vpop.f32.mrb[0].mxu0
    %v4398 = vadd.f32 %v3853, %v4397
    %v4399 = vpop.f32.mrb[0].mxu0
    %v4400 = vpop.f32.mrb[0].mxu0
    %v4401 = vadd.f32 %v3856, %v4400
    %v4402 = vpop.f32.mrb[0].mxu0
    %4403 = vmatprep.mubr.bf16.mxu0 %v3109
    %4404 = vmatmul.mubr.bf16.gmra.mrb[0].mxu0 %v3108
    %v4405 = vpop.f32.mrb[0].mxu0
    %v4406 = vadd.f32 %v3861, %v4405
    %v4407 = vpop.f32.mrb[0].mxu0
    %v4408 = vpop.f32.mrb[0].mxu0
    %v4409 = vadd.f32 %v3864, %v4408
    %v4410 = vpop.f32.mrb[0].mxu0
    %4411 = vmatprep.mubr.bf16.mxu0 %v3113
    %4412 = vmatmul.mubr.bf16.gmra.mrb[0].mxu0 %v3112
    %v4413 = vpop.f32.mrb[0].mxu0
    %v4414 = vadd.f32 %v3869, %v4413
    %v4415 = vpop.f32.mrb[0].mxu0
    %v4416 = vpop.f32.mrb[0].mxu0
    %v4417 = vadd.f32 %v3872, %v4416
    %v4418 = vpop.f32.mrb[0].mxu0
    %4419 = vmatprep.mubr.bf16.mxu0 %v3117
    %4420 = vmatmul.mubr.bf16.gmra.mrb[0].mxu0 %v3116
    %v4421 = vpop.f32.mrb[0].mxu0
    %v4422 = vadd.f32 %v3877, %v4421
    %v4423 = vpop.f32.mrb[0].mxu0
    %v4424 = vpop.f32.mrb[0].mxu0
    %v4425 = vadd.f32 %v3880, %v4424
    %v4426 = vpop.f32.mrb[0].mxu0
    %4427 = vmatprep.mubr.bf16.mxu0 %v3121
    %4428 = vmatmul.mubr.bf16.gmra.mrb[0].mxu0 %v3120
    %v4429 = vpop.f32.mrb[0].mxu0
    %v4430 = vadd.f32 %v3885, %v4429
    %v4431 = vpop.f32.mrb[0].mxu0
    %v4432 = vpop.f32.mrb[0].mxu0
    %v4433 = vadd.f32 %v3888, %v4432
    %v4434 = vpop.f32.mrb[0].mxu0
    %4435 = vmatprep.mubr.bf16.mxu0 %v3125
    %4436 = vmatmul.mubr.bf16.gmra.mrb[0].mxu0 %v3124
    %v4437 = vpop.f32.mrb[0].mxu0
    %v4438 = vadd.f32 %v3893, %v4437
    %v4439 = vpop.f32.mrb[0].mxu0
    %v4440 = vpop.f32.mrb[0].mxu0
    %v4441 = vadd.f32 %v3896, %v4440
    %v4442 = vpop.f32.mrb[0].mxu0
    %4443 = vmatprep.mubr.bf16.mxu0 %v3129
    %4444 = vmatmul.mubr.bf16.gmra.mrb[0].mxu0 %v3128
    %v4445 = vpop.f32.mrb[0].mxu0
    %v4446 = vadd.f32 %v3901, %v4445
    %v4447 = vpop.f32.mrb[0].mxu0
    %v4448 = vpop.f32.mrb[0].mxu0
    %v4449 = vadd.f32 %v3904, %v4448
    %v4450 = vpop.f32.mrb[0].mxu0
    %4451 = vmatprep.mubr.bf16.mxu0 %v3133
    %4452 = vmatmul.mubr.bf16.gmra.mrb[0].mxu0 %v3132
    %v4453 = vpop.f32.mrb[0].mxu0
    %v4454 = vadd.f32 %v3909, %v4453
    %v4455 = vpop.f32.mrb[0].mxu0
    %v4456 = vpop.f32.mrb[0].mxu0
    %v4457 = vadd.f32 %v3912, %v4456
    %v4458 = vpop.f32.mrb[0].mxu0
    %4459 = vmatprep.mubr.bf16.mxu0 %v3137
    %4460 = vmatmul.mubr.bf16.gmra.mrb[0].mxu0 %v3136
    %v4461 = vpop.f32.mrb[0].mxu0
    %v4462 = vadd.f32 %v3917, %v4461
    %v4463 = vpop.f32.mrb[0].mxu0
    %v4464 = vpop.f32.mrb[0].mxu0
    %v4465 = vadd.f32 %v3920, %v4464
    %v4466 = vpop.f32.mrb[0].mxu0
    %4467 = vmatprep.mubr.bf16.mxu0 %v3141
    %4468 = vmatmul.mubr.bf16.gmra.mrb[0].mxu0 %v3140
    %v4469 = vpop.f32.mrb[0].mxu0
    %v4470 = vadd.f32 %v3925, %v4469
    %v4471 = vpop.f32.mrb[0].mxu0
    %v4472 = vpop.f32.mrb[0].mxu0
    %v4473 = vadd.f32 %v3928, %v4472
    %v4474 = vpop.f32.mrb[0].mxu0
    %4475 = vmatprep.mubr.bf16.mxu0 %v3145
    %4476 = vmatmul.mubr.bf16.gmra.mrb[0].mxu0 %v3144
    %v4477 = vpop.f32.mrb[0].mxu0
    %v4478 = vadd.f32 %v3933, %v4477
    %v4479 = vpop.f32.mrb[0].mxu0
    %v4480 = vpop.f32.mrb[0].mxu0
    %v4481 = vadd.f32 %v3936, %v4480
    %v4482 = vpop.f32.mrb[0].mxu0
    %4483 = vmatprep.mubr.bf16.mxu0 %v3149
    %4484 = vmatmul.mubr.bf16.gmra.mrb[0].mxu0 %v3148
    %v4485 = vpop.f32.mrb[0].mxu0
    %v4486 = vadd.f32 %v3941, %v4485
    %v4487 = vpop.f32.mrb[0].mxu0
    %v4488 = vpop.f32.mrb[0].mxu0
    %v4489 = vadd.f32 %v3944, %v4488
    %v4490 = vpop.f32.mrb[0].mxu0
    %4491 = vmatprep.mubr.bf16.mxu0 %v3153
    %4492 = vmatmul.mubr.bf16.gmra.mrb[0].mxu0 %v3152
    %v4493 = vpop.f32.mrb[0].mxu0
    %v4494 = vadd.f32 %v3949, %v4493
    %v4495 = vpop.f32.mrb[0].mxu0
    %v4496 = vpop.f32.mrb[0].mxu0
    %v4497 = vadd.f32 %v3952, %v4496
    %v4498 = vpop.f32.mrb[0].mxu0
    %4499 = vdwg.mxu0
    %v4500 = vmax.f32 %v3990, %v4246
    %v4501 = vmax.f32 %v3993, %v4249
    %v4502 = vmax.f32 %v3998, %v4254
    %v4503 = vmax.f32 %v4001, %v4257
    %v4504 = vmax.f32 %v4006, %v4262
    %v4505 = vmax.f32 %v4009, %v4265
    %v4506 = vmax.f32 %v4014, %v4270
    %v4507 = vmax.f32 %v4017, %v4273
    %v4508 = vmax.f32 %v4022, %v4278
    %v4509 = vmax.f32 %v4025, %v4281
    %v4510 = vmax.f32 %v4030, %v4286
    %v4511 = vmax.f32 %v4033, %v4289
    %v4512 = vmax.f32 %v4038, %v4294
    %v4513 = vmax.f32 %v4041, %v4297
    %v4514 = vmax.f32 %v4046, %v4302
    %v4515 = vmax.f32 %v4049, %v4305
    %v4516 = vmax.f32 %v4054, %v4310
    %v4517 = vmax.f32 %v4057, %v4313
    %v4518 = vmax.f32 %v4062, %v4318
    %v4519 = vmax.f32 %v4065, %v4321
    %v4520 = vmax.f32 %v4070, %v4326
    %v4521 = vmax.f32 %v4073, %v4329
    %v4522 = vmax.f32 %v4078, %v4334
    %v4523 = vmax.f32 %v4081, %v4337
    %v4524 = vmax.f32 %v4086, %v4342
    %v4525 = vmax.f32 %v4089, %v4345
    %v4526 = vmax.f32 %v4094, %v4350
    %v4527 = vmax.f32 %v4097, %v4353
    %v4528 = vmax.f32 %v4102, %v4358
    %v4529 = vmax.f32 %v4105, %v4361
    %v4530 = vmax.f32 %v4110, %v4366
    %v4531 = vmax.f32 %v4113, %v4369
    %v4532 = vmax.f32 %v4118, %v4374
    %v4533 = vmax.f32 %v4121, %v4377
    %v4534 = vmax.f32 %v4126, %v4382
    %v4535 = vmax.f32 %v4129, %v4385
    %v4536 = vmax.f32 %v4134, %v4390
    %v4537 = vmax.f32 %v4137, %v4393
    %v4538 = vmax.f32 %v4142, %v4398
    %v4539 = vmax.f32 %v4145, %v4401
    %v4540 = vmax.f32 %v4150, %v4406
    %v4541 = vmax.f32 %v4153, %v4409
    %v4542 = vmax.f32 %v4158, %v4414
    %v4543 = vmax.f32 %v4161, %v4417
    %v4544 = vmax.f32 %v4166, %v4422
    %v4545 = vmax.f32 %v4169, %v4425
    %v4546 = vmax.f32 %v4174, %v4430
    %v4547 = vmax.f32 %v4177, %v4433
    %v4548 = vmax.f32 %v4182, %v4438
    %v4549 = vmax.f32 %v4185, %v4441
    %v4550 = vmax.f32 %v4190, %v4446
    %v4551 = vmax.f32 %v4193, %v4449
    %v4552 = vmax.f32 %v4198, %v4454
    %v4553 = vmax.f32 %v4201, %v4457
    %v4554 = vmax.f32 %v4206, %v4462
    %v4555 = vmax.f32 %v4209, %v4465
    %v4556 = vmax.f32 %v4214, %v4470
    %v4557 = vmax.f32 %v4217, %v4473
    %v4558 = vmax.f32 %v4222, %v4478
    %v4559 = vmax.f32 %v4225, %v4481
    %v4560 = vmax.f32 %v4230, %v4486
    %v4561 = vmax.f32 %v4233, %v4489
    %v4562 = vmax.f32 %v4238, %v4494
    %v4563 = vmax.f32 %v4241, %v4497
    %v4564 = vld [vmem:[%s4] sm:$0xff]
    %v4565 = vld [vmem:[%s4 + $0x8] sm:$0xff]
    %v4566 = vld [vmem:[%s4 + $0x10] sm:$0xff]
    %v4567 = vld [vmem:[%s4 + $0x18] sm:$0xff]
    %v4568 = vld [vmem:[%s4 + $0x20] sm:$0xff]
    %v4569 = vld [vmem:[%s4 + $0x28] sm:$0xff]
    %v4570 = vld [vmem:[%s4 + $0x30] sm:$0xff]
    %v4571 = vld [vmem:[%s4 + $0x38] sm:$0xff]
    %v4572 = vld [vmem:[%s4 + $0x40] sm:$0xff]
    %v4573 = vld [vmem:[%s4 + $0x48] sm:$0xff]
    %v4574 = vld [vmem:[%s4 + $0x50] sm:$0xff]
    %v4575 = vld [vmem:[%s4 + $0x58] sm:$0xff]
    %v4576 = vld [vmem:[%s4 + $0x60] sm:$0xff]
    %v4577 = vld [vmem:[%s4 + $0x68] sm:$0xff]
    %v4578 = vld [vmem:[%s4 + $0x70] sm:$0xff]
    %v4579 = vld [vmem:[%s4 + $0x78] sm:$0xff]
    %v4580 = vld [vmem:[%s4 + $0x80] sm:$0xff]
    %v4581 = vld [vmem:[%s4 + $0x88] sm:$0xff]
    %v4582 = vld [vmem:[%s4 + $0x90] sm:$0xff]
    %v4583 = vld [vmem:[%s4 + $0x98] sm:$0xff]
    %v4584 = vld [vmem:[%s4 + $0xa0] sm:$0xff]
    %v4585 = vld [vmem:[%s4 + $0xa8] sm:$0xff]
    %v4586 = vld [vmem:[%s4 + $0xb0] sm:$0xff]
    %v4587 = vld [vmem:[%s4 + $0xb8] sm:$0xff]
    %v4588 = vld [vmem:[%s4 + $0xc0] sm:$0xff]
    %v4589 = vld [vmem:[%s4 + $0xc8] sm:$0xff]
    %v4590 = vld [vmem:[%s4 + $0xd0] sm:$0xff]
    %v4591 = vld [vmem:[%s4 + $0xd8] sm:$0xff]
    %v4592 = vld [vmem:[%s4 + $0xe0] sm:$0xff]
    %v4593 = vld [vmem:[%s4 + $0xe8] sm:$0xff]
    %v4594 = vld [vmem:[%s4 + $0xf0] sm:$0xff]
    %v4595 = vld [vmem:[%s4 + $0xf8] sm:$0xff]
    %v4596 = vld [vmem:[%s4 + $0x100] sm:$0xff]
    %v4597 = vld [vmem:[%s4 + $0x108] sm:$0xff]
    %v4598 = vld [vmem:[%s4 + $0x110] sm:$0xff]
    %v4599 = vld [vmem:[%s4 + $0x118] sm:$0xff]
    %v4600 = vld [vmem:[%s4 + $0x120] sm:$0xff]
    %v4601 = vld [vmem:[%s4 + $0x128] sm:$0xff]
    %v4602 = vld [vmem:[%s4 + $0x130] sm:$0xff]
    %v4603 = vld [vmem:[%s4 + $0x138] sm:$0xff]
    %v4604 = vld [vmem:[%s4 + $0x140] sm:$0xff]
    %v4605 = vld [vmem:[%s4 + $0x148] sm:$0xff]
    %v4606 = vld [vmem:[%s4 + $0x150] sm:$0xff]
    %v4607 = vld [vmem:[%s4 + $0x158] sm:$0xff]
    %v4608 = vld [vmem:[%s4 + $0x160] sm:$0xff]
    %v4609 = vld [vmem:[%s4 + $0x168] sm:$0xff]
    %v4610 = vld [vmem:[%s4 + $0x170] sm:$0xff]
    %v4611 = vld [vmem:[%s4 + $0x178] sm:$0xff]
    %v4612 = vld [vmem:[%s4 + $0x180] sm:$0xff]
    %v4613 = vld [vmem:[%s4 + $0x188] sm:$0xff]
    %v4614 = vld [vmem:[%s4 + $0x190] sm:$0xff]
    %v4615 = vld [vmem:[%s4 + $0x198] sm:$0xff]
    %v4616 = vld [vmem:[%s4 + $0x1a0] sm:$0xff]
    %v4617 = vld [vmem:[%s4 + $0x1a8] sm:$0xff]
    %v4618 = vld [vmem:[%s4 + $0x1b0] sm:$0xff]
    %v4619 = vld [vmem:[%s4 + $0x1b8] sm:$0xff]
    %v4620 = vld [vmem:[%s4 + $0x1c0] sm:$0xff]
    %v4621 = vld [vmem:[%s4 + $0x1c8] sm:$0xff]
    %v4622 = vld [vmem:[%s4 + $0x1d0] sm:$0xff]
    %v4623 = vld [vmem:[%s4 + $0x1d8] sm:$0xff]
    %v4624 = vld [vmem:[%s4 + $0x1e0] sm:$0xff]
    %v4625 = vld [vmem:[%s4 + $0x1e8] sm:$0xff]
    %v4626 = vld [vmem:[%s4 + $0x1f0] sm:$0xff]
    %v4627 = vld [vmem:[%s4 + $0x1f8] sm:$0xff]
    %4629 = vset.pattern.permute.xlu0 0
    %4630 = vperm.xlu0 %4629, %v4564
    %v4631 = vpop.permute.xlu0 %4630
    %4634 = vset.pattern.permute.xlu0 0
    %4635 = vperm.xlu0 %4634, %v4565
    %v4636 = vpop.permute.xlu0 %4635
    %4639 = vset.pattern.permute.xlu0 0
    %4640 = vperm.xlu0 %4639, %v4566
    %v4641 = vpop.permute.xlu0 %4640
    %4644 = vset.pattern.permute.xlu0 0
    %4645 = vperm.xlu0 %4644, %v4567
    %v4646 = vpop.permute.xlu0 %4645
    %4649 = vset.pattern.permute.xlu0 0
    %4650 = vperm.xlu0 %4649, %v4568
    %v4651 = vpop.permute.xlu0 %4650
    %4654 = vset.pattern.permute.xlu0 0
    %4655 = vperm.xlu0 %4654, %v4569
    %v4656 = vpop.permute.xlu0 %4655
    %4659 = vset.pattern.permute.xlu0 0
    %4660 = vperm.xlu0 %4659, %v4570
    %v4661 = vpop.permute.xlu0 %4660
    %4664 = vset.pattern.permute.xlu0 0
    %4665 = vperm.xlu0 %4664, %v4571
    %v4666 = vpop.permute.xlu0 %4665
    %4669 = vset.pattern.permute.xlu0 0
    %4670 = vperm.xlu0 %4669, %v4572
    %v4671 = vpop.permute.xlu0 %4670
    %4674 = vset.pattern.permute.xlu0 0
    %4675 = vperm.xlu0 %4674, %v4573
    %v4676 = vpop.permute.xlu0 %4675
    %4679 = vset.pattern.permute.xlu0 0
    %4680 = vperm.xlu0 %4679, %v4574
    %v4681 = vpop.permute.xlu0 %4680
    %4684 = vset.pattern.permute.xlu0 0
    %4685 = vperm.xlu0 %4684, %v4575
    %v4686 = vpop.permute.xlu0 %4685
    %4689 = vset.pattern.permute.xlu0 0
    %4690 = vperm.xlu0 %4689, %v4576
    %v4691 = vpop.permute.xlu0 %4690
    %4694 = vset.pattern.permute.xlu0 0
    %4695 = vperm.xlu0 %4694, %v4577
    %v4696 = vpop.permute.xlu0 %4695
    %4699 = vset.pattern.permute.xlu0 0
    %4700 = vperm.xlu0 %4699, %v4578
    %v4701 = vpop.permute.xlu0 %4700
    %4704 = vset.pattern.permute.xlu0 0
    %4705 = vperm.xlu0 %4704, %v4579
    %v4706 = vpop.permute.xlu0 %4705
    %4709 = vset.pattern.permute.xlu0 0
    %4710 = vperm.xlu0 %4709, %v4580
    %v4711 = vpop.permute.xlu0 %4710
    %4714 = vset.pattern.permute.xlu0 0
    %4715 = vperm.xlu0 %4714, %v4581
    %v4716 = vpop.permute.xlu0 %4715
    %4719 = vset.pattern.permute.xlu0 0
    %4720 = vperm.xlu0 %4719, %v4582
    %v4721 = vpop.permute.xlu0 %4720
    %4724 = vset.pattern.permute.xlu0 0
    %4725 = vperm.xlu0 %4724, %v4583
    %v4726 = vpop.permute.xlu0 %4725
    %4729 = vset.pattern.permute.xlu0 0
    %4730 = vperm.xlu0 %4729, %v4584
    %v4731 = vpop.permute.xlu0 %4730
    %4734 = vset.pattern.permute.xlu0 0
    %4735 = vperm.xlu0 %4734, %v4585
    %v4736 = vpop.permute.xlu0 %4735
    %4739 = vset.pattern.permute.xlu0 0
    %4740 = vperm.xlu0 %4739, %v4586
    %v4741 = vpop.permute.xlu0 %4740
    %4744 = vset.pattern.permute.xlu0 0
    %4745 = vperm.xlu0 %4744, %v4587
    %v4746 = vpop.permute.xlu0 %4745
    %4749 = vset.pattern.permute.xlu0 0
    %4750 = vperm.xlu0 %4749, %v4588
    %v4751 = vpop.permute.xlu0 %4750
    %4754 = vset.pattern.permute.xlu0 0
    %4755 = vperm.xlu0 %4754, %v4589
    %v4756 = vpop.permute.xlu0 %4755
    %4759 = vset.pattern.permute.xlu0 0
    %4760 = vperm.xlu0 %4759, %v4590
    %v4761 = vpop.permute.xlu0 %4760
    %4764 = vset.pattern.permute.xlu0 0
    %4765 = vperm.xlu0 %4764, %v4591
    %v4766 = vpop.permute.xlu0 %4765
    %4769 = vset.pattern.permute.xlu0 0
    %4770 = vperm.xlu0 %4769, %v4592
    %v4771 = vpop.permute.xlu0 %4770
    %4774 = vset.pattern.permute.xlu0 0
    %4775 = vperm.xlu0 %4774, %v4593
    %v4776 = vpop.permute.xlu0 %4775
    %4779 = vset.pattern.permute.xlu0 0
    %4780 = vperm.xlu0 %4779, %v4594
    %v4781 = vpop.permute.xlu0 %4780
    %4784 = vset.pattern.permute.xlu0 0
    %4785 = vperm.xlu0 %4784, %v4595
    %v4786 = vpop.permute.xlu0 %4785
    %4789 = vset.pattern.permute.xlu0 0
    %4790 = vperm.xlu0 %4789, %v4596
    %v4791 = vpop.permute.xlu0 %4790
    %4794 = vset.pattern.permute.xlu0 0
    %4795 = vperm.xlu0 %4794, %v4597
    %v4796 = vpop.permute.xlu0 %4795
    %4799 = vset.pattern.permute.xlu0 0
    %4800 = vperm.xlu0 %4799, %v4598
    %v4801 = vpop.permute.xlu0 %4800
    %4804 = vset.pattern.permute.xlu0 0
    %4805 = vperm.xlu0 %4804, %v4599
    %v4806 = vpop.permute.xlu0 %4805
    %4809 = vset.pattern.permute.xlu0 0
    %4810 = vperm.xlu0 %4809, %v4600
    %v4811 = vpop.permute.xlu0 %4810
    %4814 = vset.pattern.permute.xlu0 0
    %4815 = vperm.xlu0 %4814, %v4601
    %v4816 = vpop.permute.xlu0 %4815
    %4819 = vset.pattern.permute.xlu0 0
    %4820 = vperm.xlu0 %4819, %v4602
    %v4821 = vpop.permute.xlu0 %4820
    %4824 = vset.pattern.permute.xlu0 0
    %4825 = vperm.xlu0 %4824, %v4603
    %v4826 = vpop.permute.xlu0 %4825
    %4829 = vset.pattern.permute.xlu0 0
    %4830 = vperm.xlu0 %4829, %v4604
    %v4831 = vpop.permute.xlu0 %4830
    %4834 = vset.pattern.permute.xlu0 0
    %4835 = vperm.xlu0 %4834, %v4605
    %v4836 = vpop.permute.xlu0 %4835
    %4839 = vset.pattern.permute.xlu0 0
    %4840 = vperm.xlu0 %4839, %v4606
    %v4841 = vpop.permute.xlu0 %4840
    %4844 = vset.pattern.permute.xlu0 0
    %4845 = vperm.xlu0 %4844, %v4607
    %v4846 = vpop.permute.xlu0 %4845
    %4849 = vset.pattern.permute.xlu0 0
    %4850 = vperm.xlu0 %4849, %v4608
    %v4851 = vpop.permute.xlu0 %4850
    %4854 = vset.pattern.permute.xlu0 0
    %4855 = vperm.xlu0 %4854, %v4609
    %v4856 = vpop.permute.xlu0 %4855
    %4859 = vset.pattern.permute.xlu0 0
    %4860 = vperm.xlu0 %4859, %v4610
    %v4861 = vpop.permute.xlu0 %4860
    %4864 = vset.pattern.permute.xlu0 0
    %4865 = vperm.xlu0 %4864, %v4611
    %v4866 = vpop.permute.xlu0 %4865
    %4869 = vset.pattern.permute.xlu0 0
    %4870 = vperm.xlu0 %4869, %v4612
    %v4871 = vpop.permute.xlu0 %4870
    %4874 = vset.pattern.permute.xlu0 0
    %4875 = vperm.xlu0 %4874, %v4613
    %v4876 = vpop.permute.xlu0 %4875
    %4879 = vset.pattern.permute.xlu0 0
    %4880 = vperm.xlu0 %4879, %v4614
    %v4881 = vpop.permute.xlu0 %4880
    %4884 = vset.pattern.permute.xlu0 0
    %4885 = vperm.xlu0 %4884, %v4615
    %v4886 = vpop.permute.xlu0 %4885
    %4889 = vset.pattern.permute.xlu0 0
    %4890 = vperm.xlu0 %4889, %v4616
    %v4891 = vpop.permute.xlu0 %4890
    %4894 = vset.pattern.permute.xlu0 0
    %4895 = vperm.xlu0 %4894, %v4617
    %v4896 = vpop.permute.xlu0 %4895
    %4899 = vset.pattern.permute.xlu0 0
    %4900 = vperm.xlu0 %4899, %v4618
    %v4901 = vpop.permute.xlu0 %4900
    %4904 = vset.pattern.permute.xlu0 0
    %4905 = vperm.xlu0 %4904, %v4619
    %v4906 = vpop.permute.xlu0 %4905
    %4909 = vset.pattern.permute.xlu0 0
    %4910 = vperm.xlu0 %4909, %v4620
    %v4911 = vpop.permute.xlu0 %4910
    %4914 = vset.pattern.permute.xlu0 0
    %4915 = vperm.xlu0 %4914, %v4621
    %v4916 = vpop.permute.xlu0 %4915
    %4919 = vset.pattern.permute.xlu0 0
    %4920 = vperm.xlu0 %4919, %v4622
    %v4921 = vpop.permute.xlu0 %4920
    %4924 = vset.pattern.permute.xlu0 0
    %4925 = vperm.xlu0 %4924, %v4623
    %v4926 = vpop.permute.xlu0 %4925
    %4929 = vset.pattern.permute.xlu0 0
    %4930 = vperm.xlu0 %4929, %v4624
    %v4931 = vpop.permute.xlu0 %4930
    %4934 = vset.pattern.permute.xlu0 0
    %4935 = vperm.xlu0 %4934, %v4625
    %v4936 = vpop.permute.xlu0 %4935
    %4939 = vset.pattern.permute.xlu0 0
    %4940 = vperm.xlu0 %4939, %v4626
    %v4941 = vpop.permute.xlu0 %4940
    %4944 = vset.pattern.permute.xlu0 0
    %4945 = vperm.xlu0 %4944, %v4627
    %v4946 = vpop.permute.xlu0 %4945
    %v4948 = vadd.f32 %v4500, %v4631
    %v4949 = vadd.f32 %v4501, %v4636
    %v4950 = vadd.f32 %v4502, %v4641
    %v4951 = vadd.f32 %v4503, %v4646
    %v4952 = vadd.f32 %v4504, %v4651
    %v4953 = vadd.f32 %v4505, %v4656
    %v4954 = vadd.f32 %v4506, %v4661
    %v4955 = vadd.f32 %v4507, %v4666
    %v4956 = vadd.f32 %v4508, %v4671
    %v4957 = vadd.f32 %v4509, %v4676
    %v4958 = vadd.f32 %v4510, %v4681
    %v4959 = vadd.f32 %v4511, %v4686
    %v4960 = vadd.f32 %v4512, %v4691
    %v4961 = vadd.f32 %v4513, %v4696
    %v4962 = vadd.f32 %v4514, %v4701
    %v4963 = vadd.f32 %v4515, %v4706
    %v4964 = vadd.f32 %v4516, %v4711
    %v4965 = vadd.f32 %v4517, %v4716
    %v4966 = vadd.f32 %v4518, %v4721
    %v4967 = vadd.f32 %v4519, %v4726
    %v4968 = vadd.f32 %v4520, %v4731
    %v4969 = vadd.f32 %v4521, %v4736
    %v4970 = vadd.f32 %v4522, %v4741
    %v4971 = vadd.f32 %v4523, %v4746
    %v4972 = vadd.f32 %v4524, %v4751
    %v4973 = vadd.f32 %v4525, %v4756
    %v4974 = vadd.f32 %v4526, %v4761
    %v4975 = vadd.f32 %v4527, %v4766
    %v4976 = vadd.f32 %v4528, %v4771
    %v4977 = vadd.f32 %v4529, %v4776
    %v4978 = vadd.f32 %v4530, %v4781
    %v4979 = vadd.f32 %v4531, %v4786
    %v4980 = vadd.f32 %v4532, %v4791
    %v4981 = vadd.f32 %v4533, %v4796
    %v4982 = vadd.f32 %v4534, %v4801
    %v4983 = vadd.f32 %v4535, %v4806
    %v4984 = vadd.f32 %v4536, %v4811
    %v4985 = vadd.f32 %v4537, %v4816
    %v4986 = vadd.f32 %v4538, %v4821
    %v4987 = vadd.f32 %v4539, %v4826
    %v4988 = vadd.f32 %v4540, %v4831
    %v4989 = vadd.f32 %v4541, %v4836
    %v4990 = vadd.f32 %v4542, %v4841
    %v4991 = vadd.f32 %v4543, %v4846
    %v4992 = vadd.f32 %v4544, %v4851
    %v4993 = vadd.f32 %v4545, %v4856
    %v4994 = vadd.f32 %v4546, %v4861
    %v4995 = vadd.f32 %v4547, %v4866
    %v4996 = vadd.f32 %v4548, %v4871
    %v4997 = vadd.f32 %v4549, %v4876
    %v4998 = vadd.f32 %v4550, %v4881
    %v4999 = vadd.f32 %v4551, %v4886
    %v5000 = vadd.f32 %v4552, %v4891
    %v5001 = vadd.f32 %v4553, %v4896
    %v5002 = vadd.f32 %v4554, %v4901
    %v5003 = vadd.f32 %v4555, %v4906
    %v5004 = vadd.f32 %v4556, %v4911
    %v5005 = vadd.f32 %v4557, %v4916
    %v5006 = vadd.f32 %v4558, %v4921
    %v5007 = vadd.f32 %v4559, %v4926
    %v5008 = vadd.f32 %v4560, %v4931
    %v5009 = vadd.f32 %v4561, %v4936
    %v5010 = vadd.f32 %v4562, %v4941
    %v5011 = vadd.f32 %v4563, %v4946
    %v5012 = vld [vmem:[%s5] sm:$0xff]
    %v5013 = vld [vmem:[%s5 + $0x8] sm:$0xff]
    %v5014 = vld [vmem:[%s5 + $0x10] sm:$0xff]
    %v5015 = vld [vmem:[%s5 + $0x18] sm:$0xff]
    %v5016 = vld [vmem:[%s5 + $0x20] sm:$0xff]
    %v5017 = vld [vmem:[%s5 + $0x28] sm:$0xff]
    %v5018 = vld [vmem:[%s5 + $0x30] sm:$0xff]
    %v5019 = vld [vmem:[%s5 + $0x38] sm:$0xff]
    %v5020 = vld [vmem:[%s5 + $0x40] sm:$0xff]
    %v5021 = vld [vmem:[%s5 + $0x48] sm:$0xff]
    %v5022 = vld [vmem:[%s5 + $0x50] sm:$0xff]
    %v5023 = vld [vmem:[%s5 + $0x58] sm:$0xff]
    %v5024 = vld [vmem:[%s5 + $0x60] sm:$0xff]
    %v5025 = vld [vmem:[%s5 + $0x68] sm:$0xff]
    %v5026 = vld [vmem:[%s5 + $0x70] sm:$0xff]
    %v5027 = vld [vmem:[%s5 + $0x78] sm:$0xff]
    %v5028 = vpack.c.bf16 %v4949, %v4948
    %v5029 = vpack.c.bf16 %v4951, %v4950
    %v5030 = vpack.c.bf16 %v4953, %v4952
    %v5031 = vpack.c.bf16 %v4955, %v4954
    %v5032 = vpack.c.bf16 %v4957, %v4956
    %v5033 = vpack.c.bf16 %v4959, %v4958
    %v5034 = vpack.c.bf16 %v4961, %v4960
    %v5035 = vpack.c.bf16 %v4963, %v4962
    %v5036 = vpack.c.bf16 %v4965, %v4964
    %v5037 = vpack.c.bf16 %v4967, %v4966
    %v5038 = vpack.c.bf16 %v4969, %v4968
    %v5039 = vpack.c.bf16 %v4971, %v4970
    %v5040 = vpack.c.bf16 %v4973, %v4972
    %v5041 = vpack.c.bf16 %v4975, %v4974
    %v5042 = vpack.c.bf16 %v4977, %v4976
    %v5043 = vpack.c.bf16 %v4979, %v4978
    %v5044 = vpack.c.bf16 %v4981, %v4980
    %v5045 = vpack.c.bf16 %v4983, %v4982
    %v5046 = vpack.c.bf16 %v4985, %v4984
    %v5047 = vpack.c.bf16 %v4987, %v4986
    %v5048 = vpack.c.bf16 %v4989, %v4988
    %v5049 = vpack.c.bf16 %v4991, %v4990
    %v5050 = vpack.c.bf16 %v4993, %v4992
    %v5051 = vpack.c.bf16 %v4995, %v4994
    %v5052 = vpack.c.bf16 %v4997, %v4996
    %v5053 = vpack.c.bf16 %v4999, %v4998
    %v5054 = vpack.c.bf16 %v5001, %v5000
    %v5055 = vpack.c.bf16 %v5003, %v5002
    %v5056 = vpack.c.bf16 %v5005, %v5004
    %v5057 = vpack.c.bf16 %v5007, %v5006
    %v5058 = vpack.c.bf16 %v5009, %v5008
    %v5059 = vpack.c.bf16 %v5011, %v5010
    %v5060 = vld [vmem:[%s6] sm:$0xff]
    %v5061 = vld [vmem:[%s6 + $0x8] sm:$0xff]
    %v5062 = vld [vmem:[%s6 + $0x10] sm:$0xff]
    %v5063 = vld [vmem:[%s6 + $0x18] sm:$0xff]
    %v5064 = vld [vmem:[%s6 + $0x20] sm:$0xff]
    %v5065 = vld [vmem:[%s6 + $0x28] sm:$0xff]
    %v5066 = vld [vmem:[%s6 + $0x30] sm:$0xff]
    %v5067 = vld [vmem:[%s6 + $0x38] sm:$0xff]
    %5069 = vset.pattern.permute.xlu0 0
    %5070 = vperm.xlu0 %5069, %v5060
    %v5071 = vpop.permute.xlu0 %5070
    %5074 = vset.pattern.permute.xlu0 0
    %5075 = vperm.xlu0 %5074, %v5061
    %v5076 = vpop.permute.xlu0 %5075
    %5079 = vset.pattern.permute.xlu0 0
    %5080 = vperm.xlu0 %5079, %v5062
    %v5081 = vpop.permute.xlu0 %5080
    %5084 = vset.pattern.permute.xlu0 0
    %5085 = vperm.xlu0 %5084, %v5063
    %v5086 = vpop.permute.xlu0 %5085
    %5089 = vset.pattern.permute.xlu0 0
    %5090 = vperm.xlu0 %5089, %v5064
    %v5091 = vpop.permute.xlu0 %5090
    %5094 = vset.pattern.permute.xlu0 0
    %5095 = vperm.xlu0 %5094, %v5065
    %v5096 = vpop.permute.xlu0 %5095
    %5099 = vset.pattern.permute.xlu0 0
    %5100 = vperm.xlu0 %5099, %v5066
    %v5101 = vpop.permute.xlu0 %5100
    %5104 = vset.pattern.permute.xlu0 0
    %5105 = vperm.xlu0 %5104, %v5067
    %v5106 = vpop.permute.xlu0 %5105
    %v5124 = vunpack.c.l.b16 %v5012
    %v5125 = vunpack.c.h.b16 %v5012
    %v5126 = vunpack.c.l.b16 %v5013
    %v5127 = vunpack.c.h.b16 %v5013
    %v5128 = vunpack.c.l.b16 %v5014
    %v5129 = vunpack.c.h.b16 %v5014
    %v5130 = vunpack.c.l.b16 %v5015
    %v5131 = vunpack.c.h.b16 %v5015
    %v5132 = vunpack.c.l.b16 %v5016
    %v5133 = vunpack.c.h.b16 %v5016
    %v5134 = vunpack.c.l.b16 %v5017
    %v5135 = vunpack.c.h.b16 %v5017
    %v5136 = vunpack.c.l.b16 %v5018
    %v5137 = vunpack.c.h.b16 %v5018
    %v5138 = vunpack.c.l.b16 %v5019
    %v5139 = vunpack.c.h.b16 %v5019
    %v5140 = vunpack.c.l.b16 %v5020
    %v5141 = vunpack.c.h.b16 %v5020
    %v5142 = vunpack.c.l.b16 %v5021
    %v5143 = vunpack.c.h.b16 %v5021
    %v5144 = vunpack.c.l.b16 %v5022
    %v5145 = vunpack.c.h.b16 %v5022
    %v5146 = vunpack.c.l.b16 %v5023
    %v5147 = vunpack.c.h.b16 %v5023
    %v5148 = vunpack.c.l.b16 %v5024
    %v5149 = vunpack.c.h.b16 %v5024
    %v5150 = vunpack.c.l.b16 %v5025
    %v5151 = vunpack.c.h.b16 %v5025
    %v5152 = vunpack.c.l.b16 %v5026
    %v5153 = vunpack.c.h.b16 %v5026
    %v5154 = vunpack.c.l.b16 %v5027
    %v5155 = vunpack.c.h.b16 %v5027
    %v5156 = vpack.c.b16 %v5128, %v5124
    %v5157 = vpack.c.b16 %v5129, %v5125
    %v5158 = vpack.c.b16 %v5130, %v5126
    %v5159 = vpack.c.b16 %v5131, %v5127
    %v5160 = vpack.c.b16 %v5136, %v5132
    %v5161 = vpack.c.b16 %v5137, %v5133
    %v5162 = vpack.c.b16 %v5138, %v5134
    %v5163 = vpack.c.b16 %v5139, %v5135
    %v5164 = vpack.c.b16 %v5144, %v5140
    %v5165 = vpack.c.b16 %v5145, %v5141
    %v5166 = vpack.c.b16 %v5146, %v5142
    %v5167 = vpack.c.b16 %v5147, %v5143
    %v5168 = vpack.c.b16 %v5152, %v5148
    %v5169 = vpack.c.b16 %v5153, %v5149
    %v5170 = vpack.c.b16 %v5154, %v5150
    %v5171 = vpack.c.b16 %v5155, %v5151
    %5188 = vmatprep.subr.bf16.mxu0 0
    %5189 = vmatpush1.bf16.msra.mxu0 %v5028
    %5190 = vmatprep.subr.bf16.mxu0 0
    %5191 = vmatpush1.bf16.msra.mxu0 %v5029
    %5192 = vmatprep.subr.bf16.mxu0 0
    %5193 = vmatpush1.bf16.msra.mxu0 %v5030
    %5194 = vmatprep.subr.bf16.mxu0 0
    %5195 = vmatpush1.bf16.msra.mxu0 %v5031
    %5196 = vmatprep.subr.bf16.mxu0 0
    %5197 = vmatpush1.bf16.msra.mxu0 %v5032
    %5198 = vmatprep.subr.bf16.mxu0 0
    %5199 = vmatpush1.bf16.msra.mxu0 %v5033
    %5200 = vmatprep.subr.bf16.mxu0 0
    %5201 = vmatpush1.bf16.msra.mxu0 %v5034
    %5202 = vmatprep.subr.bf16.mxu0 0
    %5203 = vmatpush1.bf16.msra.mxu0 %v5035
    %5204 = vmatprep.subr.bf16.mxu0 0
    %5205 = vmatpush1.bf16.msra.mxu0 %v5036
    %5206 = vmatprep.subr.bf16.mxu0 0
    %5207 = vmatpush1.bf16.msra.mxu0 %v5037
    %5208 = vmatprep.subr.bf16.mxu0 0
    %5209 = vmatpush1.bf16.msra.mxu0 %v5038
    %5210 = vmatprep.subr.bf16.mxu0 0
    %5211 = vmatpush1.bf16.msra.mxu0 %v5039
    %5212 = vmatprep.subr.bf16.mxu0 0
    %5213 = vmatpush1.bf16.msra.mxu0 %v5040
    %5214 = vmatprep.subr.bf16.mxu0 0
    %5215 = vmatpush1.bf16.msra.mxu0 %v5041
    %5216 = vmatprep.subr.bf16.mxu0 0
    %5217 = vmatpush1.bf16.msra.mxu0 %v5042
    %5218 = vmatprep.subr.bf16.mxu0 0
    %5219 = vmatpush1.bf16.msra.mxu0 %v5043
    %5220 = vmatprep.mubr.bf16.mxu0 %v5157
    %5221 = vmatmul.mubr.bf16.gmra.mrb[0].mxu0 %v5156
    %v5222 = vpop.f32.mrb[0].mxu0
    %v5223 = vadd.f32 %v5071, %v5222
    %v5224 = vpop.f32.mrb[0].mxu0
    %v5225 = vpop.f32.mrb[0].mxu0
    %v5226 = vadd.f32 %v5076, %v5225
    %v5227 = vpop.f32.mrb[0].mxu0
    %5228 = vmatprep.mubr.bf16.mxu0 %v5161
    %5229 = vmatmul.mubr.bf16.gmra.mrb[0].mxu0 %v5160
    %v5230 = vpop.f32.mrb[0].mxu0
    %v5231 = vadd.f32 %v5081, %v5230
    %v5232 = vpop.f32.mrb[0].mxu0
    %v5233 = vpop.f32.mrb[0].mxu0
    %v5234 = vadd.f32 %v5086, %v5233
    %v5235 = vpop.f32.mrb[0].mxu0
    %5236 = vmatprep.mubr.bf16.mxu0 %v5165
    %5237 = vmatmul.mubr.bf16.gmra.mrb[0].mxu0 %v5164
    %v5238 = vpop.f32.mrb[0].mxu0
    %v5239 = vadd.f32 %v5091, %v5238
    %v5240 = vpop.f32.mrb[0].mxu0
    %v5241 = vpop.f32.mrb[0].mxu0
    %v5242 = vadd.f32 %v5096, %v5241
    %v5243 = vpop.f32.mrb[0].mxu0
    %5244 = vmatprep.mubr.bf16.mxu0 %v5169
    %5245 = vmatmul.mubr.bf16.gmra.mrb[0].mxu0 %v5168
    %v5246 = vpop.f32.mrb[0].mxu0
    %v5247 = vadd.f32 %v5101, %v5246
    %v5248 = vpop.f32.mrb[0].mxu0
    %v5249 = vpop.f32.mrb[0].mxu0
    %v5250 = vadd.f32 %v5106, %v5249
    %v5251 = vpop.f32.mrb[0].mxu0
    %5252 = vdwg.mxu0
    %5253 = vmatprep.subr.bf16.mxu0 0
    %5254 = vmatpush1.bf16.msra.mxu0 %v5044
    %5255 = vmatprep.subr.bf16.mxu0 0
    %5256 = vmatpush1.bf16.msra.mxu0 %v5045
    %5257 = vmatprep.subr.bf16.mxu0 0
    %5258 = vmatpush1.bf16.msra.mxu0 %v5046
    %5259 = vmatprep.subr.bf16.mxu0 0
    %5260 = vmatpush1.bf16.msra.mxu0 %v5047
    %5261 = vmatprep.subr.bf16.mxu0 0
    %5262 = vmatpush1.bf16.msra.mxu0 %v5048
    %5263 = vmatprep.subr.bf16.mxu0 0
    %5264 = vmatpush1.bf16.msra.mxu0 %v5049
    %5265 = vmatprep.subr.bf16.mxu0 0
    %5266 = vmatpush1.bf16.msra.mxu0 %v5050
    %5267 = vmatprep.subr.bf16.mxu0 0
    %5268 = vmatpush1.bf16.msra.mxu0 %v5051
    %5269 = vmatprep.subr.bf16.mxu0 0
    %5270 = vmatpush1.bf16.msra.mxu0 %v5052
    %5271 = vmatprep.subr.bf16.mxu0 0
    %5272 = vmatpush1.bf16.msra.mxu0 %v5053
    %5273 = vmatprep.subr.bf16.mxu0 0
    %5274 = vmatpush1.bf16.msra.mxu0 %v5054
    %5275 = vmatprep.subr.bf16.mxu0 0
    %5276 = vmatpush1.bf16.msra.mxu0 %v5055
    %5277 = vmatprep.subr.bf16.mxu0 0
    %5278 = vmatpush1.bf16.msra.mxu0 %v5056
    %5279 = vmatprep.subr.bf16.mxu0 0
    %5280 = vmatpush1.bf16.msra.mxu0 %v5057
    %5281 = vmatprep.subr.bf16.mxu0 0
    %5282 = vmatpush1.bf16.msra.mxu0 %v5058
    %5283 = vmatprep.subr.bf16.mxu0 0
    %5284 = vmatpush1.bf16.msra.mxu0 %v5059
    %5285 = vmatprep.mubr.bf16.mxu0 %v5159
    %5286 = vmatmul.mubr.bf16.gmra.mrb[0].mxu0 %v5158
    %v5287 = vpop.f32.mrb[0].mxu0
    %v5288 = vadd.f32 %v5223, %v5287
    %v5289 = vpop.f32.mrb[0].mxu0
    %v5290 = vpop.f32.mrb[0].mxu0
    %v5291 = vadd.f32 %v5226, %v5290
    %v5292 = vpop.f32.mrb[0].mxu0
    %5293 = vmatprep.mubr.bf16.mxu0 %v5163
    %5294 = vmatmul.mubr.bf16.gmra.mrb[0].mxu0 %v5162
    %v5295 = vpop.f32.mrb[0].mxu0
    %v5296 = vadd.f32 %v5231, %v5295
    %v5297 = vpop.f32.mrb[0].mxu0
    %v5298 = vpop.f32.mrb[0].mxu0
    %v5299 = vadd.f32 %v5234, %v5298
    %v5300 = vpop.f32.mrb[0].mxu0
    %5301 = vmatprep.mubr.bf16.mxu0 %v5167
    %5302 = vmatmul.mubr.bf16.gmra.mrb[0].mxu0 %v5166
    %v5303 = vpop.f32.mrb[0].mxu0
    %v5304 = vadd.f32 %v5239, %v5303
    %v5305 = vpop.f32.mrb[0].mxu0
    %v5306 = vpop.f32.mrb[0].mxu0
    %v5307 = vadd.f32 %v5242, %v5306
    %v5308 = vpop.f32.mrb[0].mxu0
    %5309 = vmatprep.mubr.bf16.mxu0 %v5171
    %5310 = vmatmul.mubr.bf16.gmra.mrb[0].mxu0 %v5170
    %v5311 = vpop.f32.mrb[0].mxu0
    %v5312 = vadd.f32 %v5247, %v5311
    %v5313 = vpop.f32.mrb[0].mxu0
    %v5314 = vpop.f32.mrb[0].mxu0
    %v5315 = vadd.f32 %v5250, %v5314
    %v5316 = vpop.f32.mrb[0].mxu0
    %5317 = vdwg.mxu0
    %v5318 = vmax.f32 %v5288, 0.0
    %v5319 = vmax.f32 %v5291, 0.0
    %v5320 = vmax.f32 %v5296, 0.0
    %v5321 = vmax.f32 %v5299, 0.0
    %v5322 = vmax.f32 %v5304, 0.0
    %v5323 = vmax.f32 %v5307, 0.0
    %v5324 = vmax.f32 %v5312, 0.0
    %v5325 = vmax.f32 %v5315, 0.0
    %v5326 = vld [vmem:[%s7] sm:$0x1]
    %v5327 = vpack.c.bf16 %v5319, %v5318
    %v5328 = vpack.c.bf16 %v5321, %v5320
    %v5329 = vpack.c.bf16 %v5323, %v5322
    %v5330 = vpack.c.bf16 %v5325, %v5324
    %v5331 = vld [vmem:[%s8] sm:$0x3]
    %5333 = vset.pattern.permute.xlu0 0
    %5334 = vperm.xlu0 %5333, %v5331
    %v5335 = vpop.permute.xlu0 %5334
    %v5338 = vsel %vm528, %v5326, 0
    %5340 = vmatprep.subr.bf16.mxu0 0
    %5341 = vmatpush1.bf16.msra.mxu0 %v5327
    %5342 = vmatprep.subr.bf16.mxu0 0
    %5343 = vmatpush1.bf16.msra.mxu0 %v5328
    %5344 = vmatprep.subr.bf16.mxu0 0
    %5345 = vmatpush1.bf16.msra.mxu0 %v5329
    %5346 = vmatprep.subr.bf16.mxu0 0
    %5347 = vmatpush1.bf16.msra.mxu0 %v5330
    %5348 = vmatprep.subr.bf16.mxu0 0
    %5349 = vmatpush1.bf16.msra.mxu0 0
    %5350 = vmatprep.subr.bf16.mxu0 0
    %5351 = vmatpush1.bf16.msra.mxu0 0
    %5352 = vmatprep.subr.bf16.mxu0 0
    %5353 = vmatpush1.bf16.msra.mxu0 0
    %5354 = vmatprep.subr.bf16.mxu0 0
    %5355 = vmatpush1.bf16.msra.mxu0 0
    %5356 = vmatprep.subr.bf16.mxu0 0
    %5357 = vmatpush1.bf16.msra.mxu0 0
    %5358 = vmatprep.subr.bf16.mxu0 0
    %5359 = vmatpush1.bf16.msra.mxu0 0
    %5360 = vmatprep.subr.bf16.mxu0 0
    %5361 = vmatpush1.bf16.msra.mxu0 0
    %5362 = vmatprep.subr.bf16.mxu0 0
    %5363 = vmatpush1.bf16.msra.mxu0 0
    %5364 = vmatprep.subr.bf16.mxu0 0
    %5365 = vmatpush1.bf16.msra.mxu0 0
    %5366 = vmatprep.subr.bf16.mxu0 0
    %5367 = vmatpush1.bf16.msra.mxu0 0
    %5368 = vmatprep.subr.bf16.mxu0 0
    %5369 = vmatpush1.bf16.msra.mxu0 0
    %5370 = vmatprep.subr.bf16.mxu0 0
    %5371 = vmatpush1.bf16.msra.mxu0 0
    %5372 = vmatprep.mubr.bf16.mxu0 0
    %5373 = vmatmul.mubr.bf16.gmra.mrb[0].mxu0 %v5338
    %v5374 = vpop.f32.mrb[0].mxu0
    %v5375 = vadd.f32 %v5335, %v5374
    %v5376 = vpop.f32.mrb[0].mxu0
    %v5377 = vpop.f32.mrb[0].mxu0
    %v5378 = vpop.f32.mrb[0].mxu0
    %5379 = vdwg.mxu0
    %5380 = vst [vmem:[#allocation5] sm:$0x3] %v5375
    // Predicated region
    $region42: #{tpu_custom_call.1} parent=1 // pred_check
      _
    $region43: #{tpu_custom_call.1} parent=1 // pred_check_branch
      %5382 = sbr.rel (0) target = $region45
    $region44: #{tpu_custom_call.1} parent=1 // pred_region
      %s5384 = ssub.s32 32, 32
      %5385 = vsyncadd [#allocation4], %s5384
      %s5387 = sshll.u32 [#allocation5], 4
      %s5388 = int_to_ptr.vmem [resolvable:$true] %s5387
      %5390 = dma.vmem_to_hbm [thread:$0]  %s5388, 32, %s9, [#allocation4]
    $region45: #{tpu_custom_call.1} parent=1 // pred_fallthru
      _
    // Predicated region
    $region46: #{tpu_custom_call.1} parent=1 // pred_check
      _
    $region47: #{tpu_custom_call.1} parent=1 // pred_check_branch
      %5392 = sbr.rel (0) target = $region49
    $region48: #{tpu_custom_call.1} parent=1 // pred_region
      %5393 = dma.done [#allocation4], 32
    $region49: #{tpu_custom_call.1} parent=1 // pred_fallthru
      _
    %5394 = vsyncpa [#allocation3], 1
    %5395 = vsyncpa [#allocation4], 1

</llo_original>
